<compile_context>
chip_gen: v7x
topology: tpu7x:2x2x1
jax: 0.10.0
libtpu: 0.0.40
codegen_flags: <defaults>
</compile_context>

<pallas_src>
import functools
import math

import jax
import jax.numpy as jnp
from jax import lax
from jax.experimental import pallas as pl
from jax.experimental.pallas import tpu as pltpu


# ------------------------------- LSTM building blocks -------------------------------
def _lstm_cell(gates, c, H):
    """gates: (Bp, 4H) pre-activation in torch order [i, f, g, o]; c: (Bp, H)."""
    i = jax.nn.sigmoid(gates[:, 0 * H:1 * H])
    f = jax.nn.sigmoid(gates[:, 1 * H:2 * H])
    g = jnp.tanh(gates[:, 2 * H:3 * H])
    o = jax.nn.sigmoid(gates[:, 3 * H:4 * H])
    c_new = f * c + i * g
    h_new = o * jnp.tanh(c_new)
    return h_new, c_new


def _run_bidir(x_ref, wih_ref, whhf_ref, whhb_ref, b_ref, gx_ref, emit,
               *, hidden_dim, seq_len, batch):
    """Fused forward+backward LSTM recurrence for one layer.

    x_ref   : (T*Bp, Din)  time-major, row = t*Bp + b
    wih_ref : (Din, 8H)    [W_ih_fw | W_ih_bw], pre-transposed
    whhf_ref, whhb_ref : (H, 4H)
    b_ref   : (Bp, 8H)     pre-broadcast (b_ih + b_hh) for both directions
    gx_ref  : (T*Bp, 8H)   VMEM scratch for the hoisted input projection
    emit(s, h_f, h_b)      per-step output writer (may be a no-op)

    Returns the final carry (h_f, c_f, h_b, c_b, h_b_first); h_b_first is the backward
    hidden state at original time T-1 (i.e. the backward direction's first step).
    """
    H, T, Bp = hidden_dim, seq_len, batch

    # (1) hoisted input projection for BOTH directions: one big MXU matmul.
    gx_ref[...] = jnp.dot(x_ref[...], wih_ref[...],
                          preferred_element_type=jnp.float32)

    # loop-invariant reads, hoisted out of the recurrence.
    b = b_ref[...]
    b_f = b[:, 0:4 * H]
    b_b = b[:, 4 * H:8 * H]
    w_hh_f = whhf_ref[...]
    w_hh_b = whhb_ref[...]

    zeros = jnp.zeros((Bp, H), jnp.float32)    # h0 = c0 = 0, like the torch module

    def step(s, carry):
        h_f, c_f, h_b, c_b, h_b_first = carry
        row_f = pl.multiple_of(s * Bp, Bp)
        row_b = pl.multiple_of((T - 1 - s) * Bp, Bp)
        gx_f = gx_ref[pl.ds(row_f, Bp), 0:4 * H]          # forward consumes x[s]
        gx_b = gx_ref[pl.ds(row_b, Bp), 4 * H:8 * H]      # backward consumes x[T-1-s]
        gates_f = gx_f + b_f + jnp.dot(h_f, w_hh_f, preferred_element_type=jnp.float32)
        gates_b = gx_b + b_b + jnp.dot(h_b, w_hh_b, preferred_element_type=jnp.float32)
        h_f, c_f = _lstm_cell(gates_f, c_f, H)
        h_b, c_b = _lstm_cell(gates_b, c_b, H)
        emit(s, h_f, h_b)
        h_b_first = jnp.where(s == 0, h_b, h_b_first)
        return (h_f, c_f, h_b, c_b, h_b_first)

    return lax.fori_loop(0, T, step, (zeros, zeros, zeros, zeros, zeros))


# --------------------- intermediate layer: full-sequence output ---------------------
def _bilstm_seq_kernel(x_ref, wih_ref, whhf_ref, whhb_ref, b_ref, out_ref, gx_ref,
                       *, hidden_dim, seq_len, batch):
    H, T = hidden_dim, seq_len

    def emit(s, h_f, h_b):
        out_ref[s, :, 0:H] = h_f                 # forward hidden at time s
        out_ref[T - 1 - s, :, H:2 * H] = h_b     # backward hidden at time T-1-s

    _run_bidir(x_ref, wih_ref, whhf_ref, whhb_ref, b_ref, gx_ref, emit,
               hidden_dim=hidden_dim, seq_len=seq_len, batch=batch)


def _bilstm_seq(x2d, w_ih, w_hh_f, w_hh_b, b, *, H, T, Bp):
    kernel = functools.partial(_bilstm_seq_kernel, hidden_dim=H, seq_len=T, batch=Bp)
    return pl.pallas_call(
        kernel,
        out_shape=jax.ShapeDtypeStruct((T, Bp, 2 * H), jnp.float32),
        in_specs=[pl.BlockSpec(memory_space=pltpu.MemorySpace.VMEM)] * 5,
        out_specs=pl.BlockSpec(memory_space=pltpu.MemorySpace.VMEM),
        scratch_shapes=[pltpu.VMEM((T * Bp, 8 * H), jnp.float32)],
    )(x2d, w_ih, w_hh_f, w_hh_b, b)


# ----------------------------------- KAN helpers ------------------------------------
def _kan_features(x, grid_knots, spline_order):
    """[SiLU(x) | B-spline bases(x)] stacked along lanes: (B, (S+1)*in)."""
    g = grid_knots
    bases = [jnp.logical_and(x >= g[j], x < g[j + 1]).astype(jnp.float32)
             for j in range(len(g) - 1)]
    for k in range(1, spline_order + 1):
        new_bases = []
        for j in range(len(bases) - 1):
            inv_a = 1.0 / (g[j + k] - g[j])            # Python constants: no EUP divides
            inv_b = 1.0 / (g[j + k + 1] - g[j + 1])
            new_bases.append((x - g[j]) * inv_a * bases[j]
                             + (g[j + k + 1] - x) * inv_b * bases[j + 1])
        bases = new_bases                              # final count = grid_size + order
    silu = x * jax.nn.sigmoid(x)
    return jnp.concatenate([silu] + bases, axis=1)


def _kan_layer(x, w, grid_knots, spline_order):
    """Full KANLinear (base path + scaled spline path) as ONE matmul."""
    feats = _kan_features(x, grid_knots, spline_order)
    return jnp.dot(feats, w, preferred_element_type=jnp.float32)


# ------------------ final layer: bidir LSTM fused with the KAN head ------------------
def _bilstm_kan_head_kernel(x_ref, wih_ref, whhf_ref, whhb_ref, b_ref,
                            kw1_ref, kw2_ref, out_ref, gx_ref,
                            *, hidden_dim, seq_len, batch, grid_knots, spline_order):
    def emit(s, h_f, h_b):
        pass  # last layer: only the final-timestep states feed the head -> no sequence writeback

    h_f, _c_f, _h_b, _c_b, h_b_first = _run_bidir(
        x_ref, wih_ref, whhf_ref, whhb_ref, b_ref, gx_ref, emit,
        hidden_dim=hidden_dim, seq_len=seq_len, batch=batch)

    # out[:, -1, :] == [forward h at t=T-1 | backward h at t=T-1 (its first step)]
    last = jnp.concatenate([h_f, h_b_first], axis=1)                     # (Bp, 2H)
    h1 = _kan_layer(last, kw1_ref[...], grid_knots, spline_order)        # (Bp, 10)
    out_ref[...] = _kan_layer(h1, kw2_ref[...], grid_knots, spline_order)  # (Bp, out)


def _bilstm_kan_head(x2d, w_ih, w_hh_f, w_hh_b, b, kw1, kw2, *, H, T, Bp,
                     grid_knots, spline_order):
    out_dim = kw2.shape[1]
    kernel = functools.partial(_bilstm_kan_head_kernel, hidden_dim=H, seq_len=T,
                               batch=Bp, grid_knots=grid_knots,
                               spline_order=spline_order)
    return pl.pallas_call(
        kernel,
        out_shape=jax.ShapeDtypeStruct((Bp, out_dim), jnp.float32),
        in_specs=[pl.BlockSpec(memory_space=pltpu.MemorySpace.VMEM)] * 7,
        out_specs=pl.BlockSpec(memory_space=pltpu.MemorySpace.VMEM),
        scratch_shapes=[pltpu.VMEM((T * Bp, 8 * H), jnp.float32)],
    )(x2d, w_ih, w_hh_f, w_hh_b, b, kw1, kw2)


# ----------------------------------- full forward -----------------------------------
def bilstm_ekan_forward(params, x):
    """x: (B, T, input_dim), batch_first like the PyTorch module. Returns (B, output_dim)."""
    B, T, _ = x.shape
    H = params['hidden_dim']
    grid_knots = params['grid']
    order = params['spline_order']

    Bp = max(8, -(-B // 8) * 8)                       # pad batch to a sublane multiple
    xt = jnp.transpose(x, (1, 0, 2)).astype(jnp.float32)        # time-major (T, B, Din)
    if Bp != B:
        xt = jnp.pad(xt, ((0, 0), (0, Bp - B), (0, 0)))
    cur = xt.reshape(T * Bp, xt.shape[-1])            # row = t*Bp + b

    n_layers = len(params['lstm'])
    out = None
    for li, lp in enumerate(params['lstm']):
        b_bc = jnp.broadcast_to(lp['b'], (Bp, 8 * H))           # pre-broadcast bias
        if li < n_layers - 1:
            y = _bilstm_seq(cur, lp['w_ih'], lp['w_hh_f'], lp['w_hh_b'], b_bc,
                            H=H, T=T, Bp=Bp)                    # (T, Bp, 2H)
            cur = y.reshape(T * Bp, 2 * H)
        else:
            out = _bilstm_kan_head(cur, lp['w_ih'], lp['w_hh_f'], lp['w_hh_b'], b_bc,
                                   params['kan'][0], params['kan'][1],
                                   H=H, T=T, Bp=Bp,
                                   grid_knots=grid_knots, spline_order=order)
    return out[:B]


# ------------------------------- deterministic init ---------------------------------
def _uniform(key, shape, scale):
    return jax.random.uniform(key, shape, jnp.float32, -scale, scale)


def init_params(key, input_dim, hidden_dim, num_layers, output_dim,
                grid_size=5, spline_order=3, grid_range=(-1.0, 1.0)):
    keys = iter(jax.random.split(key, 256))
    H = hidden_dim
    k_lstm = 1.0 / math.sqrt(H)

    lstm_layers = []
    for l in range(num_layers):
        din = input_dim if l == 0 else 2 * H
        # forward direction (torch layout (4H, din)/(4H, H), gate order [i,f,g,o])
        w_ih_f = _uniform(next(keys), (4 * H, din), k_lstm)
        w_hh_f = _uniform(next(keys), (4 * H, H), k_lstm)
        b_f = _uniform(next(keys), (4 * H,), k_lstm) + _uniform(next(keys), (4 * H,), k_lstm)
        # backward direction
        w_ih_b = _uniform(next(keys), (4 * H, din), k_lstm)
        w_hh_b = _uniform(next(keys), (4 * H, H), k_lstm)
        b_b = _uniform(next(keys), (4 * H,), k_lstm) + _uniform(next(keys), (4 * H,), k_lstm)
        lstm_layers.append({
            'w_ih': jnp.concatenate([w_ih_f.T, w_ih_b.T], axis=1),    # (din, 8H)
            'w_hh_f': w_hh_f.T,                                       # (H, 4H)
            'w_hh_b': w_hh_b.T,                                       # (H, 4H)
            'b': jnp.concatenate([b_f, b_b]).reshape(1, 8 * H),       # combined b_ih + b_hh
        })

    # KAN: fold standalone spline scaling + transposes + base/spline concat into the params.
    h = (grid_range[1] - grid_range[0]) / grid_size
    grid_knots = tuple(float(grid_range[0] + h * k)
                       for k in range(-spline_order, grid_size + spline_order + 1))
    S = grid_size + spline_order
    dims = [2 * H, 10, output_dim]
    kan = []
    for in_f, out_f in zip(dims[:-1], dims[1:]):
        base_w = _uniform(next(keys), (out_f, in_f), 1.0 / math.sqrt(in_f))
        spline_w = 0.1 * jax.random.normal(next(keys), (out_f, in_f, S), jnp.float32)
        scaler = _uniform(next(keys), (out_f, in_f), 1.0 / math.sqrt(in_f))
        scaled = spline_w * scaler[..., None]                           # (out, in, S)
        sw = jnp.transpose(scaled, (2, 1, 0)).reshape(S * in_f, out_f)  # (S*in, out)
        kan.append(jnp.concatenate([base_w.T, sw], axis=0))             # ((S+1)*in, out)

    return {'hidden_dim': H, 'grid': grid_knots, 'spline_order': spline_order,
            'lstm': lstm_layers, 'kan': kan}


# --------------------------------------- main ---------------------------------------
if __name__ == "__main__":
    input_dim, hidden_dim, num_layers, output_dim = 16, 32, 2, 5
    batch, seq = 2, 8

    key = jax.random.PRNGKey(0)
    kp, kx = jax.random.split(key)
    params = init_params(kp, input_dim, hidden_dim, num_layers, output_dim)
    x = jax.random.normal(kx, (batch, seq, input_dim), jnp.float32)

    fwd = jax.jit(lambda xx: bilstm_ekan_forward(params, xx))
    out = jax.block_until_ready(fwd(x))
    assert out.shape == (batch, output_dim)
    assert bool(jnp.all(jnp.isfinite(out)))
    print("KERNEL_OK")
</pallas_src>

<mosaic_0001>
module attributes {stable_mosaic.version = 11 : i64} {
  func.func @_bilstm_seq_kernel(%arg0: memref<64x16xf32, #tpu.memory_space<vmem>>, %arg1: memref<16x256xf32, #tpu.memory_space<vmem>>, %arg2: memref<32x128xf32, #tpu.memory_space<vmem>>, %arg3: memref<32x128xf32, #tpu.memory_space<vmem>>, %arg4: memref<8x256xf32, #tpu.memory_space<vmem>>, %arg5: memref<8x8x64xf32, #tpu.memory_space<vmem>>, %arg6: memref<64x256xf32, #tpu.memory_space<vmem>>) attributes {dimension_semantics = [], scalar_prefetch = 0 : i64, scratch_operands = 1 : i64, tpu.core_type = #tpu.core_type<tc>} {
    %c0 = arith.constant 0 : index
    %c0_0 = arith.constant 0 : index
    %0 = vector.load %arg0[%c0, %c0_0] : memref<64x16xf32, #tpu.memory_space<vmem>>, vector<64x16xf32>
    %c0_1 = arith.constant 0 : index
    %c0_2 = arith.constant 0 : index
    %1 = vector.load %arg1[%c0_1, %c0_2] : memref<16x256xf32, #tpu.memory_space<vmem>>, vector<16x256xf32>
    %cst = arith.constant dense<0.000000e+00> : vector<64x256xf32>
    %2 = tpu.matmul %0, %1, %cst {dimension_numbers = #tpu.dot_dimension_numbers<[1], [0], [0], [1], [0, 0, 1, 1], [], []>} : vector<64x16xf32>, vector<16x256xf32>, vector<64x256xf32> -> vector<64x256xf32>
    %c0_3 = arith.constant 0 : index
    %c0_4 = arith.constant 0 : index
    %3 = vector.load %arg6[%c0_3, %c0_4] : memref<64x256xf32, #tpu.memory_space<vmem>>, vector<64x256xf32>
    tpu.vector_store %arg6[%c0_3, %c0_4], %2 {strides = array<i32>} : memref<64x256xf32, #tpu.memory_space<vmem>>, vector<64x256xf32>,
    %c0_5 = arith.constant 0 : index
    %c0_6 = arith.constant 0 : index
    %4 = vector.load %arg4[%c0_5, %c0_6] : memref<8x256xf32, #tpu.memory_space<vmem>>, vector<8x256xf32>
    %5 = vector.extract_strided_slice %4 {offsets = [0, 0], sizes = [8, 128], strides = [1, 1]} : vector<8x256xf32> to vector<8x128xf32>
    %6 = vector.extract_strided_slice %4 {offsets = [0, 128], sizes = [8, 128], strides = [1, 1]} : vector<8x256xf32> to vector<8x128xf32>
    %c0_7 = arith.constant 0 : index
    %c0_8 = arith.constant 0 : index
    %7 = vector.load %arg2[%c0_7, %c0_8] : memref<32x128xf32, #tpu.memory_space<vmem>>, vector<32x128xf32>
    %c0_9 = arith.constant 0 : index
    %c0_10 = arith.constant 0 : index
    %8 = vector.load %arg3[%c0_9, %c0_10] : memref<32x128xf32, #tpu.memory_space<vmem>>, vector<32x128xf32>
    %cst_11 = arith.constant 0.000000e+00 : f32
    %9 = vector.broadcast %cst_11 : f32 to vector<8x32xf32>
    %c0_i32 = arith.constant 0 : i32
    %c8_i32 = arith.constant 8 : i32
    %10 = arith.addi %c0_i32, %c8_i32 : i32
    %c1_i32 = arith.constant 1 : i32
    %11:4 = scf.for %arg7 = %c0_i32 to %10 step %c1_i32 iter_args(%arg8 = %9, %arg9 = %9, %arg10 = %9, %arg11 = %9) -> (vector<8x32xf32>, vector<8x32xf32>, vector<8x32xf32>, vector<8x32xf32>)  : i32 {
      %c8_i32_13 = arith.constant 8 : i32
      %12 = arith.muli %arg7, %c8_i32_13 : i32
      %13 = tpu.assume_multiple %12, 8 : i32
      %c7_i32 = arith.constant 7 : i32
      %14 = arith.subi %c7_i32, %arg7 : i32
      %c8_i32_14 = arith.constant 8 : i32
      %15 = arith.muli %14, %c8_i32_14 : i32
      %16 = tpu.assume_multiple %15, 8 : i32
      %17 = arith.index_cast %13 : i32 to index
      %c0_15 = arith.constant 0 : index
      %18 = vector.load %arg6[%17, %c0_15] : memref<64x256xf32, #tpu.memory_space<vmem>>, vector<8x128xf32>
      %19 = arith.index_cast %16 : i32 to index
      %c128 = arith.constant 128 : index
      %20 = vector.load %arg6[%19, %c128] : memref<64x256xf32, #tpu.memory_space<vmem>>, vector<8x128xf32>
      %21 = arith.addf %18, %5 : vector<8x128xf32>
      %cst_16 = arith.constant dense<0.000000e+00> : vector<8x128xf32>
      %22 = tpu.matmul %arg8, %7, %cst_16 {dimension_numbers = #tpu.dot_dimension_numbers<[1], [0], [0], [1], [0, 0, 1, 1], [], []>} : vector<8x32xf32>, vector<32x128xf32>, vector<8x128xf32> -> vector<8x128xf32>
      %23 = arith.addf %21, %22 : vector<8x128xf32>
      %24 = arith.addf %20, %6 : vector<8x128xf32>
      %cst_17 = arith.constant dense<0.000000e+00> : vector<8x128xf32>
      %25 = tpu.matmul %arg10, %8, %cst_17 {dimension_numbers = #tpu.dot_dimension_numbers<[1], [0], [0], [1], [0, 0, 1, 1], [], []>} : vector<8x32xf32>, vector<32x128xf32>, vector<8x128xf32> -> vector<8x128xf32>
      %26 = arith.addf %24, %25 : vector<8x128xf32>
      %27 = vector.extract_strided_slice %23 {offsets = [0, 0], sizes = [8, 32], strides = [1, 1]} : vector<8x128xf32> to vector<8x32xf32>
      %28 = arith.negf %27 : vector<8x32xf32>
      %29 = math.exp %28 : vector<8x32xf32>
      %cst_18 = arith.constant 1.000000e+00 : f32
      %30 = vector.broadcast %cst_18 : f32 to vector<8x32xf32>
      %31 = arith.addf %30, %29 : vector<8x32xf32>
      %32 = arith.divf %30, %31 : vector<8x32xf32>
      %33 = vector.extract_strided_slice %23 {offsets = [0, 32], sizes = [8, 32], strides = [1, 1]} : vector<8x128xf32> to vector<8x32xf32>
      %34 = arith.negf %33 : vector<8x32xf32>
      %35 = math.exp %34 : vector<8x32xf32>
      %cst_19 = arith.constant 1.000000e+00 : f32
      %36 = vector.broadcast %cst_19 : f32 to vector<8x32xf32>
      %37 = arith.addf %36, %35 : vector<8x32xf32>
      %38 = arith.divf %36, %37 : vector<8x32xf32>
      %39 = vector.extract_strided_slice %23 {offsets = [0, 64], sizes = [8, 32], strides = [1, 1]} : vector<8x128xf32> to vector<8x32xf32>
      %40 = math.tanh %39 : vector<8x32xf32>
      %41 = vector.extract_strided_slice %23 {offsets = [0, 96], sizes = [8, 32], strides = [1, 1]} : vector<8x128xf32> to vector<8x32xf32>
      %42 = arith.negf %41 : vector<8x32xf32>
      %43 = math.exp %42 : vector<8x32xf32>
      %cst_20 = arith.constant 1.000000e+00 : f32
      %44 = vector.broadcast %cst_20 : f32 to vector<8x32xf32>
      %45 = arith.addf %44, %43 : vector<8x32xf32>
      %46 = arith.divf %44, %45 : vector<8x32xf32>
      %47 = arith.mulf %38, %arg9 : vector<8x32xf32>
      %48 = arith.mulf %32, %40 : vector<8x32xf32>
      %49 = arith.addf %47, %48 : vector<8x32xf32>
      %50 = math.tanh %49 : vector<8x32xf32>
      %51 = arith.mulf %46, %50 : vector<8x32xf32>
      %52 = vector.extract_strided_slice %26 {offsets = [0, 0], sizes = [8, 32], strides = [1, 1]} : vector<8x128xf32> to vector<8x32xf32>
      %53 = arith.negf %52 : vector<8x32xf32>
      %54 = math.exp %53 : vector<8x32xf32>
      %cst_21 = arith.constant 1.000000e+00 : f32
      %55 = vector.broadcast %cst_21 : f32 to vector<8x32xf32>
      %56 = arith.addf %55, %54 : vector<8x32xf32>
      %57 = arith.divf %55, %56 : vector<8x32xf32>
      %58 = vector.extract_strided_slice %26 {offsets = [0, 32], sizes = [8, 32], strides = [1, 1]} : vector<8x128xf32> to vector<8x32xf32>
      %59 = arith.negf %58 : vector<8x32xf32>
      %60 = math.exp %59 : vector<8x32xf32>
      %cst_22 = arith.constant 1.000000e+00 : f32
      %61 = vector.broadcast %cst_22 : f32 to vector<8x32xf32>
      %62 = arith.addf %61, %60 : vector<8x32xf32>
      %63 = arith.divf %61, %62 : vector<8x32xf32>
      %64 = vector.extract_strided_slice %26 {offsets = [0, 64], sizes = [8, 32], strides = [1, 1]} : vector<8x128xf32> to vector<8x32xf32>
      %65 = math.tanh %64 : vector<8x32xf32>
      %66 = vector.extract_strided_slice %26 {offsets = [0, 96], sizes = [8, 32], strides = [1, 1]} : vector<8x128xf32> to vector<8x32xf32>
      %67 = arith.negf %66 : vector<8x32xf32>
      %68 = math.exp %67 : vector<8x32xf32>
      %cst_23 = arith.constant 1.000000e+00 : f32
      %69 = vector.broadcast %cst_23 : f32 to vector<8x32xf32>
      %70 = arith.addf %69, %68 : vector<8x32xf32>
      %71 = arith.divf %69, %70 : vector<8x32xf32>
      %72 = arith.mulf %63, %arg11 : vector<8x32xf32>
      %73 = arith.mulf %57, %65 : vector<8x32xf32>
      %74 = arith.addf %72, %73 : vector<8x32xf32>
      %75 = math.tanh %74 : vector<8x32xf32>
      %76 = arith.mulf %71, %75 : vector<8x32xf32>
      %77 = arith.index_cast %arg7 : i32 to index
      %c0_24 = arith.constant 0 : index
      %c0_25 = arith.constant 0 : index
      %78 = vector.load %arg5[%77, %c0_24, %c0_25] : memref<8x8x64xf32, #tpu.memory_space<vmem>>, vector<1x8x32xf32>
      %79 = vector.shape_cast %78 : vector<1x8x32xf32> to vector<8x32xf32>
      %80 = vector.shape_cast %51 : vector<8x32xf32> to vector<1x8x32xf32>
      tpu.vector_store %arg5[%77, %c0_24, %c0_25], %80 {strides = array<i32>} : memref<8x8x64xf32, #tpu.memory_space<vmem>>, vector<1x8x32xf32>,
      %c7_i32_26 = arith.constant 7 : i32
      %81 = arith.subi %c7_i32_26, %arg7 : i32
      %82 = arith.index_cast %81 : i32 to index
      %c0_27 = arith.constant 0 : index
      %c32 = arith.constant 32 : index
      %83 = vector.load %arg5[%82, %c0_27, %c32] : memref<8x8x64xf32, #tpu.memory_space<vmem>>, vector<1x8x32xf32>
      %84 = vector.shape_cast %83 : vector<1x8x32xf32> to vector<8x32xf32>
      %85 = vector.shape_cast %76 : vector<8x32xf32> to vector<1x8x32xf32>
      tpu.vector_store %arg5[%82, %c0_27, %c32], %85 {strides = array<i32>} : memref<8x8x64xf32, #tpu.memory_space<vmem>>, vector<1x8x32xf32>,
      scf.yield %51, %49, %76, %74 : vector<8x32xf32>, vector<8x32xf32>, vector<8x32xf32>, vector<8x32xf32>
    }
    %c8_i32_12 = arith.constant 8 : i32
    return
  }
}

module attributes {stable_mosaic.version = 11 : i64} {
  func.func @_bilstm_kan_head_kernel(%arg0: memref<64x64xf32, #tpu.memory_space<vmem>>, %arg1: memref<64x256xf32, #tpu.memory_space<vmem>>, %arg2: memref<32x128xf32, #tpu.memory_space<vmem>>, %arg3: memref<32x128xf32, #tpu.memory_space<vmem>>, %arg4: memref<8x256xf32, #tpu.memory_space<vmem>>, %arg5: memref<576x10xf32, #tpu.memory_space<vmem>>, %arg6: memref<90x5xf32, #tpu.memory_space<vmem>>, %arg7: memref<8x5xf32, #tpu.memory_space<vmem>>, %arg8: memref<64x256xf32, #tpu.memory_space<vmem>>) attributes {dimension_semantics = [], scalar_prefetch = 0 : i64, scratch_operands = 1 : i64, tpu.core_type = #tpu.core_type<tc>} {
    %c0 = arith.constant 0 : index
    %c0_0 = arith.constant 0 : index
    %0 = vector.load %arg0[%c0, %c0_0] : memref<64x64xf32, #tpu.memory_space<vmem>>, vector<64x64xf32>
    %c0_1 = arith.constant 0 : index
    %c0_2 = arith.constant 0 : index
    %1 = vector.load %arg1[%c0_1, %c0_2] : memref<64x256xf32, #tpu.memory_space<vmem>>, vector<64x256xf32>
    %cst = arith.constant dense<0.000000e+00> : vector<64x256xf32>
    %2 = tpu.matmul %0, %1, %cst {dimension_numbers = #tpu.dot_dimension_numbers<[1], [0], [0], [1], [0, 0, 1, 1], [], []>} : vector<64x64xf32>, vector<64x256xf32>, vector<64x256xf32> -> vector<64x256xf32>
    %c0_3 = arith.constant 0 : index
    %c0_4 = arith.constant 0 : index
    %3 = vector.load %arg8[%c0_3, %c0_4] : memref<64x256xf32, #tpu.memory_space<vmem>>, vector<64x256xf32>
    tpu.vector_store %arg8[%c0_3, %c0_4], %2 {strides = array<i32>} : memref<64x256xf32, #tpu.memory_space<vmem>>, vector<64x256xf32>,
    %c0_5 = arith.constant 0 : index
    %c0_6 = arith.constant 0 : index
    %4 = vector.load %arg4[%c0_5, %c0_6] : memref<8x256xf32, #tpu.memory_space<vmem>>, vector<8x256xf32>
    %5 = vector.extract_strided_slice %4 {offsets = [0, 0], sizes = [8, 128], strides = [1, 1]} : vector<8x256xf32> to vector<8x128xf32>
    %6 = vector.extract_strided_slice %4 {offsets = [0, 128], sizes = [8, 128], strides = [1, 1]} : vector<8x256xf32> to vector<8x128xf32>
    %c0_7 = arith.constant 0 : index
    %c0_8 = arith.constant 0 : index
    %7 = vector.load %arg2[%c0_7, %c0_8] : memref<32x128xf32, #tpu.memory_space<vmem>>, vector<32x128xf32>
    %c0_9 = arith.constant 0 : index
    %c0_10 = arith.constant 0 : index
    %8 = vector.load %arg3[%c0_9, %c0_10] : memref<32x128xf32, #tpu.memory_space<vmem>>, vector<32x128xf32>
    %cst_11 = arith.constant 0.000000e+00 : f32
    %9 = vector.broadcast %cst_11 : f32 to vector<8x32xf32>
    %c0_i32 = arith.constant 0 : i32
    %c8_i32 = arith.constant 8 : i32
    %10 = arith.addi %c0_i32, %c8_i32 : i32
    %c1_i32 = arith.constant 1 : i32
    %11:5 = scf.for %arg9 = %c0_i32 to %10 step %c1_i32 iter_args(%arg10 = %9, %arg11 = %9, %arg12 = %9, %arg13 = %9, %arg14 = %9) -> (vector<8x32xf32>, vector<8x32xf32>, vector<8x32xf32>, vector<8x32xf32>, vector<8x32xf32>)  : i32 {
      %c8_i32_283 = arith.constant 8 : i32
      %780 = arith.muli %arg9, %c8_i32_283 : i32
      %781 = tpu.assume_multiple %780, 8 : i32
      %c7_i32 = arith.constant 7 : i32
      %782 = arith.subi %c7_i32, %arg9 : i32
      %c8_i32_284 = arith.constant 8 : i32
      %783 = arith.muli %782, %c8_i32_284 : i32
      %784 = tpu.assume_multiple %783, 8 : i32
      %785 = arith.index_cast %781 : i32 to index
      %c0_285 = arith.constant 0 : index
      %786 = vector.load %arg8[%785, %c0_285] : memref<64x256xf32, #tpu.memory_space<vmem>>, vector<8x128xf32>
      %787 = arith.index_cast %784 : i32 to index
      %c128 = arith.constant 128 : index
      %788 = vector.load %arg8[%787, %c128] : memref<64x256xf32, #tpu.memory_space<vmem>>, vector<8x128xf32>
      %789 = arith.addf %786, %5 : vector<8x128xf32>
      %cst_286 = arith.constant dense<0.000000e+00> : vector<8x128xf32>
      %790 = tpu.matmul %arg10, %7, %cst_286 {dimension_numbers = #tpu.dot_dimension_numbers<[1], [0], [0], [1], [0, 0, 1, 1], [], []>} : vector<8x32xf32>, vector<32x128xf32>, vector<8x128xf32> -> vector<8x128xf32>
      %791 = arith.addf %789, %790 : vector<8x128xf32>
      %792 = arith.addf %788, %6 : vector<8x128xf32>
      %cst_287 = arith.constant dense<0.000000e+00> : vector<8x128xf32>
      %793 = tpu.matmul %arg12, %8, %cst_287 {dimension_numbers = #tpu.dot_dimension_numbers<[1], [0], [0], [1], [0, 0, 1, 1], [], []>} : vector<8x32xf32>, vector<32x128xf32>, vector<8x128xf32> -> vector<8x128xf32>
      %794 = arith.addf %792, %793 : vector<8x128xf32>
      %795 = vector.extract_strided_slice %791 {offsets = [0, 0], sizes = [8, 32], strides = [1, 1]} : vector<8x128xf32> to vector<8x32xf32>
      %796 = arith.negf %795 : vector<8x32xf32>
      %797 = math.exp %796 : vector<8x32xf32>
      %cst_288 = arith.constant 1.000000e+00 : f32
      %798 = vector.broadcast %cst_288 : f32 to vector<8x32xf32>
      %799 = arith.addf %798, %797 : vector<8x32xf32>
      %800 = arith.divf %798, %799 : vector<8x32xf32>
      %801 = vector.extract_strided_slice %791 {offsets = [0, 32], sizes = [8, 32], strides = [1, 1]} : vector<8x128xf32> to vector<8x32xf32>
      %802 = arith.negf %801 : vector<8x32xf32>
      %803 = math.exp %802 : vector<8x32xf32>
      %cst_289 = arith.constant 1.000000e+00 : f32
      %804 = vector.broadcast %cst_289 : f32 to vector<8x32xf32>
      %805 = arith.addf %804, %803 : vector<8x32xf32>
      %806 = arith.divf %804, %805 : vector<8x32xf32>
      %807 = vector.extract_strided_slice %791 {offsets = [0, 64], sizes = [8, 32], strides = [1, 1]} : vector<8x128xf32> to vector<8x32xf32>
      %808 = math.tanh %807 : vector<8x32xf32>
      %809 = vector.extract_strided_slice %791 {offsets = [0, 96], sizes = [8, 32], strides = [1, 1]} : vector<8x128xf32> to vector<8x32xf32>
      %810 = arith.negf %809 : vector<8x32xf32>
      %811 = math.exp %810 : vector<8x32xf32>
      %cst_290 = arith.constant 1.000000e+00 : f32
      %812 = vector.broadcast %cst_290 : f32 to vector<8x32xf32>
      %813 = arith.addf %812, %811 : vector<8x32xf32>
      %814 = arith.divf %812, %813 : vector<8x32xf32>
      %815 = arith.mulf %806, %arg11 : vector<8x32xf32>
      %816 = arith.mulf %800, %808 : vector<8x32xf32>
      %817 = arith.addf %815, %816 : vector<8x32xf32>
      %818 = math.tanh %817 : vector<8x32xf32>
      %819 = arith.mulf %814, %818 : vector<8x32xf32>
      %820 = vector.extract_strided_slice %794 {offsets = [0, 0], sizes = [8, 32], strides = [1, 1]} : vector<8x128xf32> to vector<8x32xf32>
      %821 = arith.negf %820 : vector<8x32xf32>
      %822 = math.exp %821 : vector<8x32xf32>
      %cst_291 = arith.constant 1.000000e+00 : f32
      %823 = vector.broadcast %cst_291 : f32 to vector<8x32xf32>
      %824 = arith.addf %823, %822 : vector<8x32xf32>
      %825 = arith.divf %823, %824 : vector<8x32xf32>
      %826 = vector.extract_strided_slice %794 {offsets = [0, 32], sizes = [8, 32], strides = [1, 1]} : vector<8x128xf32> to vector<8x32xf32>
      %827 = arith.negf %826 : vector<8x32xf32>
      %828 = math.exp %827 : vector<8x32xf32>
      %cst_292 = arith.constant 1.000000e+00 : f32
      %829 = vector.broadcast %cst_292 : f32 to vector<8x32xf32>
      %830 = arith.addf %829, %828 : vector<8x32xf32>
      %831 = arith.divf %829, %830 : vector<8x32xf32>
      %832 = vector.extract_strided_slice %794 {offsets = [0, 64], sizes = [8, 32], strides = [1, 1]} : vector<8x128xf32> to vector<8x32xf32>
      %833 = math.tanh %832 : vector<8x32xf32>
      %834 = vector.extract_strided_slice %794 {offsets = [0, 96], sizes = [8, 32], strides = [1, 1]} : vector<8x128xf32> to vector<8x32xf32>
      %835 = arith.negf %834 : vector<8x32xf32>
      %836 = math.exp %835 : vector<8x32xf32>
      %cst_293 = arith.constant 1.000000e+00 : f32
      %837 = vector.broadcast %cst_293 : f32 to vector<8x32xf32>
      %838 = arith.addf %837, %836 : vector<8x32xf32>
      %839 = arith.divf %837, %838 : vector<8x32xf32>
      %840 = arith.mulf %831, %arg13 : vector<8x32xf32>
      %841 = arith.mulf %825, %833 : vector<8x32xf32>
      %842 = arith.addf %840, %841 : vector<8x32xf32>
      %843 = math.tanh %842 : vector<8x32xf32>
      %844 = arith.mulf %839, %843 : vector<8x32xf32>
      %c0_i32_294 = arith.constant 0 : i32
      %845 = arith.cmpi eq, %arg9, %c0_i32_294 : i32
      %846 = arith.select %845, %844, %arg14 : vector<8x32xf32>
      scf.yield %819, %817, %844, %842, %846 : vector<8x32xf32>, vector<8x32xf32>, vector<8x32xf32>, vector<8x32xf32>, vector<8x32xf32>
    }
    %c8_i32_12 = arith.constant 8 : i32
    %12 = tpu.concatenate %11#0, %11#4 in 1 : vector<8x32xf32>, vector<8x32xf32> -> vector<8x64xf32>
    %c0_13 = arith.constant 0 : index
    %c0_14 = arith.constant 0 : index
    %13 = vector.load %arg5[%c0_13, %c0_14] : memref<576x10xf32, #tpu.memory_space<vmem>>, vector<576x10xf32>
    %cst_15 = arith.constant -2.200000e+00 : f32
    %14 = vector.broadcast %cst_15 : f32 to vector<8x64xf32>
    %15 = arith.cmpf oge, %12, %14 : vector<8x64xf32>
    %cst_16 = arith.constant -1.800000e+00 : f32
    %16 = vector.broadcast %cst_16 : f32 to vector<8x64xf32>
    %17 = arith.cmpf olt, %12, %16 : vector<8x64xf32>
    %18 = arith.andi %15, %17 : vector<8x64xi1>
    %19 = arith.extui %18 : vector<8x64xi1> to vector<8x64xi32>
    %20 = arith.sitofp %19 : vector<8x64xi32> to vector<8x64xf32>
    %cst_17 = arith.constant -1.800000e+00 : f32
    %21 = vector.broadcast %cst_17 : f32 to vector<8x64xf32>
    %22 = arith.cmpf oge, %12, %21 : vector<8x64xf32>
    %cst_18 = arith.constant -1.400000e+00 : f32
    %23 = vector.broadcast %cst_18 : f32 to vector<8x64xf32>
    %24 = arith.cmpf olt, %12, %23 : vector<8x64xf32>
    %25 = arith.andi %22, %24 : vector<8x64xi1>
    %26 = arith.extui %25 : vector<8x64xi1> to vector<8x64xi32>
    %27 = arith.sitofp %26 : vector<8x64xi32> to vector<8x64xf32>
    %cst_19 = arith.constant -1.400000e+00 : f32
    %28 = vector.broadcast %cst_19 : f32 to vector<8x64xf32>
    %29 = arith.cmpf oge, %12, %28 : vector<8x64xf32>
    %cst_20 = arith.constant -1.000000e+00 : f32
    %30 = vector.broadcast %cst_20 : f32 to vector<8x64xf32>
    %31 = arith.cmpf olt, %12, %30 : vector<8x64xf32>
    %32 = arith.andi %29, %31 : vector<8x64xi1>
    %33 = arith.extui %32 : vector<8x64xi1> to vector<8x64xi32>
    %34 = arith.sitofp %33 : vector<8x64xi32> to vector<8x64xf32>
    %cst_21 = arith.constant -1.000000e+00 : f32
    %35 = vector.broadcast %cst_21 : f32 to vector<8x64xf32>
    %36 = arith.cmpf oge, %12, %35 : vector<8x64xf32>
    %cst_22 = arith.constant -6.000000e-01 : f32
    %37 = vector.broadcast %cst_22 : f32 to vector<8x64xf32>
    %38 = arith.cmpf olt, %12, %37 : vector<8x64xf32>
    %39 = arith.andi %36, %38 : vector<8x64xi1>
    %40 = arith.extui %39 : vector<8x64xi1> to vector<8x64xi32>
    %41 = arith.sitofp %40 : vector<8x64xi32> to vector<8x64xf32>
    %cst_23 = arith.constant -6.000000e-01 : f32
    %42 = vector.broadcast %cst_23 : f32 to vector<8x64xf32>
    %43 = arith.cmpf oge, %12, %42 : vector<8x64xf32>
    %cst_24 = arith.constant -2.000000e-01 : f32
    %44 = vector.broadcast %cst_24 : f32 to vector<8x64xf32>
    %45 = arith.cmpf olt, %12, %44 : vector<8x64xf32>
    %46 = arith.andi %43, %45 : vector<8x64xi1>
    %47 = arith.extui %46 : vector<8x64xi1> to vector<8x64xi32>
    %48 = arith.sitofp %47 : vector<8x64xi32> to vector<8x64xf32>
    %cst_25 = arith.constant -2.000000e-01 : f32
    %49 = vector.broadcast %cst_25 : f32 to vector<8x64xf32>
    %50 = arith.cmpf oge, %12, %49 : vector<8x64xf32>
    %cst_26 = arith.constant 2.000000e-01 : f32
    %51 = vector.broadcast %cst_26 : f32 to vector<8x64xf32>
    %52 = arith.cmpf olt, %12, %51 : vector<8x64xf32>
    %53 = arith.andi %50, %52 : vector<8x64xi1>
    %54 = arith.extui %53 : vector<8x64xi1> to vector<8x64xi32>
    %55 = arith.sitofp %54 : vector<8x64xi32> to vector<8x64xf32>
    %cst_27 = arith.constant 2.000000e-01 : f32
    %56 = vector.broadcast %cst_27 : f32 to vector<8x64xf32>
    %57 = arith.cmpf oge, %12, %56 : vector<8x64xf32>
    %cst_28 = arith.constant 6.000000e-01 : f32
    %58 = vector.broadcast %cst_28 : f32 to vector<8x64xf32>
    %59 = arith.cmpf olt, %12, %58 : vector<8x64xf32>
    %60 = arith.andi %57, %59 : vector<8x64xi1>
    %61 = arith.extui %60 : vector<8x64xi1> to vector<8x64xi32>
    %62 = arith.sitofp %61 : vector<8x64xi32> to vector<8x64xf32>
    %cst_29 = arith.constant 6.000000e-01 : f32
    %63 = vector.broadcast %cst_29 : f32 to vector<8x64xf32>
    %64 = arith.cmpf oge, %12, %63 : vector<8x64xf32>
    %cst_30 = arith.constant 1.000000e+00 : f32
    %65 = vector.broadcast %cst_30 : f32 to vector<8x64xf32>
    %66 = arith.cmpf olt, %12, %65 : vector<8x64xf32>
    %67 = arith.andi %64, %66 : vector<8x64xi1>
    %68 = arith.extui %67 : vector<8x64xi1> to vector<8x64xi32>
    %69 = arith.sitofp %68 : vector<8x64xi32> to vector<8x64xf32>
    %cst_31 = arith.constant 1.000000e+00 : f32
    %70 = vector.broadcast %cst_31 : f32 to vector<8x64xf32>
    %71 = arith.cmpf oge, %12, %70 : vector<8x64xf32>
    %cst_32 = arith.constant 1.400000e+00 : f32
    %72 = vector.broadcast %cst_32 : f32 to vector<8x64xf32>
    %73 = arith.cmpf olt, %12, %72 : vector<8x64xf32>
    %74 = arith.andi %71, %73 : vector<8x64xi1>
    %75 = arith.extui %74 : vector<8x64xi1> to vector<8x64xi32>
    %76 = arith.sitofp %75 : vector<8x64xi32> to vector<8x64xf32>
    %cst_33 = arith.constant 1.400000e+00 : f32
    %77 = vector.broadcast %cst_33 : f32 to vector<8x64xf32>
    %78 = arith.cmpf oge, %12, %77 : vector<8x64xf32>
    %cst_34 = arith.constant 1.800000e+00 : f32
    %79 = vector.broadcast %cst_34 : f32 to vector<8x64xf32>
    %80 = arith.cmpf olt, %12, %79 : vector<8x64xf32>
    %81 = arith.andi %78, %80 : vector<8x64xi1>
    %82 = arith.extui %81 : vector<8x64xi1> to vector<8x64xi32>
    %83 = arith.sitofp %82 : vector<8x64xi32> to vector<8x64xf32>
    %cst_35 = arith.constant 1.800000e+00 : f32
    %84 = vector.broadcast %cst_35 : f32 to vector<8x64xf32>
    %85 = arith.cmpf oge, %12, %84 : vector<8x64xf32>
    %cst_36 = arith.constant 2.200000e+00 : f32
    %86 = vector.broadcast %cst_36 : f32 to vector<8x64xf32>
    %87 = arith.cmpf olt, %12, %86 : vector<8x64xf32>
    %88 = arith.andi %85, %87 : vector<8x64xi1>
    %89 = arith.extui %88 : vector<8x64xi1> to vector<8x64xi32>
    %90 = arith.sitofp %89 : vector<8x64xi32> to vector<8x64xf32>
    %cst_37 = arith.constant -2.200000e+00 : f32
    %91 = vector.broadcast %cst_37 : f32 to vector<8x64xf32>
    %92 = arith.subf %12, %91 : vector<8x64xf32>
    %cst_38 = arith.constant 2.500000e+00 : f32
    %93 = vector.broadcast %cst_38 : f32 to vector<8x64xf32>
    %94 = arith.mulf %92, %93 : vector<8x64xf32>
    %95 = arith.mulf %94, %20 : vector<8x64xf32>
    %cst_39 = arith.constant -1.400000e+00 : f32
    %96 = vector.broadcast %cst_39 : f32 to vector<8x64xf32>
    %97 = arith.subf %96, %12 : vector<8x64xf32>
    %cst_40 = arith.constant 2.500000e+00 : f32
    %98 = vector.broadcast %cst_40 : f32 to vector<8x64xf32>
    %99 = arith.mulf %97, %98 : vector<8x64xf32>
    %100 = arith.mulf %99, %27 : vector<8x64xf32>
    %101 = arith.addf %95, %100 : vector<8x64xf32>
    %cst_41 = arith.constant -1.800000e+00 : f32
    %102 = vector.broadcast %cst_41 : f32 to vector<8x64xf32>
    %103 = arith.subf %12, %102 : vector<8x64xf32>
    %cst_42 = arith.constant 2.500000e+00 : f32
    %104 = vector.broadcast %cst_42 : f32 to vector<8x64xf32>
    %105 = arith.mulf %103, %104 : vector<8x64xf32>
    %106 = arith.mulf %105, %27 : vector<8x64xf32>
    %cst_43 = arith.constant -1.000000e+00 : f32
    %107 = vector.broadcast %cst_43 : f32 to vector<8x64xf32>
    %108 = arith.subf %107, %12 : vector<8x64xf32>
    %cst_44 = arith.constant 2.500000e+00 : f32
    %109 = vector.broadcast %cst_44 : f32 to vector<8x64xf32>
    %110 = arith.mulf %108, %109 : vector<8x64xf32>
    %111 = arith.mulf %110, %34 : vector<8x64xf32>
    %112 = arith.addf %106, %111 : vector<8x64xf32>
    %cst_45 = arith.constant -1.400000e+00 : f32
    %113 = vector.broadcast %cst_45 : f32 to vector<8x64xf32>
    %114 = arith.subf %12, %113 : vector<8x64xf32>
    %cst_46 = arith.constant 2.500000e+00 : f32
    %115 = vector.broadcast %cst_46 : f32 to vector<8x64xf32>
    %116 = arith.mulf %114, %115 : vector<8x64xf32>
    %117 = arith.mulf %116, %34 : vector<8x64xf32>
    %cst_47 = arith.constant -6.000000e-01 : f32
    %118 = vector.broadcast %cst_47 : f32 to vector<8x64xf32>
    %119 = arith.subf %118, %12 : vector<8x64xf32>
    %cst_48 = arith.constant 2.500000e+00 : f32
    %120 = vector.broadcast %cst_48 : f32 to vector<8x64xf32>
    %121 = arith.mulf %119, %120 : vector<8x64xf32>
    %122 = arith.mulf %121, %41 : vector<8x64xf32>
    %123 = arith.addf %117, %122 : vector<8x64xf32>
    %cst_49 = arith.constant -1.000000e+00 : f32
    %124 = vector.broadcast %cst_49 : f32 to vector<8x64xf32>
    %125 = arith.subf %12, %124 : vector<8x64xf32>
    %cst_50 = arith.constant 2.500000e+00 : f32
    %126 = vector.broadcast %cst_50 : f32 to vector<8x64xf32>
    %127 = arith.mulf %125, %126 : vector<8x64xf32>
    %128 = arith.mulf %127, %41 : vector<8x64xf32>
    %cst_51 = arith.constant -2.000000e-01 : f32
    %129 = vector.broadcast %cst_51 : f32 to vector<8x64xf32>
    %130 = arith.subf %129, %12 : vector<8x64xf32>
    %cst_52 = arith.constant 2.500000e+00 : f32
    %131 = vector.broadcast %cst_52 : f32 to vector<8x64xf32>
    %132 = arith.mulf %130, %131 : vector<8x64xf32>
    %133 = arith.mulf %132, %48 : vector<8x64xf32>
    %134 = arith.addf %128, %133 : vector<8x64xf32>
    %cst_53 = arith.constant -6.000000e-01 : f32
    %135 = vector.broadcast %cst_53 : f32 to vector<8x64xf32>
    %136 = arith.subf %12, %135 : vector<8x64xf32>
    %cst_54 = arith.constant 2.500000e+00 : f32
    %137 = vector.broadcast %cst_54 : f32 to vector<8x64xf32>
    %138 = arith.mulf %136, %137 : vector<8x64xf32>
    %139 = arith.mulf %138, %48 : vector<8x64xf32>
    %cst_55 = arith.constant 2.000000e-01 : f32
    %140 = vector.broadcast %cst_55 : f32 to vector<8x64xf32>
    %141 = arith.subf %140, %12 : vector<8x64xf32>
    %cst_56 = arith.constant 2.500000e+00 : f32
    %142 = vector.broadcast %cst_56 : f32 to vector<8x64xf32>
    %143 = arith.mulf %141, %142 : vector<8x64xf32>
    %144 = arith.mulf %143, %55 : vector<8x64xf32>
    %145 = arith.addf %139, %144 : vector<8x64xf32>
    %cst_57 = arith.constant -2.000000e-01 : f32
    %146 = vector.broadcast %cst_57 : f32 to vector<8x64xf32>
    %147 = arith.subf %12, %146 : vector<8x64xf32>
    %cst_58 = arith.constant 2.500000e+00 : f32
    %148 = vector.broadcast %cst_58 : f32 to vector<8x64xf32>
    %149 = arith.mulf %147, %148 : vector<8x64xf32>
    %150 = arith.mulf %149, %55 : vector<8x64xf32>
    %cst_59 = arith.constant 6.000000e-01 : f32
    %151 = vector.broadcast %cst_59 : f32 to vector<8x64xf32>
    %152 = arith.subf %151, %12 : vector<8x64xf32>
    %cst_60 = arith.constant 2.500000e+00 : f32
    %153 = vector.broadcast %cst_60 : f32 to vector<8x64xf32>
    %154 = arith.mulf %152, %153 : vector<8x64xf32>
    %155 = arith.mulf %154, %62 : vector<8x64xf32>
    %156 = arith.addf %150, %155 : vector<8x64xf32>
    %cst_61 = arith.constant 2.000000e-01 : f32
    %157 = vector.broadcast %cst_61 : f32 to vector<8x64xf32>
    %158 = arith.subf %12, %157 : vector<8x64xf32>
    %cst_62 = arith.constant 2.500000e+00 : f32
    %159 = vector.broadcast %cst_62 : f32 to vector<8x64xf32>
    %160 = arith.mulf %158, %159 : vector<8x64xf32>
    %161 = arith.mulf %160, %62 : vector<8x64xf32>
    %cst_63 = arith.constant 1.000000e+00 : f32
    %162 = vector.broadcast %cst_63 : f32 to vector<8x64xf32>
    %163 = arith.subf %162, %12 : vector<8x64xf32>
    %cst_64 = arith.constant 2.500000e+00 : f32
    %164 = vector.broadcast %cst_64 : f32 to vector<8x64xf32>
    %165 = arith.mulf %163, %164 : vector<8x64xf32>
    %166 = arith.mulf %165, %69 : vector<8x64xf32>
    %167 = arith.addf %161, %166 : vector<8x64xf32>
    %cst_65 = arith.constant 6.000000e-01 : f32
    %168 = vector.broadcast %cst_65 : f32 to vector<8x64xf32>
    %169 = arith.subf %12, %168 : vector<8x64xf32>
    %cst_66 = arith.constant 2.500000e+00 : f32
    %170 = vector.broadcast %cst_66 : f32 to vector<8x64xf32>
    %171 = arith.mulf %169, %170 : vector<8x64xf32>
    %172 = arith.mulf %171, %69 : vector<8x64xf32>
    %cst_67 = arith.constant 1.400000e+00 : f32
    %173 = vector.broadcast %cst_67 : f32 to vector<8x64xf32>
    %174 = arith.subf %173, %12 : vector<8x64xf32>
    %cst_68 = arith.constant 2.500000e+00 : f32
    %175 = vector.broadcast %cst_68 : f32 to vector<8x64xf32>
    %176 = arith.mulf %174, %175 : vector<8x64xf32>
    %177 = arith.mulf %176, %76 : vector<8x64xf32>
    %178 = arith.addf %172, %177 : vector<8x64xf32>
    %cst_69 = arith.constant 1.000000e+00 : f32
    %179 = vector.broadcast %cst_69 : f32 to vector<8x64xf32>
    %180 = arith.subf %12, %179 : vector<8x64xf32>
    %cst_70 = arith.constant 2.500000e+00 : f32
    %181 = vector.broadcast %cst_70 : f32 to vector<8x64xf32>
    %182 = arith.mulf %180, %181 : vector<8x64xf32>
    %183 = arith.mulf %182, %76 : vector<8x64xf32>
    %cst_71 = arith.constant 1.800000e+00 : f32
    %184 = vector.broadcast %cst_71 : f32 to vector<8x64xf32>
    %185 = arith.subf %184, %12 : vector<8x64xf32>
    %cst_72 = arith.constant 2.500000e+00 : f32
    %186 = vector.broadcast %cst_72 : f32 to vector<8x64xf32>
    %187 = arith.mulf %185, %186 : vector<8x64xf32>
    %188 = arith.mulf %187, %83 : vector<8x64xf32>
    %189 = arith.addf %183, %188 : vector<8x64xf32>
    %cst_73 = arith.constant 1.400000e+00 : f32
    %190 = vector.broadcast %cst_73 : f32 to vector<8x64xf32>
    %191 = arith.subf %12, %190 : vector<8x64xf32>
    %cst_74 = arith.constant 2.500000e+00 : f32
    %192 = vector.broadcast %cst_74 : f32 to vector<8x64xf32>
    %193 = arith.mulf %191, %192 : vector<8x64xf32>
    %194 = arith.mulf %193, %83 : vector<8x64xf32>
    %cst_75 = arith.constant 2.200000e+00 : f32
    %195 = vector.broadcast %cst_75 : f32 to vector<8x64xf32>
    %196 = arith.subf %195, %12 : vector<8x64xf32>
    %cst_76 = arith.constant 2.500000e+00 : f32
    %197 = vector.broadcast %cst_76 : f32 to vector<8x64xf32>
    %198 = arith.mulf %196, %197 : vector<8x64xf32>
    %199 = arith.mulf %198, %90 : vector<8x64xf32>
    %200 = arith.addf %194, %199 : vector<8x64xf32>
    %cst_77 = arith.constant -2.200000e+00 : f32
    %201 = vector.broadcast %cst_77 : f32 to vector<8x64xf32>
    %202 = arith.subf %12, %201 : vector<8x64xf32>
    %cst_78 = arith.constant 1.250000e+00 : f32
    %203 = vector.broadcast %cst_78 : f32 to vector<8x64xf32>
    %204 = arith.mulf %202, %203 : vector<8x64xf32>
    %205 = arith.mulf %204, %101 : vector<8x64xf32>
    %cst_79 = arith.constant -1.000000e+00 : f32
    %206 = vector.broadcast %cst_79 : f32 to vector<8x64xf32>
    %207 = arith.subf %206, %12 : vector<8x64xf32>
    %cst_80 = arith.constant 1.250000e+00 : f32
    %208 = vector.broadcast %cst_80 : f32 to vector<8x64xf32>
    %209 = arith.mulf %207, %208 : vector<8x64xf32>
    %210 = arith.mulf %209, %112 : vector<8x64xf32>
    %211 = arith.addf %205, %210 : vector<8x64xf32>
    %cst_81 = arith.constant -1.800000e+00 : f32
    %212 = vector.broadcast %cst_81 : f32 to vector<8x64xf32>
    %213 = arith.subf %12, %212 : vector<8x64xf32>
    %cst_82 = arith.constant 1.250000e+00 : f32
    %214 = vector.broadcast %cst_82 : f32 to vector<8x64xf32>
    %215 = arith.mulf %213, %214 : vector<8x64xf32>
    %216 = arith.mulf %215, %112 : vector<8x64xf32>
    %cst_83 = arith.constant -6.000000e-01 : f32
    %217 = vector.broadcast %cst_83 : f32 to vector<8x64xf32>
    %218 = arith.subf %217, %12 : vector<8x64xf32>
    %cst_84 = arith.constant 1.250000e+00 : f32
    %219 = vector.broadcast %cst_84 : f32 to vector<8x64xf32>
    %220 = arith.mulf %218, %219 : vector<8x64xf32>
    %221 = arith.mulf %220, %123 : vector<8x64xf32>
    %222 = arith.addf %216, %221 : vector<8x64xf32>
    %cst_85 = arith.constant -1.400000e+00 : f32
    %223 = vector.broadcast %cst_85 : f32 to vector<8x64xf32>
    %224 = arith.subf %12, %223 : vector<8x64xf32>
    %cst_86 = arith.constant 1.250000e+00 : f32
    %225 = vector.broadcast %cst_86 : f32 to vector<8x64xf32>
    %226 = arith.mulf %224, %225 : vector<8x64xf32>
    %227 = arith.mulf %226, %123 : vector<8x64xf32>
    %cst_87 = arith.constant -2.000000e-01 : f32
    %228 = vector.broadcast %cst_87 : f32 to vector<8x64xf32>
    %229 = arith.subf %228, %12 : vector<8x64xf32>
    %cst_88 = arith.constant 1.250000e+00 : f32
    %230 = vector.broadcast %cst_88 : f32 to vector<8x64xf32>
    %231 = arith.mulf %229, %230 : vector<8x64xf32>
    %232 = arith.mulf %231, %134 : vector<8x64xf32>
    %233 = arith.addf %227, %232 : vector<8x64xf32>
    %cst_89 = arith.constant -1.000000e+00 : f32
    %234 = vector.broadcast %cst_89 : f32 to vector<8x64xf32>
    %235 = arith.subf %12, %234 : vector<8x64xf32>
    %cst_90 = arith.constant 1.250000e+00 : f32
    %236 = vector.broadcast %cst_90 : f32 to vector<8x64xf32>
    %237 = arith.mulf %235, %236 : vector<8x64xf32>
    %238 = arith.mulf %237, %134 : vector<8x64xf32>
    %cst_91 = arith.constant 2.000000e-01 : f32
    %239 = vector.broadcast %cst_91 : f32 to vector<8x64xf32>
    %240 = arith.subf %239, %12 : vector<8x64xf32>
    %cst_92 = arith.constant 1.250000e+00 : f32
    %241 = vector.broadcast %cst_92 : f32 to vector<8x64xf32>
    %242 = arith.mulf %240, %241 : vector<8x64xf32>
    %243 = arith.mulf %242, %145 : vector<8x64xf32>
    %244 = arith.addf %238, %243 : vector<8x64xf32>
    %cst_93 = arith.constant -6.000000e-01 : f32
    %245 = vector.broadcast %cst_93 : f32 to vector<8x64xf32>
    %246 = arith.subf %12, %245 : vector<8x64xf32>
    %cst_94 = arith.constant 1.250000e+00 : f32
    %247 = vector.broadcast %cst_94 : f32 to vector<8x64xf32>
    %248 = arith.mulf %246, %247 : vector<8x64xf32>
    %249 = arith.mulf %248, %145 : vector<8x64xf32>
    %cst_95 = arith.constant 6.000000e-01 : f32
    %250 = vector.broadcast %cst_95 : f32 to vector<8x64xf32>
    %251 = arith.subf %250, %12 : vector<8x64xf32>
    %cst_96 = arith.constant 1.250000e+00 : f32
    %252 = vector.broadcast %cst_96 : f32 to vector<8x64xf32>
    %253 = arith.mulf %251, %252 : vector<8x64xf32>
    %254 = arith.mulf %253, %156 : vector<8x64xf32>
    %255 = arith.addf %249, %254 : vector<8x64xf32>
    %cst_97 = arith.constant -2.000000e-01 : f32
    %256 = vector.broadcast %cst_97 : f32 to vector<8x64xf32>
    %257 = arith.subf %12, %256 : vector<8x64xf32>
    %cst_98 = arith.constant 1.250000e+00 : f32
    %258 = vector.broadcast %cst_98 : f32 to vector<8x64xf32>
    %259 = arith.mulf %257, %258 : vector<8x64xf32>
    %260 = arith.mulf %259, %156 : vector<8x64xf32>
    %cst_99 = arith.constant 1.000000e+00 : f32
    %261 = vector.broadcast %cst_99 : f32 to vector<8x64xf32>
    %262 = arith.subf %261, %12 : vector<8x64xf32>
    %cst_100 = arith.constant 1.250000e+00 : f32
    %263 = vector.broadcast %cst_100 : f32 to vector<8x64xf32>
    %264 = arith.mulf %262, %263 : vector<8x64xf32>
    %265 = arith.mulf %264, %167 : vector<8x64xf32>
    %266 = arith.addf %260, %265 : vector<8x64xf32>
    %cst_101 = arith.constant 2.000000e-01 : f32
    %267 = vector.broadcast %cst_101 : f32 to vector<8x64xf32>
    %268 = arith.subf %12, %267 : vector<8x64xf32>
    %cst_102 = arith.constant 1.250000e+00 : f32
    %269 = vector.broadcast %cst_102 : f32 to vector<8x64xf32>
    %270 = arith.mulf %268, %269 : vector<8x64xf32>
    %271 = arith.mulf %270, %167 : vector<8x64xf32>
    %cst_103 = arith.constant 1.400000e+00 : f32
    %272 = vector.broadcast %cst_103 : f32 to vector<8x64xf32>
    %273 = arith.subf %272, %12 : vector<8x64xf32>
    %cst_104 = arith.constant 1.250000e+00 : f32
    %274 = vector.broadcast %cst_104 : f32 to vector<8x64xf32>
    %275 = arith.mulf %273, %274 : vector<8x64xf32>
    %276 = arith.mulf %275, %178 : vector<8x64xf32>
    %277 = arith.addf %271, %276 : vector<8x64xf32>
    %cst_105 = arith.constant 6.000000e-01 : f32
    %278 = vector.broadcast %cst_105 : f32 to vector<8x64xf32>
    %279 = arith.subf %12, %278 : vector<8x64xf32>
    %cst_106 = arith.constant 1.250000e+00 : f32
    %280 = vector.broadcast %cst_106 : f32 to vector<8x64xf32>
    %281 = arith.mulf %279, %280 : vector<8x64xf32>
    %282 = arith.mulf %281, %178 : vector<8x64xf32>
    %cst_107 = arith.constant 1.800000e+00 : f32
    %283 = vector.broadcast %cst_107 : f32 to vector<8x64xf32>
    %284 = arith.subf %283, %12 : vector<8x64xf32>
    %cst_108 = arith.constant 1.250000e+00 : f32
    %285 = vector.broadcast %cst_108 : f32 to vector<8x64xf32>
    %286 = arith.mulf %284, %285 : vector<8x64xf32>
    %287 = arith.mulf %286, %189 : vector<8x64xf32>
    %288 = arith.addf %282, %287 : vector<8x64xf32>
    %cst_109 = arith.constant 1.000000e+00 : f32
    %289 = vector.broadcast %cst_109 : f32 to vector<8x64xf32>
    %290 = arith.subf %12, %289 : vector<8x64xf32>
    %cst_110 = arith.constant 1.250000e+00 : f32
    %291 = vector.broadcast %cst_110 : f32 to vector<8x64xf32>
    %292 = arith.mulf %290, %291 : vector<8x64xf32>
    %293 = arith.mulf %292, %189 : vector<8x64xf32>
    %cst_111 = arith.constant 2.200000e+00 : f32
    %294 = vector.broadcast %cst_111 : f32 to vector<8x64xf32>
    %295 = arith.subf %294, %12 : vector<8x64xf32>
    %cst_112 = arith.constant 1.250000e+00 : f32
    %296 = vector.broadcast %cst_112 : f32 to vector<8x64xf32>
    %297 = arith.mulf %295, %296 : vector<8x64xf32>
    %298 = arith.mulf %297, %200 : vector<8x64xf32>
    %299 = arith.addf %293, %298 : vector<8x64xf32>
    %cst_113 = arith.constant -2.200000e+00 : f32
    %300 = vector.broadcast %cst_113 : f32 to vector<8x64xf32>
    %301 = arith.subf %12, %300 : vector<8x64xf32>
    %cst_114 = arith.constant 0.833333313 : f32
    %302 = vector.broadcast %cst_114 : f32 to vector<8x64xf32>
    %303 = arith.mulf %301, %302 : vector<8x64xf32>
    %304 = arith.mulf %303, %211 : vector<8x64xf32>
    %cst_115 = arith.constant -6.000000e-01 : f32
    %305 = vector.broadcast %cst_115 : f32 to vector<8x64xf32>
    %306 = arith.subf %305, %12 : vector<8x64xf32>
    %cst_116 = arith.constant 0.833333313 : f32
    %307 = vector.broadcast %cst_116 : f32 to vector<8x64xf32>
    %308 = arith.mulf %306, %307 : vector<8x64xf32>
    %309 = arith.mulf %308, %222 : vector<8x64xf32>
    %310 = arith.addf %304, %309 : vector<8x64xf32>
    %cst_117 = arith.constant -1.800000e+00 : f32
    %311 = vector.broadcast %cst_117 : f32 to vector<8x64xf32>
    %312 = arith.subf %12, %311 : vector<8x64xf32>
    %cst_118 = arith.constant 0.833333313 : f32
    %313 = vector.broadcast %cst_118 : f32 to vector<8x64xf32>
    %314 = arith.mulf %312, %313 : vector<8x64xf32>
    %315 = arith.mulf %314, %222 : vector<8x64xf32>
    %cst_119 = arith.constant -2.000000e-01 : f32
    %316 = vector.broadcast %cst_119 : f32 to vector<8x64xf32>
    %317 = arith.subf %316, %12 : vector<8x64xf32>
    %cst_120 = arith.constant 0.833333313 : f32
    %318 = vector.broadcast %cst_120 : f32 to vector<8x64xf32>
    %319 = arith.mulf %317, %318 : vector<8x64xf32>
    %320 = arith.mulf %319, %233 : vector<8x64xf32>
    %321 = arith.addf %315, %320 : vector<8x64xf32>
    %cst_121 = arith.constant -1.400000e+00 : f32
    %322 = vector.broadcast %cst_121 : f32 to vector<8x64xf32>
    %323 = arith.subf %12, %322 : vector<8x64xf32>
    %cst_122 = arith.constant 0.833333313 : f32
    %324 = vector.broadcast %cst_122 : f32 to vector<8x64xf32>
    %325 = arith.mulf %323, %324 : vector<8x64xf32>
    %326 = arith.mulf %325, %233 : vector<8x64xf32>
    %cst_123 = arith.constant 2.000000e-01 : f32
    %327 = vector.broadcast %cst_123 : f32 to vector<8x64xf32>
    %328 = arith.subf %327, %12 : vector<8x64xf32>
    %cst_124 = arith.constant 0.833333313 : f32
    %329 = vector.broadcast %cst_124 : f32 to vector<8x64xf32>
    %330 = arith.mulf %328, %329 : vector<8x64xf32>
    %331 = arith.mulf %330, %244 : vector<8x64xf32>
    %332 = arith.addf %326, %331 : vector<8x64xf32>
    %cst_125 = arith.constant -1.000000e+00 : f32
    %333 = vector.broadcast %cst_125 : f32 to vector<8x64xf32>
    %334 = arith.subf %12, %333 : vector<8x64xf32>
    %cst_126 = arith.constant 0.833333313 : f32
    %335 = vector.broadcast %cst_126 : f32 to vector<8x64xf32>
    %336 = arith.mulf %334, %335 : vector<8x64xf32>
    %337 = arith.mulf %336, %244 : vector<8x64xf32>
    %cst_127 = arith.constant 6.000000e-01 : f32
    %338 = vector.broadcast %cst_127 : f32 to vector<8x64xf32>
    %339 = arith.subf %338, %12 : vector<8x64xf32>
    %cst_128 = arith.constant 0.833333313 : f32
    %340 = vector.broadcast %cst_128 : f32 to vector<8x64xf32>
    %341 = arith.mulf %339, %340 : vector<8x64xf32>
    %342 = arith.mulf %341, %255 : vector<8x64xf32>
    %343 = arith.addf %337, %342 : vector<8x64xf32>
    %cst_129 = arith.constant -6.000000e-01 : f32
    %344 = vector.broadcast %cst_129 : f32 to vector<8x64xf32>
    %345 = arith.subf %12, %344 : vector<8x64xf32>
    %cst_130 = arith.constant 0.833333313 : f32
    %346 = vector.broadcast %cst_130 : f32 to vector<8x64xf32>
    %347 = arith.mulf %345, %346 : vector<8x64xf32>
    %348 = arith.mulf %347, %255 : vector<8x64xf32>
    %cst_131 = arith.constant 1.000000e+00 : f32
    %349 = vector.broadcast %cst_131 : f32 to vector<8x64xf32>
    %350 = arith.subf %349, %12 : vector<8x64xf32>
    %cst_132 = arith.constant 0.833333313 : f32
    %351 = vector.broadcast %cst_132 : f32 to vector<8x64xf32>
    %352 = arith.mulf %350, %351 : vector<8x64xf32>
    %353 = arith.mulf %352, %266 : vector<8x64xf32>
    %354 = arith.addf %348, %353 : vector<8x64xf32>
    %cst_133 = arith.constant -2.000000e-01 : f32
    %355 = vector.broadcast %cst_133 : f32 to vector<8x64xf32>
    %356 = arith.subf %12, %355 : vector<8x64xf32>
    %cst_134 = arith.constant 0.833333313 : f32
    %357 = vector.broadcast %cst_134 : f32 to vector<8x64xf32>
    %358 = arith.mulf %356, %357 : vector<8x64xf32>
    %359 = arith.mulf %358, %266 : vector<8x64xf32>
    %cst_135 = arith.constant 1.400000e+00 : f32
    %360 = vector.broadcast %cst_135 : f32 to vector<8x64xf32>
    %361 = arith.subf %360, %12 : vector<8x64xf32>
    %cst_136 = arith.constant 0.833333313 : f32
    %362 = vector.broadcast %cst_136 : f32 to vector<8x64xf32>
    %363 = arith.mulf %361, %362 : vector<8x64xf32>
    %364 = arith.mulf %363, %277 : vector<8x64xf32>
    %365 = arith.addf %359, %364 : vector<8x64xf32>
    %cst_137 = arith.constant 2.000000e-01 : f32
    %366 = vector.broadcast %cst_137 : f32 to vector<8x64xf32>
    %367 = arith.subf %12, %366 : vector<8x64xf32>
    %cst_138 = arith.constant 0.833333313 : f32
    %368 = vector.broadcast %cst_138 : f32 to vector<8x64xf32>
    %369 = arith.mulf %367, %368 : vector<8x64xf32>
    %370 = arith.mulf %369, %277 : vector<8x64xf32>
    %cst_139 = arith.constant 1.800000e+00 : f32
    %371 = vector.broadcast %cst_139 : f32 to vector<8x64xf32>
    %372 = arith.subf %371, %12 : vector<8x64xf32>
    %cst_140 = arith.constant 0.833333313 : f32
    %373 = vector.broadcast %cst_140 : f32 to vector<8x64xf32>
    %374 = arith.mulf %372, %373 : vector<8x64xf32>
    %375 = arith.mulf %374, %288 : vector<8x64xf32>
    %376 = arith.addf %370, %375 : vector<8x64xf32>
    %cst_141 = arith.constant 6.000000e-01 : f32
    %377 = vector.broadcast %cst_141 : f32 to vector<8x64xf32>
    %378 = arith.subf %12, %377 : vector<8x64xf32>
    %cst_142 = arith.constant 0.833333313 : f32
    %379 = vector.broadcast %cst_142 : f32 to vector<8x64xf32>
    %380 = arith.mulf %378, %379 : vector<8x64xf32>
    %381 = arith.mulf %380, %288 : vector<8x64xf32>
    %cst_143 = arith.constant 2.200000e+00 : f32
    %382 = vector.broadcast %cst_143 : f32 to vector<8x64xf32>
    %383 = arith.subf %382, %12 : vector<8x64xf32>
    %cst_144 = arith.constant 0.833333313 : f32
    %384 = vector.broadcast %cst_144 : f32 to vector<8x64xf32>
    %385 = arith.mulf %383, %384 : vector<8x64xf32>
    %386 = arith.mulf %385, %299 : vector<8x64xf32>
    %387 = arith.addf %381, %386 : vector<8x64xf32>
    %388 = arith.negf %12 : vector<8x64xf32>
    %389 = math.exp %388 : vector<8x64xf32>
    %cst_145 = arith.constant 1.000000e+00 : f32
    %390 = vector.broadcast %cst_145 : f32 to vector<8x64xf32>
    %391 = arith.addf %390, %389 : vector<8x64xf32>
    %392 = arith.divf %390, %391 : vector<8x64xf32>
    %393 = arith.mulf %12, %392 : vector<8x64xf32>
    %394 = tpu.concatenate %393, %310, %321, %332, %343, %354, %365, %376, %387 in 1 : vector<8x64xf32>, vector<8x64xf32>, vector<8x64xf32>, vector<8x64xf32>, vector<8x64xf32>, vector<8x64xf32>, vector<8x64xf32>, vector<8x64xf32>, vector<8x64xf32> -> vector<8x576xf32>
    %cst_146 = arith.constant dense<0.000000e+00> : vector<8x10xf32>
    %395 = tpu.matmul %394, %13, %cst_146 {dimension_numbers = #tpu.dot_dimension_numbers<[1], [0], [0], [1], [0, 0, 1, 1], [], []>} : vector<8x576xf32>, vector<576x10xf32>, vector<8x10xf32> -> vector<8x10xf32>
    %c0_147 = arith.constant 0 : index
    %c0_148 = arith.constant 0 : index
    %396 = vector.load %arg6[%c0_147, %c0_148] : memref<90x5xf32, #tpu.memory_space<vmem>>, vector<90x5xf32>
    %cst_149 = arith.constant -2.200000e+00 : f32
    %397 = vector.broadcast %cst_149 : f32 to vector<8x10xf32>
    %398 = arith.cmpf oge, %395, %397 : vector<8x10xf32>
    %cst_150 = arith.constant -1.800000e+00 : f32
    %399 = vector.broadcast %cst_150 : f32 to vector<8x10xf32>
    %400 = arith.cmpf olt, %395, %399 : vector<8x10xf32>
    %401 = arith.andi %398, %400 : vector<8x10xi1>
    %402 = arith.extui %401 : vector<8x10xi1> to vector<8x10xi32>
    %403 = arith.sitofp %402 : vector<8x10xi32> to vector<8x10xf32>
    %cst_151 = arith.constant -1.800000e+00 : f32
    %404 = vector.broadcast %cst_151 : f32 to vector<8x10xf32>
    %405 = arith.cmpf oge, %395, %404 : vector<8x10xf32>
    %cst_152 = arith.constant -1.400000e+00 : f32
    %406 = vector.broadcast %cst_152 : f32 to vector<8x10xf32>
    %407 = arith.cmpf olt, %395, %406 : vector<8x10xf32>
    %408 = arith.andi %405, %407 : vector<8x10xi1>
    %409 = arith.extui %408 : vector<8x10xi1> to vector<8x10xi32>
    %410 = arith.sitofp %409 : vector<8x10xi32> to vector<8x10xf32>
    %cst_153 = arith.constant -1.400000e+00 : f32
    %411 = vector.broadcast %cst_153 : f32 to vector<8x10xf32>
    %412 = arith.cmpf oge, %395, %411 : vector<8x10xf32>
    %cst_154 = arith.constant -1.000000e+00 : f32
    %413 = vector.broadcast %cst_154 : f32 to vector<8x10xf32>
    %414 = arith.cmpf olt, %395, %413 : vector<8x10xf32>
    %415 = arith.andi %412, %414 : vector<8x10xi1>
    %416 = arith.extui %415 : vector<8x10xi1> to vector<8x10xi32>
    %417 = arith.sitofp %416 : vector<8x10xi32> to vector<8x10xf32>
    %cst_155 = arith.constant -1.000000e+00 : f32
    %418 = vector.broadcast %cst_155 : f32 to vector<8x10xf32>
    %419 = arith.cmpf oge, %395, %418 : vector<8x10xf32>
    %cst_156 = arith.constant -6.000000e-01 : f32
    %420 = vector.broadcast %cst_156 : f32 to vector<8x10xf32>
    %421 = arith.cmpf olt, %395, %420 : vector<8x10xf32>
    %422 = arith.andi %419, %421 : vector<8x10xi1>
    %423 = arith.extui %422 : vector<8x10xi1> to vector<8x10xi32>
    %424 = arith.sitofp %423 : vector<8x10xi32> to vector<8x10xf32>
    %cst_157 = arith.constant -6.000000e-01 : f32
    %425 = vector.broadcast %cst_157 : f32 to vector<8x10xf32>
    %426 = arith.cmpf oge, %395, %425 : vector<8x10xf32>
    %cst_158 = arith.constant -2.000000e-01 : f32
    %427 = vector.broadcast %cst_158 : f32 to vector<8x10xf32>
    %428 = arith.cmpf olt, %395, %427 : vector<8x10xf32>
    %429 = arith.andi %426, %428 : vector<8x10xi1>
    %430 = arith.extui %429 : vector<8x10xi1> to vector<8x10xi32>
    %431 = arith.sitofp %430 : vector<8x10xi32> to vector<8x10xf32>
    %cst_159 = arith.constant -2.000000e-01 : f32
    %432 = vector.broadcast %cst_159 : f32 to vector<8x10xf32>
    %433 = arith.cmpf oge, %395, %432 : vector<8x10xf32>
    %cst_160 = arith.constant 2.000000e-01 : f32
    %434 = vector.broadcast %cst_160 : f32 to vector<8x10xf32>
    %435 = arith.cmpf olt, %395, %434 : vector<8x10xf32>
    %436 = arith.andi %433, %435 : vector<8x10xi1>
    %437 = arith.extui %436 : vector<8x10xi1> to vector<8x10xi32>
    %438 = arith.sitofp %437 : vector<8x10xi32> to vector<8x10xf32>
    %cst_161 = arith.constant 2.000000e-01 : f32
    %439 = vector.broadcast %cst_161 : f32 to vector<8x10xf32>
    %440 = arith.cmpf oge, %395, %439 : vector<8x10xf32>
    %cst_162 = arith.constant 6.000000e-01 : f32
    %441 = vector.broadcast %cst_162 : f32 to vector<8x10xf32>
    %442 = arith.cmpf olt, %395, %441 : vector<8x10xf32>
    %443 = arith.andi %440, %442 : vector<8x10xi1>
    %444 = arith.extui %443 : vector<8x10xi1> to vector<8x10xi32>
    %445 = arith.sitofp %444 : vector<8x10xi32> to vector<8x10xf32>
    %cst_163 = arith.constant 6.000000e-01 : f32
    %446 = vector.broadcast %cst_163 : f32 to vector<8x10xf32>
    %447 = arith.cmpf oge, %395, %446 : vector<8x10xf32>
    %cst_164 = arith.constant 1.000000e+00 : f32
    %448 = vector.broadcast %cst_164 : f32 to vector<8x10xf32>
    %449 = arith.cmpf olt, %395, %448 : vector<8x10xf32>
    %450 = arith.andi %447, %449 : vector<8x10xi1>
    %451 = arith.extui %450 : vector<8x10xi1> to vector<8x10xi32>
    %452 = arith.sitofp %451 : vector<8x10xi32> to vector<8x10xf32>
    %cst_165 = arith.constant 1.000000e+00 : f32
    %453 = vector.broadcast %cst_165 : f32 to vector<8x10xf32>
    %454 = arith.cmpf oge, %395, %453 : vector<8x10xf32>
    %cst_166 = arith.constant 1.400000e+00 : f32
    %455 = vector.broadcast %cst_166 : f32 to vector<8x10xf32>
    %456 = arith.cmpf olt, %395, %455 : vector<8x10xf32>
    %457 = arith.andi %454, %456 : vector<8x10xi1>
    %458 = arith.extui %457 : vector<8x10xi1> to vector<8x10xi32>
    %459 = arith.sitofp %458 : vector<8x10xi32> to vector<8x10xf32>
    %cst_167 = arith.constant 1.400000e+00 : f32
    %460 = vector.broadcast %cst_167 : f32 to vector<8x10xf32>
    %461 = arith.cmpf oge, %395, %460 : vector<8x10xf32>
    %cst_168 = arith.constant 1.800000e+00 : f32
    %462 = vector.broadcast %cst_168 : f32 to vector<8x10xf32>
    %463 = arith.cmpf olt, %395, %462 : vector<8x10xf32>
    %464 = arith.andi %461, %463 : vector<8x10xi1>
    %465 = arith.extui %464 : vector<8x10xi1> to vector<8x10xi32>
    %466 = arith.sitofp %465 : vector<8x10xi32> to vector<8x10xf32>
    %cst_169 = arith.constant 1.800000e+00 : f32
    %467 = vector.broadcast %cst_169 : f32 to vector<8x10xf32>
    %468 = arith.cmpf oge, %395, %467 : vector<8x10xf32>
    %cst_170 = arith.constant 2.200000e+00 : f32
    %469 = vector.broadcast %cst_170 : f32 to vector<8x10xf32>
    %470 = arith.cmpf olt, %395, %469 : vector<8x10xf32>
    %471 = arith.andi %468, %470 : vector<8x10xi1>
    %472 = arith.extui %471 : vector<8x10xi1> to vector<8x10xi32>
    %473 = arith.sitofp %472 : vector<8x10xi32> to vector<8x10xf32>
    %cst_171 = arith.constant -2.200000e+00 : f32
    %474 = vector.broadcast %cst_171 : f32 to vector<8x10xf32>
    %475 = arith.subf %395, %474 : vector<8x10xf32>
    %cst_172 = arith.constant 2.500000e+00 : f32
    %476 = vector.broadcast %cst_172 : f32 to vector<8x10xf32>
    %477 = arith.mulf %475, %476 : vector<8x10xf32>
    %478 = arith.mulf %477, %403 : vector<8x10xf32>
    %cst_173 = arith.constant -1.400000e+00 : f32
    %479 = vector.broadcast %cst_173 : f32 to vector<8x10xf32>
    %480 = arith.subf %479, %395 : vector<8x10xf32>
    %cst_174 = arith.constant 2.500000e+00 : f32
    %481 = vector.broadcast %cst_174 : f32 to vector<8x10xf32>
    %482 = arith.mulf %480, %481 : vector<8x10xf32>
    %483 = arith.mulf %482, %410 : vector<8x10xf32>
    %484 = arith.addf %478, %483 : vector<8x10xf32>
    %cst_175 = arith.constant -1.800000e+00 : f32
    %485 = vector.broadcast %cst_175 : f32 to vector<8x10xf32>
    %486 = arith.subf %395, %485 : vector<8x10xf32>
    %cst_176 = arith.constant 2.500000e+00 : f32
    %487 = vector.broadcast %cst_176 : f32 to vector<8x10xf32>
    %488 = arith.mulf %486, %487 : vector<8x10xf32>
    %489 = arith.mulf %488, %410 : vector<8x10xf32>
    %cst_177 = arith.constant -1.000000e+00 : f32
    %490 = vector.broadcast %cst_177 : f32 to vector<8x10xf32>
    %491 = arith.subf %490, %395 : vector<8x10xf32>
    %cst_178 = arith.constant 2.500000e+00 : f32
    %492 = vector.broadcast %cst_178 : f32 to vector<8x10xf32>
    %493 = arith.mulf %491, %492 : vector<8x10xf32>
    %494 = arith.mulf %493, %417 : vector<8x10xf32>
    %495 = arith.addf %489, %494 : vector<8x10xf32>
    %cst_179 = arith.constant -1.400000e+00 : f32
    %496 = vector.broadcast %cst_179 : f32 to vector<8x10xf32>
    %497 = arith.subf %395, %496 : vector<8x10xf32>
    %cst_180 = arith.constant 2.500000e+00 : f32
    %498 = vector.broadcast %cst_180 : f32 to vector<8x10xf32>
    %499 = arith.mulf %497, %498 : vector<8x10xf32>
    %500 = arith.mulf %499, %417 : vector<8x10xf32>
    %cst_181 = arith.constant -6.000000e-01 : f32
    %501 = vector.broadcast %cst_181 : f32 to vector<8x10xf32>
    %502 = arith.subf %501, %395 : vector<8x10xf32>
    %cst_182 = arith.constant 2.500000e+00 : f32
    %503 = vector.broadcast %cst_182 : f32 to vector<8x10xf32>
    %504 = arith.mulf %502, %503 : vector<8x10xf32>
    %505 = arith.mulf %504, %424 : vector<8x10xf32>
    %506 = arith.addf %500, %505 : vector<8x10xf32>
    %cst_183 = arith.constant -1.000000e+00 : f32
    %507 = vector.broadcast %cst_183 : f32 to vector<8x10xf32>
    %508 = arith.subf %395, %507 : vector<8x10xf32>
    %cst_184 = arith.constant 2.500000e+00 : f32
    %509 = vector.broadcast %cst_184 : f32 to vector<8x10xf32>
    %510 = arith.mulf %508, %509 : vector<8x10xf32>
    %511 = arith.mulf %510, %424 : vector<8x10xf32>
    %cst_185 = arith.constant -2.000000e-01 : f32
    %512 = vector.broadcast %cst_185 : f32 to vector<8x10xf32>
    %513 = arith.subf %512, %395 : vector<8x10xf32>
    %cst_186 = arith.constant 2.500000e+00 : f32
    %514 = vector.broadcast %cst_186 : f32 to vector<8x10xf32>
    %515 = arith.mulf %513, %514 : vector<8x10xf32>
    %516 = arith.mulf %515, %431 : vector<8x10xf32>
    %517 = arith.addf %511, %516 : vector<8x10xf32>
    %cst_187 = arith.constant -6.000000e-01 : f32
    %518 = vector.broadcast %cst_187 : f32 to vector<8x10xf32>
    %519 = arith.subf %395, %518 : vector<8x10xf32>
    %cst_188 = arith.constant 2.500000e+00 : f32
    %520 = vector.broadcast %cst_188 : f32 to vector<8x10xf32>
    %521 = arith.mulf %519, %520 : vector<8x10xf32>
    %522 = arith.mulf %521, %431 : vector<8x10xf32>
    %cst_189 = arith.constant 2.000000e-01 : f32
    %523 = vector.broadcast %cst_189 : f32 to vector<8x10xf32>
    %524 = arith.subf %523, %395 : vector<8x10xf32>
    %cst_190 = arith.constant 2.500000e+00 : f32
    %525 = vector.broadcast %cst_190 : f32 to vector<8x10xf32>
    %526 = arith.mulf %524, %525 : vector<8x10xf32>
    %527 = arith.mulf %526, %438 : vector<8x10xf32>
    %528 = arith.addf %522, %527 : vector<8x10xf32>
    %cst_191 = arith.constant -2.000000e-01 : f32
    %529 = vector.broadcast %cst_191 : f32 to vector<8x10xf32>
    %530 = arith.subf %395, %529 : vector<8x10xf32>
    %cst_192 = arith.constant 2.500000e+00 : f32
    %531 = vector.broadcast %cst_192 : f32 to vector<8x10xf32>
    %532 = arith.mulf %530, %531 : vector<8x10xf32>
    %533 = arith.mulf %532, %438 : vector<8x10xf32>
    %cst_193 = arith.constant 6.000000e-01 : f32
    %534 = vector.broadcast %cst_193 : f32 to vector<8x10xf32>
    %535 = arith.subf %534, %395 : vector<8x10xf32>
    %cst_194 = arith.constant 2.500000e+00 : f32
    %536 = vector.broadcast %cst_194 : f32 to vector<8x10xf32>
    %537 = arith.mulf %535, %536 : vector<8x10xf32>
    %538 = arith.mulf %537, %445 : vector<8x10xf32>
    %539 = arith.addf %533, %538 : vector<8x10xf32>
    %cst_195 = arith.constant 2.000000e-01 : f32
    %540 = vector.broadcast %cst_195 : f32 to vector<8x10xf32>
    %541 = arith.subf %395, %540 : vector<8x10xf32>
    %cst_196 = arith.constant 2.500000e+00 : f32
    %542 = vector.broadcast %cst_196 : f32 to vector<8x10xf32>
    %543 = arith.mulf %541, %542 : vector<8x10xf32>
    %544 = arith.mulf %543, %445 : vector<8x10xf32>
    %cst_197 = arith.constant 1.000000e+00 : f32
    %545 = vector.broadcast %cst_197 : f32 to vector<8x10xf32>
    %546 = arith.subf %545, %395 : vector<8x10xf32>
    %cst_198 = arith.constant 2.500000e+00 : f32
    %547 = vector.broadcast %cst_198 : f32 to vector<8x10xf32>
    %548 = arith.mulf %546, %547 : vector<8x10xf32>
    %549 = arith.mulf %548, %452 : vector<8x10xf32>
    %550 = arith.addf %544, %549 : vector<8x10xf32>
    %cst_199 = arith.constant 6.000000e-01 : f32
    %551 = vector.broadcast %cst_199 : f32 to vector<8x10xf32>
    %552 = arith.subf %395, %551 : vector<8x10xf32>
    %cst_200 = arith.constant 2.500000e+00 : f32
    %553 = vector.broadcast %cst_200 : f32 to vector<8x10xf32>
    %554 = arith.mulf %552, %553 : vector<8x10xf32>
    %555 = arith.mulf %554, %452 : vector<8x10xf32>
    %cst_201 = arith.constant 1.400000e+00 : f32
    %556 = vector.broadcast %cst_201 : f32 to vector<8x10xf32>
    %557 = arith.subf %556, %395 : vector<8x10xf32>
    %cst_202 = arith.constant 2.500000e+00 : f32
    %558 = vector.broadcast %cst_202 : f32 to vector<8x10xf32>
    %559 = arith.mulf %557, %558 : vector<8x10xf32>
    %560 = arith.mulf %559, %459 : vector<8x10xf32>
    %561 = arith.addf %555, %560 : vector<8x10xf32>
    %cst_203 = arith.constant 1.000000e+00 : f32
    %562 = vector.broadcast %cst_203 : f32 to vector<8x10xf32>
    %563 = arith.subf %395, %562 : vector<8x10xf32>
    %cst_204 = arith.constant 2.500000e+00 : f32
    %564 = vector.broadcast %cst_204 : f32 to vector<8x10xf32>
    %565 = arith.mulf %563, %564 : vector<8x10xf32>
    %566 = arith.mulf %565, %459 : vector<8x10xf32>
    %cst_205 = arith.constant 1.800000e+00 : f32
    %567 = vector.broadcast %cst_205 : f32 to vector<8x10xf32>
    %568 = arith.subf %567, %395 : vector<8x10xf32>
    %cst_206 = arith.constant 2.500000e+00 : f32
    %569 = vector.broadcast %cst_206 : f32 to vector<8x10xf32>
    %570 = arith.mulf %568, %569 : vector<8x10xf32>
    %571 = arith.mulf %570, %466 : vector<8x10xf32>
    %572 = arith.addf %566, %571 : vector<8x10xf32>
    %cst_207 = arith.constant 1.400000e+00 : f32
    %573 = vector.broadcast %cst_207 : f32 to vector<8x10xf32>
    %574 = arith.subf %395, %573 : vector<8x10xf32>
    %cst_208 = arith.constant 2.500000e+00 : f32
    %575 = vector.broadcast %cst_208 : f32 to vector<8x10xf32>
    %576 = arith.mulf %574, %575 : vector<8x10xf32>
    %577 = arith.mulf %576, %466 : vector<8x10xf32>
    %cst_209 = arith.constant 2.200000e+00 : f32
    %578 = vector.broadcast %cst_209 : f32 to vector<8x10xf32>
    %579 = arith.subf %578, %395 : vector<8x10xf32>
    %cst_210 = arith.constant 2.500000e+00 : f32
    %580 = vector.broadcast %cst_210 : f32 to vector<8x10xf32>
    %581 = arith.mulf %579, %580 : vector<8x10xf32>
    %582 = arith.mulf %581, %473 : vector<8x10xf32>
    %583 = arith.addf %577, %582 : vector<8x10xf32>
    %cst_211 = arith.constant -2.200000e+00 : f32
    %584 = vector.broadcast %cst_211 : f32 to vector<8x10xf32>
    %585 = arith.subf %395, %584 : vector<8x10xf32>
    %cst_212 = arith.constant 1.250000e+00 : f32
    %586 = vector.broadcast %cst_212 : f32 to vector<8x10xf32>
    %587 = arith.mulf %585, %586 : vector<8x10xf32>
    %588 = arith.mulf %587, %484 : vector<8x10xf32>
    %cst_213 = arith.constant -1.000000e+00 : f32
    %589 = vector.broadcast %cst_213 : f32 to vector<8x10xf32>
    %590 = arith.subf %589, %395 : vector<8x10xf32>
    %cst_214 = arith.constant 1.250000e+00 : f32
    %591 = vector.broadcast %cst_214 : f32 to vector<8x10xf32>
    %592 = arith.mulf %590, %591 : vector<8x10xf32>
    %593 = arith.mulf %592, %495 : vector<8x10xf32>
    %594 = arith.addf %588, %593 : vector<8x10xf32>
    %cst_215 = arith.constant -1.800000e+00 : f32
    %595 = vector.broadcast %cst_215 : f32 to vector<8x10xf32>
    %596 = arith.subf %395, %595 : vector<8x10xf32>
    %cst_216 = arith.constant 1.250000e+00 : f32
    %597 = vector.broadcast %cst_216 : f32 to vector<8x10xf32>
    %598 = arith.mulf %596, %597 : vector<8x10xf32>
    %599 = arith.mulf %598, %495 : vector<8x10xf32>
    %cst_217 = arith.constant -6.000000e-01 : f32
    %600 = vector.broadcast %cst_217 : f32 to vector<8x10xf32>
    %601 = arith.subf %600, %395 : vector<8x10xf32>
    %cst_218 = arith.constant 1.250000e+00 : f32
    %602 = vector.broadcast %cst_218 : f32 to vector<8x10xf32>
    %603 = arith.mulf %601, %602 : vector<8x10xf32>
    %604 = arith.mulf %603, %506 : vector<8x10xf32>
    %605 = arith.addf %599, %604 : vector<8x10xf32>
    %cst_219 = arith.constant -1.400000e+00 : f32
    %606 = vector.broadcast %cst_219 : f32 to vector<8x10xf32>
    %607 = arith.subf %395, %606 : vector<8x10xf32>
    %cst_220 = arith.constant 1.250000e+00 : f32
    %608 = vector.broadcast %cst_220 : f32 to vector<8x10xf32>
    %609 = arith.mulf %607, %608 : vector<8x10xf32>
    %610 = arith.mulf %609, %506 : vector<8x10xf32>
    %cst_221 = arith.constant -2.000000e-01 : f32
    %611 = vector.broadcast %cst_221 : f32 to vector<8x10xf32>
    %612 = arith.subf %611, %395 : vector<8x10xf32>
    %cst_222 = arith.constant 1.250000e+00 : f32
    %613 = vector.broadcast %cst_222 : f32 to vector<8x10xf32>
    %614 = arith.mulf %612, %613 : vector<8x10xf32>
    %615 = arith.mulf %614, %517 : vector<8x10xf32>
    %616 = arith.addf %610, %615 : vector<8x10xf32>
    %cst_223 = arith.constant -1.000000e+00 : f32
    %617 = vector.broadcast %cst_223 : f32 to vector<8x10xf32>
    %618 = arith.subf %395, %617 : vector<8x10xf32>
    %cst_224 = arith.constant 1.250000e+00 : f32
    %619 = vector.broadcast %cst_224 : f32 to vector<8x10xf32>
    %620 = arith.mulf %618, %619 : vector<8x10xf32>
    %621 = arith.mulf %620, %517 : vector<8x10xf32>
    %cst_225 = arith.constant 2.000000e-01 : f32
    %622 = vector.broadcast %cst_225 : f32 to vector<8x10xf32>
    %623 = arith.subf %622, %395 : vector<8x10xf32>
    %cst_226 = arith.constant 1.250000e+00 : f32
    %624 = vector.broadcast %cst_226 : f32 to vector<8x10xf32>
    %625 = arith.mulf %623, %624 : vector<8x10xf32>
    %626 = arith.mulf %625, %528 : vector<8x10xf32>
    %627 = arith.addf %621, %626 : vector<8x10xf32>
    %cst_227 = arith.constant -6.000000e-01 : f32
    %628 = vector.broadcast %cst_227 : f32 to vector<8x10xf32>
    %629 = arith.subf %395, %628 : vector<8x10xf32>
    %cst_228 = arith.constant 1.250000e+00 : f32
    %630 = vector.broadcast %cst_228 : f32 to vector<8x10xf32>
    %631 = arith.mulf %629, %630 : vector<8x10xf32>
    %632 = arith.mulf %631, %528 : vector<8x10xf32>
    %cst_229 = arith.constant 6.000000e-01 : f32
    %633 = vector.broadcast %cst_229 : f32 to vector<8x10xf32>
    %634 = arith.subf %633, %395 : vector<8x10xf32>
    %cst_230 = arith.constant 1.250000e+00 : f32
    %635 = vector.broadcast %cst_230 : f32 to vector<8x10xf32>
    %636 = arith.mulf %634, %635 : vector<8x10xf32>
    %637 = arith.mulf %636, %539 : vector<8x10xf32>
    %638 = arith.addf %632, %637 : vector<8x10xf32>
    %cst_231 = arith.constant -2.000000e-01 : f32
    %639 = vector.broadcast %cst_231 : f32 to vector<8x10xf32>
    %640 = arith.subf %395, %639 : vector<8x10xf32>
    %cst_232 = arith.constant 1.250000e+00 : f32
    %641 = vector.broadcast %cst_232 : f32 to vector<8x10xf32>
    %642 = arith.mulf %640, %641 : vector<8x10xf32>
    %643 = arith.mulf %642, %539 : vector<8x10xf32>
    %cst_233 = arith.constant 1.000000e+00 : f32
    %644 = vector.broadcast %cst_233 : f32 to vector<8x10xf32>
    %645 = arith.subf %644, %395 : vector<8x10xf32>
    %cst_234 = arith.constant 1.250000e+00 : f32
    %646 = vector.broadcast %cst_234 : f32 to vector<8x10xf32>
    %647 = arith.mulf %645, %646 : vector<8x10xf32>
    %648 = arith.mulf %647, %550 : vector<8x10xf32>
    %649 = arith.addf %643, %648 : vector<8x10xf32>
    %cst_235 = arith.constant 2.000000e-01 : f32
    %650 = vector.broadcast %cst_235 : f32 to vector<8x10xf32>
    %651 = arith.subf %395, %650 : vector<8x10xf32>
    %cst_236 = arith.constant 1.250000e+00 : f32
    %652 = vector.broadcast %cst_236 : f32 to vector<8x10xf32>
    %653 = arith.mulf %651, %652 : vector<8x10xf32>
    %654 = arith.mulf %653, %550 : vector<8x10xf32>
    %cst_237 = arith.constant 1.400000e+00 : f32
    %655 = vector.broadcast %cst_237 : f32 to vector<8x10xf32>
    %656 = arith.subf %655, %395 : vector<8x10xf32>
    %cst_238 = arith.constant 1.250000e+00 : f32
    %657 = vector.broadcast %cst_238 : f32 to vector<8x10xf32>
    %658 = arith.mulf %656, %657 : vector<8x10xf32>
    %659 = arith.mulf %658, %561 : vector<8x10xf32>
    %660 = arith.addf %654, %659 : vector<8x10xf32>
    %cst_239 = arith.constant 6.000000e-01 : f32
    %661 = vector.broadcast %cst_239 : f32 to vector<8x10xf32>
    %662 = arith.subf %395, %661 : vector<8x10xf32>
    %cst_240 = arith.constant 1.250000e+00 : f32
    %663 = vector.broadcast %cst_240 : f32 to vector<8x10xf32>
    %664 = arith.mulf %662, %663 : vector<8x10xf32>
    %665 = arith.mulf %664, %561 : vector<8x10xf32>
    %cst_241 = arith.constant 1.800000e+00 : f32
    %666 = vector.broadcast %cst_241 : f32 to vector<8x10xf32>
    %667 = arith.subf %666, %395 : vector<8x10xf32>
    %cst_242 = arith.constant 1.250000e+00 : f32
    %668 = vector.broadcast %cst_242 : f32 to vector<8x10xf32>
    %669 = arith.mulf %667, %668 : vector<8x10xf32>
    %670 = arith.mulf %669, %572 : vector<8x10xf32>
    %671 = arith.addf %665, %670 : vector<8x10xf32>
    %cst_243 = arith.constant 1.000000e+00 : f32
    %672 = vector.broadcast %cst_243 : f32 to vector<8x10xf32>
    %673 = arith.subf %395, %672 : vector<8x10xf32>
    %cst_244 = arith.constant 1.250000e+00 : f32
    %674 = vector.broadcast %cst_244 : f32 to vector<8x10xf32>
    %675 = arith.mulf %673, %674 : vector<8x10xf32>
    %676 = arith.mulf %675, %572 : vector<8x10xf32>
    %cst_245 = arith.constant 2.200000e+00 : f32
    %677 = vector.broadcast %cst_245 : f32 to vector<8x10xf32>
    %678 = arith.subf %677, %395 : vector<8x10xf32>
    %cst_246 = arith.constant 1.250000e+00 : f32
    %679 = vector.broadcast %cst_246 : f32 to vector<8x10xf32>
    %680 = arith.mulf %678, %679 : vector<8x10xf32>
    %681 = arith.mulf %680, %583 : vector<8x10xf32>
    %682 = arith.addf %676, %681 : vector<8x10xf32>
    %cst_247 = arith.constant -2.200000e+00 : f32
    %683 = vector.broadcast %cst_247 : f32 to vector<8x10xf32>
    %684 = arith.subf %395, %683 : vector<8x10xf32>
    %cst_248 = arith.constant 0.833333313 : f32
    %685 = vector.broadcast %cst_248 : f32 to vector<8x10xf32>
    %686 = arith.mulf %684, %685 : vector<8x10xf32>
    %687 = arith.mulf %686, %594 : vector<8x10xf32>
    %cst_249 = arith.constant -6.000000e-01 : f32
    %688 = vector.broadcast %cst_249 : f32 to vector<8x10xf32>
    %689 = arith.subf %688, %395 : vector<8x10xf32>
    %cst_250 = arith.constant 0.833333313 : f32
    %690 = vector.broadcast %cst_250 : f32 to vector<8x10xf32>
    %691 = arith.mulf %689, %690 : vector<8x10xf32>
    %692 = arith.mulf %691, %605 : vector<8x10xf32>
    %693 = arith.addf %687, %692 : vector<8x10xf32>
    %cst_251 = arith.constant -1.800000e+00 : f32
    %694 = vector.broadcast %cst_251 : f32 to vector<8x10xf32>
    %695 = arith.subf %395, %694 : vector<8x10xf32>
    %cst_252 = arith.constant 0.833333313 : f32
    %696 = vector.broadcast %cst_252 : f32 to vector<8x10xf32>
    %697 = arith.mulf %695, %696 : vector<8x10xf32>
    %698 = arith.mulf %697, %605 : vector<8x10xf32>
    %cst_253 = arith.constant -2.000000e-01 : f32
    %699 = vector.broadcast %cst_253 : f32 to vector<8x10xf32>
    %700 = arith.subf %699, %395 : vector<8x10xf32>
    %cst_254 = arith.constant 0.833333313 : f32
    %701 = vector.broadcast %cst_254 : f32 to vector<8x10xf32>
    %702 = arith.mulf %700, %701 : vector<8x10xf32>
    %703 = arith.mulf %702, %616 : vector<8x10xf32>
    %704 = arith.addf %698, %703 : vector<8x10xf32>
    %cst_255 = arith.constant -1.400000e+00 : f32
    %705 = vector.broadcast %cst_255 : f32 to vector<8x10xf32>
    %706 = arith.subf %395, %705 : vector<8x10xf32>
    %cst_256 = arith.constant 0.833333313 : f32
    %707 = vector.broadcast %cst_256 : f32 to vector<8x10xf32>
    %708 = arith.mulf %706, %707 : vector<8x10xf32>
    %709 = arith.mulf %708, %616 : vector<8x10xf32>
    %cst_257 = arith.constant 2.000000e-01 : f32
    %710 = vector.broadcast %cst_257 : f32 to vector<8x10xf32>
    %711 = arith.subf %710, %395 : vector<8x10xf32>
    %cst_258 = arith.constant 0.833333313 : f32
    %712 = vector.broadcast %cst_258 : f32 to vector<8x10xf32>
    %713 = arith.mulf %711, %712 : vector<8x10xf32>
    %714 = arith.mulf %713, %627 : vector<8x10xf32>
    %715 = arith.addf %709, %714 : vector<8x10xf32>
    %cst_259 = arith.constant -1.000000e+00 : f32
    %716 = vector.broadcast %cst_259 : f32 to vector<8x10xf32>
    %717 = arith.subf %395, %716 : vector<8x10xf32>
    %cst_260 = arith.constant 0.833333313 : f32
    %718 = vector.broadcast %cst_260 : f32 to vector<8x10xf32>
    %719 = arith.mulf %717, %718 : vector<8x10xf32>
    %720 = arith.mulf %719, %627 : vector<8x10xf32>
    %cst_261 = arith.constant 6.000000e-01 : f32
    %721 = vector.broadcast %cst_261 : f32 to vector<8x10xf32>
    %722 = arith.subf %721, %395 : vector<8x10xf32>
    %cst_262 = arith.constant 0.833333313 : f32
    %723 = vector.broadcast %cst_262 : f32 to vector<8x10xf32>
    %724 = arith.mulf %722, %723 : vector<8x10xf32>
    %725 = arith.mulf %724, %638 : vector<8x10xf32>
    %726 = arith.addf %720, %725 : vector<8x10xf32>
    %cst_263 = arith.constant -6.000000e-01 : f32
    %727 = vector.broadcast %cst_263 : f32 to vector<8x10xf32>
    %728 = arith.subf %395, %727 : vector<8x10xf32>
    %cst_264 = arith.constant 0.833333313 : f32
    %729 = vector.broadcast %cst_264 : f32 to vector<8x10xf32>
    %730 = arith.mulf %728, %729 : vector<8x10xf32>
    %731 = arith.mulf %730, %638 : vector<8x10xf32>
    %cst_265 = arith.constant 1.000000e+00 : f32
    %732 = vector.broadcast %cst_265 : f32 to vector<8x10xf32>
    %733 = arith.subf %732, %395 : vector<8x10xf32>
    %cst_266 = arith.constant 0.833333313 : f32
    %734 = vector.broadcast %cst_266 : f32 to vector<8x10xf32>
    %735 = arith.mulf %733, %734 : vector<8x10xf32>
    %736 = arith.mulf %735, %649 : vector<8x10xf32>
    %737 = arith.addf %731, %736 : vector<8x10xf32>
    %cst_267 = arith.constant -2.000000e-01 : f32
    %738 = vector.broadcast %cst_267 : f32 to vector<8x10xf32>
    %739 = arith.subf %395, %738 : vector<8x10xf32>
    %cst_268 = arith.constant 0.833333313 : f32
    %740 = vector.broadcast %cst_268 : f32 to vector<8x10xf32>
    %741 = arith.mulf %739, %740 : vector<8x10xf32>
    %742 = arith.mulf %741, %649 : vector<8x10xf32>
    %cst_269 = arith.constant 1.400000e+00 : f32
    %743 = vector.broadcast %cst_269 : f32 to vector<8x10xf32>
    %744 = arith.subf %743, %395 : vector<8x10xf32>
    %cst_270 = arith.constant 0.833333313 : f32
    %745 = vector.broadcast %cst_270 : f32 to vector<8x10xf32>
    %746 = arith.mulf %744, %745 : vector<8x10xf32>
    %747 = arith.mulf %746, %660 : vector<8x10xf32>
    %748 = arith.addf %742, %747 : vector<8x10xf32>
    %cst_271 = arith.constant 2.000000e-01 : f32
    %749 = vector.broadcast %cst_271 : f32 to vector<8x10xf32>
    %750 = arith.subf %395, %749 : vector<8x10xf32>
    %cst_272 = arith.constant 0.833333313 : f32
    %751 = vector.broadcast %cst_272 : f32 to vector<8x10xf32>
    %752 = arith.mulf %750, %751 : vector<8x10xf32>
    %753 = arith.mulf %752, %660 : vector<8x10xf32>
    %cst_273 = arith.constant 1.800000e+00 : f32
    %754 = vector.broadcast %cst_273 : f32 to vector<8x10xf32>
    %755 = arith.subf %754, %395 : vector<8x10xf32>
    %cst_274 = arith.constant 0.833333313 : f32
    %756 = vector.broadcast %cst_274 : f32 to vector<8x10xf32>
    %757 = arith.mulf %755, %756 : vector<8x10xf32>
    %758 = arith.mulf %757, %671 : vector<8x10xf32>
    %759 = arith.addf %753, %758 : vector<8x10xf32>
    %cst_275 = arith.constant 6.000000e-01 : f32
    %760 = vector.broadcast %cst_275 : f32 to vector<8x10xf32>
    %761 = arith.subf %395, %760 : vector<8x10xf32>
    %cst_276 = arith.constant 0.833333313 : f32
    %762 = vector.broadcast %cst_276 : f32 to vector<8x10xf32>
    %763 = arith.mulf %761, %762 : vector<8x10xf32>
    %764 = arith.mulf %763, %671 : vector<8x10xf32>
    %cst_277 = arith.constant 2.200000e+00 : f32
    %765 = vector.broadcast %cst_277 : f32 to vector<8x10xf32>
    %766 = arith.subf %765, %395 : vector<8x10xf32>
    %cst_278 = arith.constant 0.833333313 : f32
    %767 = vector.broadcast %cst_278 : f32 to vector<8x10xf32>
    %768 = arith.mulf %766, %767 : vector<8x10xf32>
    %769 = arith.mulf %768, %682 : vector<8x10xf32>
    %770 = arith.addf %764, %769 : vector<8x10xf32>
    %771 = arith.negf %395 : vector<8x10xf32>
    %772 = math.exp %771 : vector<8x10xf32>
    %cst_279 = arith.constant 1.000000e+00 : f32
    %773 = vector.broadcast %cst_279 : f32 to vector<8x10xf32>
    %774 = arith.addf %773, %772 : vector<8x10xf32>
    %775 = arith.divf %773, %774 : vector<8x10xf32>
    %776 = arith.mulf %395, %775 : vector<8x10xf32>
    %777 = tpu.concatenate %776, %693, %704, %715, %726, %737, %748, %759, %770 in 1 : vector<8x10xf32>, vector<8x10xf32>, vector<8x10xf32>, vector<8x10xf32>, vector<8x10xf32>, vector<8x10xf32>, vector<8x10xf32>, vector<8x10xf32>, vector<8x10xf32> -> vector<8x90xf32>
    %cst_280 = arith.constant dense<0.000000e+00> : vector<8x5xf32>
    %778 = tpu.matmul %777, %396, %cst_280 {dimension_numbers = #tpu.dot_dimension_numbers<[1], [0], [0], [1], [0, 0, 1, 1], [], []>} : vector<8x90xf32>, vector<90x5xf32>, vector<8x5xf32> -> vector<8x5xf32>
    %c0_281 = arith.constant 0 : index
    %c0_282 = arith.constant 0 : index
    %779 = vector.load %arg7[%c0_281, %c0_282] : memref<8x5xf32, #tpu.memory_space<vmem>>, vector<8x5xf32>
    tpu.vector_store %arg7[%c0_281, %c0_282], %778 {strides = array<i32>} : memref<8x5xf32, #tpu.memory_space<vmem>>, vector<8x5xf32>,
    return
  }
}

</mosaic_0001>

<llo_original>
// kernel: _lambda_.2
$region0: #{_lambda_.2}
  #allocation0 [shape = 'u32[]', space=smem, size = 0x4, offset = 0x4, fixed_abs, tag = 'smem constant byte address 0x4 - core index']
  #allocation1 [shape = 'u32[144,128]{1,0:T(1,128)}', space=vmem, size = 0x12000, scoped, tag = 'internal scratch']
  #allocation2 [shape = 'f32[64,256]{1,0:T(8,128)}', space=vmem, size = 0x10000, scoped, tag = 'scratch operand']
  %s0 = inlined_call_operand.vmem [shape: f32[64,16], index: 0, kind: input, shape index: {}]
  %s1 = inlined_call_operand.vmem [shape: f32[16,256], index: 1, kind: input, shape index: {}]
  %s2 = inlined_call_operand.vmem [shape: f32[32,128], index: 2, kind: input, shape index: {}]
  %s3 = inlined_call_operand.vmem [shape: f32[32,128], index: 3, kind: input, shape index: {}]
  %s4 = inlined_call_operand.vmem [shape: f32[8,256], index: 4, kind: input, shape index: {}]
  %s5 = inlined_call_operand.vmem [shape: f32[8,8,64], index: 5, kind: output, shape index: {}]
  %s6 = sld [smem:[#allocation0]]
  $region37: #{_lambda_.2} parent=0
    _
  %s8 = ssub.s32 1, %s6
  %s9 = scalar_select 0, %s8, %s6
  // Predicated region
  $region2: #{_lambda_.2} parent=0 // pred_check
    _
  $region3: #{_lambda_.2} parent=0 // pred_check_branch
    %11 = sbr.rel (0) target = $region5
  $region4: #{_lambda_.2} parent=0 // pred_region
    _
  $region5: #{_lambda_.2} parent=0 // pred_fallthru
    _
  // Predicated region
  $region6: #{_lambda_.2} parent=0 // pred_check
    _
  $region7: #{_lambda_.2} parent=0 // pred_check_branch
    %13 = sbr.rel (0) target = $region9
  $region8: #{_lambda_.2} parent=0 // pred_region
    _
  $region9: #{_lambda_.2} parent=0 // pred_fallthru
    _
  // Predicated region
  $region10: #{_lambda_.2} parent=0 // pred_check
    _
  $region11: #{_lambda_.2} parent=0 // pred_check_branch
    %15 = sbr.rel (0) target = $region13
  $region12: #{_lambda_.2} parent=0 // pred_region
    _
  $region13: #{_lambda_.2} parent=0 // pred_fallthru
    _
  // Predicated region
  $region14: #{_lambda_.2} parent=0 // pred_check
    _
  $region15: #{_lambda_.2} parent=0 // pred_check_branch
    %17 = sbr.rel (0) target = $region17
  $region16: #{_lambda_.2} parent=0 // pred_region
    _
  $region17: #{_lambda_.2} parent=0 // pred_fallthru
    _
  // Predicated region
  $region18: #{_lambda_.2} parent=0 // pred_check
    _
  $region19: #{_lambda_.2} parent=0 // pred_check_branch
    %19 = sbr.rel (0) target = $region21
  $region20: #{_lambda_.2} parent=0 // pred_region
    _
  $region21: #{_lambda_.2} parent=0 // pred_fallthru
    _
  %v20 = vld [vmem:[%s0] sm:$0xff]
  %v21 = vld [vmem:[%s0 + $0x8] sm:$0xff]
  %v22 = vld [vmem:[%s0 + $0x10] sm:$0xff]
  %v23 = vld [vmem:[%s0 + $0x18] sm:$0xff]
  %v24 = vld [vmem:[%s0 + $0x20] sm:$0xff]
  %v25 = vld [vmem:[%s0 + $0x28] sm:$0xff]
  %v26 = vld [vmem:[%s0 + $0x30] sm:$0xff]
  %v27 = vld [vmem:[%s0 + $0x38] sm:$0xff]
  %v28 = vld [vmem:[%s1] sm:$0xff]
  %v29 = vld [vmem:[%s1 + $0x8] sm:$0xff]
  %v30 = vld [vmem:[%s1 + $0x10] sm:$0xff]
  %v31 = vld [vmem:[%s1 + $0x18] sm:$0xff]
  %vm32 = vcmask 130048
  %v34 = vsel %vm32, %v20, 0
  %v37 = vsel %vm32, %v21, 0
  %v40 = vsel %vm32, %v22, 0
  %v43 = vsel %vm32, %v23, 0
  %v46 = vsel %vm32, %v24, 0
  %v49 = vsel %vm32, %v25, 0
  %v52 = vsel %vm32, %v26, 0
  %v55 = vsel %vm32, %v27, 0
  %57 = vmatprep.subr.mxu0 %v29
  %58 = vmatpush1.msra.mxu0 %v28
  %59 = vmatprep.subr.mxu0 %v31
  %60 = vmatpush1.msra.mxu0 %v30
  %61 = vmatprep.subr.mxu0 0.0
  %62 = vmatpush1.msra.mxu0 0.0
  %63 = vmatprep.subr.mxu0 0.0
  %64 = vmatpush1.msra.mxu0 0.0
  %65 = vmatprep.subr.mxu0 0.0
  %66 = vmatpush1.msra.mxu0 0.0
  %67 = vmatprep.subr.mxu0 0.0
  %68 = vmatpush1.msra.mxu0 0.0
  %69 = vmatprep.subr.mxu0 0.0
  %70 = vmatpush1.msra.mxu0 0.0
  %71 = vmatprep.subr.mxu0 0.0
  %72 = vmatpush1.msra.mxu0 0.0
  %73 = vmatprep.subr.mxu0 0.0
  %74 = vmatpush1.msra.mxu0 0.0
  %75 = vmatprep.subr.mxu0 0.0
  %76 = vmatpush1.msra.mxu0 0.0
  %77 = vmatprep.subr.mxu0 0.0
  %78 = vmatpush1.msra.mxu0 0.0
  %79 = vmatprep.subr.mxu0 0.0
  %80 = vmatpush1.msra.mxu0 0.0
  %81 = vmatprep.subr.mxu0 0.0
  %82 = vmatpush1.msra.mxu0 0.0
  %83 = vmatprep.subr.mxu0 0.0
  %84 = vmatpush1.msra.mxu0 0.0
  %85 = vmatprep.subr.mxu0 0.0
  %86 = vmatpush1.msra.mxu0 0.0
  %87 = vmatprep.subr.mxu0 0.0
  %88 = vmatpush1.msra.mxu0 0.0
  %89 = vmatprep.subr.mxu0 0.0
  %90 = vmatpush1.msra.mxu0 0.0
  %91 = vmatprep.subr.mxu0 0.0
  %92 = vmatpush1.msra.mxu0 0.0
  %93 = vmatprep.subr.mxu0 0.0
  %94 = vmatpush1.msra.mxu0 0.0
  %95 = vmatprep.subr.mxu0 0.0
  %96 = vmatpush1.msra.mxu0 0.0
  %97 = vmatprep.subr.mxu0 0.0
  %98 = vmatpush1.msra.mxu0 0.0
  %99 = vmatprep.subr.mxu0 0.0
  %100 = vmatpush1.msra.mxu0 0.0
  %101 = vmatprep.subr.mxu0 0.0
  %102 = vmatpush1.msra.mxu0 0.0
  %103 = vmatprep.subr.mxu0 0.0
  %104 = vmatpush1.msra.mxu0 0.0
  %105 = vmatprep.subr.mxu0 0.0
  %106 = vmatpush1.msra.mxu0 0.0
  %107 = vmatprep.subr.mxu0 0.0
  %108 = vmatpush1.msra.mxu0 0.0
  %109 = vmatprep.subr.mxu0 0.0
  %110 = vmatpush1.msra.mxu0 0.0
  %111 = vmatprep.subr.mxu0 0.0
  %112 = vmatpush1.msra.mxu0 0.0
  %113 = vmatprep.subr.mxu0 0.0
  %114 = vmatpush1.msra.mxu0 0.0
  %115 = vmatprep.subr.mxu0 0.0
  %116 = vmatpush1.msra.mxu0 0.0
  %117 = vmatprep.subr.mxu0 0.0
  %118 = vmatpush1.msra.mxu0 0.0
  %119 = vmatprep.subr.mxu0 0.0
  %120 = vmatpush1.msra.mxu0 0.0
  %121 = vmatprep.mubr.f32.mxu0 0.0
  %122 = vmatmul.mubr.f32.gmra.mrb[0].mxu0 %v34
  %v123 = vpop.f32.mrb[0].mxu0
  %v124 = vadd.f32 0.0, %v123
  %v125 = vpop.f32.mrb[0].mxu0
  %v126 = vadd.f32 0.0, %v125
  %127 = vmatprep.mubr.f32.mxu0 0.0
  %128 = vmatmul.mubr.f32.gmra.mrb[0].mxu0 %v37
  %v129 = vpop.f32.mrb[0].mxu0
  %v130 = vadd.f32 0.0, %v129
  %v131 = vpop.f32.mrb[0].mxu0
  %v132 = vadd.f32 0.0, %v131
  %133 = vmatprep.mubr.f32.mxu0 0.0
  %134 = vmatmul.mubr.f32.gmra.mrb[0].mxu0 %v40
  %v135 = vpop.f32.mrb[0].mxu0
  %v136 = vadd.f32 0.0, %v135
  %v137 = vpop.f32.mrb[0].mxu0
  %v138 = vadd.f32 0.0, %v137
  %139 = vmatprep.mubr.f32.mxu0 0.0
  %140 = vmatmul.mubr.f32.gmra.mrb[0].mxu0 %v43
  %v141 = vpop.f32.mrb[0].mxu0
  %v142 = vadd.f32 0.0, %v141
  %v143 = vpop.f32.mrb[0].mxu0
  %v144 = vadd.f32 0.0, %v143
  %145 = vmatprep.mubr.f32.mxu0 0.0
  %146 = vmatmul.mubr.f32.gmra.mrb[0].mxu0 %v46
  %v147 = vpop.f32.mrb[0].mxu0
  %v148 = vadd.f32 0.0, %v147
  %v149 = vpop.f32.mrb[0].mxu0
  %v150 = vadd.f32 0.0, %v149
  %151 = vmatprep.mubr.f32.mxu0 0.0
  %152 = vmatmul.mubr.f32.gmra.mrb[0].mxu0 %v49
  %v153 = vpop.f32.mrb[0].mxu0
  %v154 = vadd.f32 0.0, %v153
  %v155 = vpop.f32.mrb[0].mxu0
  %v156 = vadd.f32 0.0, %v155
  %157 = vmatprep.mubr.f32.mxu0 0.0
  %158 = vmatmul.mubr.f32.gmra.mrb[0].mxu0 %v52
  %v159 = vpop.f32.mrb[0].mxu0
  %v160 = vadd.f32 0.0, %v159
  %v161 = vpop.f32.mrb[0].mxu0
  %v162 = vadd.f32 0.0, %v161
  %163 = vmatprep.mubr.f32.mxu0 0.0
  %164 = vmatmul.mubr.f32.gmra.mrb[0].mxu0 %v55
  %v165 = vpop.f32.mrb[0].mxu0
  %v166 = vadd.f32 0.0, %v165
  %v167 = vpop.f32.mrb[0].mxu0
  %v168 = vadd.f32 0.0, %v167
  %169 = vdwg.mxu0
  %170 = vst [vmem:[#allocation2] sm:$0xff] %v124
  %171 = vst [vmem:[#allocation2 + $0x8] sm:$0xff] %v126
  %172 = vst [vmem:[#allocation2 + $0x10] sm:$0xff] %v130
  %173 = vst [vmem:[#allocation2 + $0x18] sm:$0xff] %v132
  %174 = vst [vmem:[#allocation2 + $0x20] sm:$0xff] %v136
  %175 = vst [vmem:[#allocation2 + $0x28] sm:$0xff] %v138
  %176 = vst [vmem:[#allocation2 + $0x30] sm:$0xff] %v142
  %177 = vst [vmem:[#allocation2 + $0x38] sm:$0xff] %v144
  %178 = vst [vmem:[#allocation2 + $0x40] sm:$0xff] %v148
  %179 = vst [vmem:[#allocation2 + $0x48] sm:$0xff] %v150
  %180 = vst [vmem:[#allocation2 + $0x50] sm:$0xff] %v154
  %181 = vst [vmem:[#allocation2 + $0x58] sm:$0xff] %v156
  %182 = vst [vmem:[#allocation2 + $0x60] sm:$0xff] %v160
  %183 = vst [vmem:[#allocation2 + $0x68] sm:$0xff] %v162
  %184 = vst [vmem:[#allocation2 + $0x70] sm:$0xff] %v166
  %185 = vst [vmem:[#allocation2 + $0x78] sm:$0xff] %v168
  %v186 = vld [vmem:[%s4] sm:$0xff]
  %v187 = vld [vmem:[%s4 + $0x8] sm:$0xff]
  %v188 = vld [vmem:[%s2] sm:$0xff]
  %v189 = vld [vmem:[%s2 + $0x8] sm:$0xff]
  %v190 = vld [vmem:[%s2 + $0x10] sm:$0xff]
  %v191 = vld [vmem:[%s2 + $0x18] sm:$0xff]
  %v192 = vld [vmem:[%s3] sm:$0xff]
  %v193 = vld [vmem:[%s3 + $0x8] sm:$0xff]
  %v194 = vld [vmem:[%s3 + $0x10] sm:$0xff]
  %v195 = vld [vmem:[%s3 + $0x18] sm:$0xff]
  loop: start=0, step=1, limit=8
  $region22: #{_lambda_.2} parent=0 // loop_pre_header
    _
  $region23: #{_lambda_.2} parent=0 // loop_header
    %s197 = sphi 0, %s201
    %p198 = scmp.ge.s32.totalorder %s197, 8
    %v202 = vphi 0.0, %v399
    %v203 = vphi 0.0, %v393
    %v204 = vphi 0.0, %v423
    %v205 = vphi 0.0, %v417
  $region24: #{_lambda_.2} parent=0 // loop_header_branch
    %200 = sbr.rel (%p198) target = $region28
  $region25: #{_lambda_.2} parent=0 // loop_body
    %s206 = smul.u32 %s197, 8
    %s207 = ssub.s32 7, %s197
    %s208 = smul.u32 %s207, 8
    %s209 = sshra.s32 %s206, 3
    %s210 = sand.u32 %s206, 7
    %s211 = smul.u32 %s209, 2
    %s212 = smul.addr %s211, 8
    %s213 = scalar_lea.vmem [#allocation2], %s212
    %v214 = vld [vmem:[%s213] sm:$0xff]
    %s215 = sshra.s32 %s208, 3
    %s216 = sand.u32 %s208, 7
    %s217 = smul.u32 %s215, 2
    %s218 = smul.addr %s217, 8
    %s219 = scalar_lea.vmem [#allocation2], %s218
    %v220 = vld [vmem:[%s219 + $0x8] sm:$0xff]
    %v221 = vadd.f32 %v214, %v186
    %223 = vrot.lane.b32.xlu0 %v202, 32
    %v224 = vpop.permute.xlu0 %223
    %vm225 = vcmask 261120
    %v226 = vsel %vm225, %v224, 0
    %228 = vmatprep.subr.mxu0 0.0
    %229 = vmatpush1.msra.mxu0 %v188
    %230 = vmatprep.subr.mxu0 0.0
    %231 = vmatpush1.msra.mxu0 %v189
    %232 = vmatprep.subr.mxu0 0.0
    %233 = vmatpush1.msra.mxu0 %v190
    %234 = vmatprep.subr.mxu0 0.0
    %235 = vmatpush1.msra.mxu0 %v191
    %236 = vmatprep.subr.mxu0 0.0
    %237 = vmatpush1.msra.mxu0 0.0
    %238 = vmatprep.subr.mxu0 0.0
    %239 = vmatpush1.msra.mxu0 0.0
    %240 = vmatprep.subr.mxu0 0.0
    %241 = vmatpush1.msra.mxu0 0.0
    %242 = vmatprep.subr.mxu0 0.0
    %243 = vmatpush1.msra.mxu0 0.0
    %244 = vmatprep.subr.mxu0 0.0
    %245 = vmatpush1.msra.mxu0 0.0
    %246 = vmatprep.subr.mxu0 0.0
    %247 = vmatpush1.msra.mxu0 0.0
    %248 = vmatprep.subr.mxu0 0.0
    %249 = vmatpush1.msra.mxu0 0.0
    %250 = vmatprep.subr.mxu0 0.0
    %251 = vmatpush1.msra.mxu0 0.0
    %252 = vmatprep.subr.mxu0 0.0
    %253 = vmatpush1.msra.mxu0 0.0
    %254 = vmatprep.subr.mxu0 0.0
    %255 = vmatpush1.msra.mxu0 0.0
    %256 = vmatprep.subr.mxu0 0.0
    %257 = vmatpush1.msra.mxu0 0.0
    %258 = vmatprep.subr.mxu0 0.0
    %259 = vmatpush1.msra.mxu0 0.0
    %260 = vmatprep.subr.mxu0 0.0
    %261 = vmatpush1.msra.mxu0 0.0
    %262 = vmatprep.subr.mxu0 0.0
    %263 = vmatpush1.msra.mxu0 0.0
    %264 = vmatprep.subr.mxu0 0.0
    %265 = vmatpush1.msra.mxu0 0.0
    %266 = vmatprep.subr.mxu0 0.0
    %267 = vmatpush1.msra.mxu0 0.0
    %268 = vmatprep.subr.mxu0 0.0
    %269 = vmatpush1.msra.mxu0 0.0
    %270 = vmatprep.subr.mxu0 0.0
    %271 = vmatpush1.msra.mxu0 0.0
    %272 = vmatprep.subr.mxu0 0.0
    %273 = vmatpush1.msra.mxu0 0.0
    %274 = vmatprep.subr.mxu0 0.0
    %275 = vmatpush1.msra.mxu0 0.0
    %276 = vmatprep.subr.mxu0 0.0
    %277 = vmatpush1.msra.mxu0 0.0
    %278 = vmatprep.subr.mxu0 0.0
    %279 = vmatpush1.msra.mxu0 0.0
    %280 = vmatprep.subr.mxu0 0.0
    %281 = vmatpush1.msra.mxu0 0.0
    %282 = vmatprep.subr.mxu0 0.0
    %283 = vmatpush1.msra.mxu0 0.0
    %284 = vmatprep.subr.mxu0 0.0
    %285 = vmatpush1.msra.mxu0 0.0
    %286 = vmatprep.subr.mxu0 0.0
    %287 = vmatpush1.msra.mxu0 0.0
    %288 = vmatprep.subr.mxu0 0.0
    %289 = vmatpush1.msra.mxu0 0.0
    %290 = vmatprep.subr.mxu0 0.0
    %291 = vmatpush1.msra.mxu0 0.0
    %292 = vmatprep.mubr.f32.mxu0 0.0
    %293 = vmatmul.mubr.f32.gmra.mrb[0].mxu0 %v226
    %v294 = vpop.f32.mrb[0].mxu0
    %v295 = vadd.f32 0.0, %v294
    %v296 = vpop.f32.mrb[0].mxu0
    %297 = vdwg.mxu0
    %v298 = vadd.f32 %v221, %v295
    %v299 = vadd.f32 %v220, %v187
    %301 = vrot.lane.b32.xlu0 %v204, 32
    %v302 = vpop.permute.xlu0 %301
    %v303 = vsel %vm225, %v302, 0
    %305 = vmatprep.subr.mxu0 0.0
    %306 = vmatpush1.msra.mxu0 %v192
    %307 = vmatprep.subr.mxu0 0.0
    %308 = vmatpush1.msra.mxu0 %v193
    %309 = vmatprep.subr.mxu0 0.0
    %310 = vmatpush1.msra.mxu0 %v194
    %311 = vmatprep.subr.mxu0 0.0
    %312 = vmatpush1.msra.mxu0 %v195
    %313 = vmatprep.subr.mxu0 0.0
    %314 = vmatpush1.msra.mxu0 0.0
    %315 = vmatprep.subr.mxu0 0.0
    %316 = vmatpush1.msra.mxu0 0.0
    %317 = vmatprep.subr.mxu0 0.0
    %318 = vmatpush1.msra.mxu0 0.0
    %319 = vmatprep.subr.mxu0 0.0
    %320 = vmatpush1.msra.mxu0 0.0
    %321 = vmatprep.subr.mxu0 0.0
    %322 = vmatpush1.msra.mxu0 0.0
    %323 = vmatprep.subr.mxu0 0.0
    %324 = vmatpush1.msra.mxu0 0.0
    %325 = vmatprep.subr.mxu0 0.0
    %326 = vmatpush1.msra.mxu0 0.0
    %327 = vmatprep.subr.mxu0 0.0
    %328 = vmatpush1.msra.mxu0 0.0
    %329 = vmatprep.subr.mxu0 0.0
    %330 = vmatpush1.msra.mxu0 0.0
    %331 = vmatprep.subr.mxu0 0.0
    %332 = vmatpush1.msra.mxu0 0.0
    %333 = vmatprep.subr.mxu0 0.0
    %334 = vmatpush1.msra.mxu0 0.0
    %335 = vmatprep.subr.mxu0 0.0
    %336 = vmatpush1.msra.mxu0 0.0
    %337 = vmatprep.subr.mxu0 0.0
    %338 = vmatpush1.msra.mxu0 0.0
    %339 = vmatprep.subr.mxu0 0.0
    %340 = vmatpush1.msra.mxu0 0.0
    %341 = vmatprep.subr.mxu0 0.0
    %342 = vmatpush1.msra.mxu0 0.0
    %343 = vmatprep.subr.mxu0 0.0
    %344 = vmatpush1.msra.mxu0 0.0
    %345 = vmatprep.subr.mxu0 0.0
    %346 = vmatpush1.msra.mxu0 0.0
    %347 = vmatprep.subr.mxu0 0.0
    %348 = vmatpush1.msra.mxu0 0.0
    %349 = vmatprep.subr.mxu0 0.0
    %350 = vmatpush1.msra.mxu0 0.0
    %351 = vmatprep.subr.mxu0 0.0
    %352 = vmatpush1.msra.mxu0 0.0
    %353 = vmatprep.subr.mxu0 0.0
    %354 = vmatpush1.msra.mxu0 0.0
    %355 = vmatprep.subr.mxu0 0.0
    %356 = vmatpush1.msra.mxu0 0.0
    %357 = vmatprep.subr.mxu0 0.0
    %358 = vmatpush1.msra.mxu0 0.0
    %359 = vmatprep.subr.mxu0 0.0
    %360 = vmatpush1.msra.mxu0 0.0
    %361 = vmatprep.subr.mxu0 0.0
    %362 = vmatpush1.msra.mxu0 0.0
    %363 = vmatprep.subr.mxu0 0.0
    %364 = vmatpush1.msra.mxu0 0.0
    %365 = vmatprep.subr.mxu0 0.0
    %366 = vmatpush1.msra.mxu0 0.0
    %367 = vmatprep.subr.mxu0 0.0
    %368 = vmatpush1.msra.mxu0 0.0
    %369 = vmatprep.mubr.f32.mxu0 0.0
    %370 = vmatmul.mubr.f32.gmra.mrb[0].mxu0 %v303
    %v371 = vpop.f32.mrb[0].mxu0
    %v372 = vadd.f32 0.0, %v371
    %v373 = vpop.f32.mrb[0].mxu0
    %374 = vdwg.mxu0
    %v375 = vadd.f32 %v299, %v372
    %v376 = vxor.u32 %v298, 2147483648
    %v377 = vmul.f32 %v376, 1.442695
    %v378 = vpow.pop %v377
    %v379 = vadd.f32 %v378, 1.0
    %v380 = vrcp.pop %v379
    %v381 = vmul.f32 1.0, %v380
    %v382 = vtanh.pop %v298
    %v383 = vmul.f32 %v381, %v203
    %385 = vrot.lane.b32.xlu0 %v382, 64
    %v386 = vpop.permute.xlu0 %385
    %v388 = vmul.f32 %v381, %v386
    %390 = vrot.lane.b32.xlu0 %v388, 32
    %v391 = vpop.permute.xlu0 %390
    %v393 = vadd.f32 %v383, %v391
    %v394 = vtanh.pop %v393
    %396 = vrot.lane.b32.xlu0 %v394, 64
    %v397 = vpop.permute.xlu0 %396
    %v399 = vmul.f32 %v381, %v397
    %v400 = vxor.u32 %v375, 2147483648
    %v401 = vmul.f32 %v400, 1.442695
    %v402 = vpow.pop %v401
    %v403 = vadd.f32 %v402, 1.0
    %v404 = vrcp.pop %v403
    %v405 = vmul.f32 1.0, %v404
    %v406 = vtanh.pop %v375
    %v407 = vmul.f32 %v405, %v205
    %409 = vrot.lane.b32.xlu0 %v406, 64
    %v410 = vpop.permute.xlu0 %409
    %v412 = vmul.f32 %v405, %v410
    %414 = vrot.lane.b32.xlu0 %v412, 32
    %v415 = vpop.permute.xlu0 %414
    %v417 = vadd.f32 %v407, %v415
    %v418 = vtanh.pop %v417
    %420 = vrot.lane.b32.xlu0 %v418, 64
    %v421 = vpop.permute.xlu0 %420
    %v423 = vmul.f32 %v405, %v421
    %425 = vrot.lane.b32.xlu0 %v399, 32
    %v426 = vpop.permute.xlu0 %425
    %s428 = scalar_lea.vmem %s5, %s206
    %429 = vst.msk [vmem:[%s428] sm:$0xff] %vm225, %v426
    %431 = vrot.lane.b32.xlu0 %v423, 64
    %v432 = vpop.permute.xlu0 %431
    %s434 = scalar_lea.vmem %s5, %s208
    %vm435 = vcmask 523520
    %436 = vst.msk [vmem:[%s434] sm:$0xff] %vm435, %v432
  $region26: #{_lambda_.2} parent=0 // loop_footer
    %s201 = sadd.s32 1, %s197
  $region27: #{_lambda_.2} parent=0 // loop_footer_branch
    %196 = sbr.rel target = $region23
  $region28: #{_lambda_.2} parent=0 // loop_exit
    _
  // Predicated region
  $region29: #{_lambda_.2} parent=0 // pred_check
    _
  $region30: #{_lambda_.2} parent=0 // pred_check_branch
    %438 = sbr.rel (0) target = $region32
  $region31: #{_lambda_.2} parent=0 // pred_region
    _
  $region32: #{_lambda_.2} parent=0 // pred_fallthru
    _
  // Predicated region
  $region33: #{_lambda_.2} parent=0 // pred_check
    _
  $region34: #{_lambda_.2} parent=0 // pred_check_branch
    %440 = sbr.rel (0) target = $region36
  $region35: #{_lambda_.2} parent=0 // pred_region
    _
  $region36: #{_lambda_.2} parent=0 // pred_fallthru
    _

// kernel: _lambda_.3
$region0: #{_lambda_.3}
  #allocation0 [shape = 'u32[]', space=smem, size = 0x4, offset = 0x4, fixed_abs, tag = 'smem constant byte address 0x4 - core index']
  #allocation1 [shape = 'u32[144,128]{1,0:T(1,128)}', space=vmem, size = 0x12000, scoped, tag = 'internal scratch']
  #allocation2 [shape = 'f32[64,256]{1,0:T(8,128)}', space=vmem, size = 0x10000, scoped, tag = 'scratch operand']
  %s0 = inlined_call_operand.vmem [shape: f32[64,64], index: 0, kind: input, shape index: {}]
  %s1 = inlined_call_operand.vmem [shape: f32[64,256], index: 1, kind: input, shape index: {}]
  %s2 = inlined_call_operand.vmem [shape: f32[32,128], index: 2, kind: input, shape index: {}]
  %s3 = inlined_call_operand.vmem [shape: f32[32,128], index: 3, kind: input, shape index: {}]
  %s4 = inlined_call_operand.vmem [shape: f32[8,256], index: 4, kind: input, shape index: {}]
  %s5 = inlined_call_operand.hbm [shape: f32[576,10], index: 5, kind: input, shape index: {}]
  %s6 = inlined_call_operand.vmem [shape: f32[90,5], index: 6, kind: input, shape index: {}]
  %s7 = inlined_call_operand.vmem [shape: f32[8,5], index: 7, kind: output, shape index: {}]
  %s8 = sld [smem:[#allocation0]]
  $region49: #{_lambda_.3} parent=0
    _
  %s10 = ssub.s32 1, %s8
  %s11 = scalar_select 0, %s10, %s8
  $region1: #{_lambda_.3} parent=0
    #allocation3 [shape = 'u8[294912]{0}', space=vmem, size = 0x48000, scoped, tag = 'input window, operand 5, single buffered']
    #allocation4 [shape = 's32[1]{0}', space=sflag, size = 0x4, scoped, tag = 'scoped memory for _lambda_.3']
    %12 = vsyncpa [#allocation4], 0
    // Predicated region
    $region2: #{_lambda_.3} parent=1 // pred_check
      _
    $region3: #{_lambda_.3} parent=1 // pred_check_branch
      %14 = sbr.rel (0) target = $region5
    $region4: #{_lambda_.3} parent=1 // pred_region
      _
    $region5: #{_lambda_.3} parent=1 // pred_fallthru
      _
    // Predicated region
    $region6: #{_lambda_.3} parent=1 // pred_check
      _
    $region7: #{_lambda_.3} parent=1 // pred_check_branch
      %16 = sbr.rel (0) target = $region9
    $region8: #{_lambda_.3} parent=1 // pred_region
      _
    $region9: #{_lambda_.3} parent=1 // pred_fallthru
      _
    // Predicated region
    $region10: #{_lambda_.3} parent=1 // pred_check
      _
    $region11: #{_lambda_.3} parent=1 // pred_check_branch
      %18 = sbr.rel (0) target = $region13
    $region12: #{_lambda_.3} parent=1 // pred_region
      _
    $region13: #{_lambda_.3} parent=1 // pred_fallthru
      _
    // Predicated region
    $region14: #{_lambda_.3} parent=1 // pred_check
      _
    $region15: #{_lambda_.3} parent=1 // pred_check_branch
      %20 = sbr.rel (0) target = $region17
    $region16: #{_lambda_.3} parent=1 // pred_region
      _
    $region17: #{_lambda_.3} parent=1 // pred_fallthru
      _
    // Predicated region
    $region18: #{_lambda_.3} parent=1 // pred_check
      _
    $region19: #{_lambda_.3} parent=1 // pred_check_branch
      %22 = sbr.rel (0) target = $region21
    $region20: #{_lambda_.3} parent=1 // pred_region
      _
    $region21: #{_lambda_.3} parent=1 // pred_fallthru
      _
    // Predicated region
    $region22: #{_lambda_.3} parent=1 // pred_check
      _
    $region23: #{_lambda_.3} parent=1 // pred_check_branch
      %24 = sbr.rel (0) target = $region25
    $region24: #{_lambda_.3} parent=1 // pred_region
      %s26 = ssub.s32 9216, 9216
      %27 = vsyncadd [#allocation4], %s26
      %s28 = sshll.u32 [#allocation3], 4
      %s29 = int_to_ptr.vmem [resolvable:$true] %s28
      %34 = dma.hbm_to_vmem [thread:$0]  %s5, 9216, %s29, [#allocation4], 128, 128, 8
    $region25: #{_lambda_.3} parent=1 // pred_fallthru
      _
    // Predicated region
    $region26: #{_lambda_.3} parent=1 // pred_check
      _
    $region27: #{_lambda_.3} parent=1 // pred_check_branch
      %36 = sbr.rel (0) target = $region29
    $region28: #{_lambda_.3} parent=1 // pred_region
      _
    $region29: #{_lambda_.3} parent=1 // pred_fallthru
      _
    // Predicated region
    $region30: #{_lambda_.3} parent=1 // pred_check
      _
    $region31: #{_lambda_.3} parent=1 // pred_check_branch
      %38 = sbr.rel (0) target = $region33
    $region32: #{_lambda_.3} parent=1 // pred_region
      %39 = dma.done [#allocation4], 9216
    $region33: #{_lambda_.3} parent=1 // pred_fallthru
      _
    %v40 = vld [vmem:[%s0] sm:$0xff]
    %v41 = vld [vmem:[%s0 + $0x8] sm:$0xff]
    %v42 = vld [vmem:[%s0 + $0x10] sm:$0xff]
    %v43 = vld [vmem:[%s0 + $0x18] sm:$0xff]
    %v44 = vld [vmem:[%s0 + $0x20] sm:$0xff]
    %v45 = vld [vmem:[%s0 + $0x28] sm:$0xff]
    %v46 = vld [vmem:[%s0 + $0x30] sm:$0xff]
    %v47 = vld [vmem:[%s0 + $0x38] sm:$0xff]
    %v48 = vld [vmem:[%s1] sm:$0xff]
    %v49 = vld [vmem:[%s1 + $0x8] sm:$0xff]
    %v50 = vld [vmem:[%s1 + $0x10] sm:$0xff]
    %v51 = vld [vmem:[%s1 + $0x18] sm:$0xff]
    %v52 = vld [vmem:[%s1 + $0x20] sm:$0xff]
    %v53 = vld [vmem:[%s1 + $0x28] sm:$0xff]
    %v54 = vld [vmem:[%s1 + $0x30] sm:$0xff]
    %v55 = vld [vmem:[%s1 + $0x38] sm:$0xff]
    %v56 = vld [vmem:[%s1 + $0x40] sm:$0xff]
    %v57 = vld [vmem:[%s1 + $0x48] sm:$0xff]
    %v58 = vld [vmem:[%s1 + $0x50] sm:$0xff]
    %v59 = vld [vmem:[%s1 + $0x58] sm:$0xff]
    %v60 = vld [vmem:[%s1 + $0x60] sm:$0xff]
    %v61 = vld [vmem:[%s1 + $0x68] sm:$0xff]
    %v62 = vld [vmem:[%s1 + $0x70] sm:$0xff]
    %v63 = vld [vmem:[%s1 + $0x78] sm:$0xff]
    %vm64 = vcmask 523264
    %v66 = vsel %vm64, %v40, 0
    %v69 = vsel %vm64, %v41, 0
    %v72 = vsel %vm64, %v42, 0
    %v75 = vsel %vm64, %v43, 0
    %v78 = vsel %vm64, %v44, 0
    %v81 = vsel %vm64, %v45, 0
    %v84 = vsel %vm64, %v46, 0
    %v87 = vsel %vm64, %v47, 0
    %89 = vmatprep.subr.mxu0 %v49
    %90 = vmatpush1.msra.mxu0 %v48
    %91 = vmatprep.subr.mxu0 %v51
    %92 = vmatpush1.msra.mxu0 %v50
    %93 = vmatprep.subr.mxu0 %v53
    %94 = vmatpush1.msra.mxu0 %v52
    %95 = vmatprep.subr.mxu0 %v55
    %96 = vmatpush1.msra.mxu0 %v54
    %97 = vmatprep.subr.mxu0 %v57
    %98 = vmatpush1.msra.mxu0 %v56
    %99 = vmatprep.subr.mxu0 %v59
    %100 = vmatpush1.msra.mxu0 %v58
    %101 = vmatprep.subr.mxu0 %v61
    %102 = vmatpush1.msra.mxu0 %v60
    %103 = vmatprep.subr.mxu0 %v63
    %104 = vmatpush1.msra.mxu0 %v62
    %105 = vmatprep.subr.mxu0 0.0
    %106 = vmatpush1.msra.mxu0 0.0
    %107 = vmatprep.subr.mxu0 0.0
    %108 = vmatpush1.msra.mxu0 0.0
    %109 = vmatprep.subr.mxu0 0.0
    %110 = vmatpush1.msra.mxu0 0.0
    %111 = vmatprep.subr.mxu0 0.0
    %112 = vmatpush1.msra.mxu0 0.0
    %113 = vmatprep.subr.mxu0 0.0
    %114 = vmatpush1.msra.mxu0 0.0
    %115 = vmatprep.subr.mxu0 0.0
    %116 = vmatpush1.msra.mxu0 0.0
    %117 = vmatprep.subr.mxu0 0.0
    %118 = vmatpush1.msra.mxu0 0.0
    %119 = vmatprep.subr.mxu0 0.0
    %120 = vmatpush1.msra.mxu0 0.0
    %121 = vmatprep.subr.mxu0 0.0
    %122 = vmatpush1.msra.mxu0 0.0
    %123 = vmatprep.subr.mxu0 0.0
    %124 = vmatpush1.msra.mxu0 0.0
    %125 = vmatprep.subr.mxu0 0.0
    %126 = vmatpush1.msra.mxu0 0.0
    %127 = vmatprep.subr.mxu0 0.0
    %128 = vmatpush1.msra.mxu0 0.0
    %129 = vmatprep.subr.mxu0 0.0
    %130 = vmatpush1.msra.mxu0 0.0
    %131 = vmatprep.subr.mxu0 0.0
    %132 = vmatpush1.msra.mxu0 0.0
    %133 = vmatprep.subr.mxu0 0.0
    %134 = vmatpush1.msra.mxu0 0.0
    %135 = vmatprep.subr.mxu0 0.0
    %136 = vmatpush1.msra.mxu0 0.0
    %137 = vmatprep.subr.mxu0 0.0
    %138 = vmatpush1.msra.mxu0 0.0
    %139 = vmatprep.subr.mxu0 0.0
    %140 = vmatpush1.msra.mxu0 0.0
    %141 = vmatprep.subr.mxu0 0.0
    %142 = vmatpush1.msra.mxu0 0.0
    %143 = vmatprep.subr.mxu0 0.0
    %144 = vmatpush1.msra.mxu0 0.0
    %145 = vmatprep.subr.mxu0 0.0
    %146 = vmatpush1.msra.mxu0 0.0
    %147 = vmatprep.subr.mxu0 0.0
    %148 = vmatpush1.msra.mxu0 0.0
    %149 = vmatprep.subr.mxu0 0.0
    %150 = vmatpush1.msra.mxu0 0.0
    %151 = vmatprep.subr.mxu0 0.0
    %152 = vmatpush1.msra.mxu0 0.0
    %153 = vmatprep.mubr.f32.mxu0 0.0
    %154 = vmatmul.mubr.f32.gmra.mrb[0].mxu0 %v66
    %v155 = vpop.f32.mrb[0].mxu0
    %v156 = vadd.f32 0.0, %v155
    %v157 = vpop.f32.mrb[0].mxu0
    %v158 = vadd.f32 0.0, %v157
    %159 = vmatprep.mubr.f32.mxu0 0.0
    %160 = vmatmul.mubr.f32.gmra.mrb[0].mxu0 %v69
    %v161 = vpop.f32.mrb[0].mxu0
    %v162 = vadd.f32 0.0, %v161
    %v163 = vpop.f32.mrb[0].mxu0
    %v164 = vadd.f32 0.0, %v163
    %165 = vmatprep.mubr.f32.mxu0 0.0
    %166 = vmatmul.mubr.f32.gmra.mrb[0].mxu0 %v72
    %v167 = vpop.f32.mrb[0].mxu0
    %v168 = vadd.f32 0.0, %v167
    %v169 = vpop.f32.mrb[0].mxu0
    %v170 = vadd.f32 0.0, %v169
    %171 = vmatprep.mubr.f32.mxu0 0.0
    %172 = vmatmul.mubr.f32.gmra.mrb[0].mxu0 %v75
    %v173 = vpop.f32.mrb[0].mxu0
    %v174 = vadd.f32 0.0, %v173
    %v175 = vpop.f32.mrb[0].mxu0
    %v176 = vadd.f32 0.0, %v175
    %177 = vmatprep.mubr.f32.mxu0 0.0
    %178 = vmatmul.mubr.f32.gmra.mrb[0].mxu0 %v78
    %v179 = vpop.f32.mrb[0].mxu0
    %v180 = vadd.f32 0.0, %v179
    %v181 = vpop.f32.mrb[0].mxu0
    %v182 = vadd.f32 0.0, %v181
    %183 = vmatprep.mubr.f32.mxu0 0.0
    %184 = vmatmul.mubr.f32.gmra.mrb[0].mxu0 %v81
    %v185 = vpop.f32.mrb[0].mxu0
    %v186 = vadd.f32 0.0, %v185
    %v187 = vpop.f32.mrb[0].mxu0
    %v188 = vadd.f32 0.0, %v187
    %189 = vmatprep.mubr.f32.mxu0 0.0
    %190 = vmatmul.mubr.f32.gmra.mrb[0].mxu0 %v84
    %v191 = vpop.f32.mrb[0].mxu0
    %v192 = vadd.f32 0.0, %v191
    %v193 = vpop.f32.mrb[0].mxu0
    %v194 = vadd.f32 0.0, %v193
    %195 = vmatprep.mubr.f32.mxu0 0.0
    %196 = vmatmul.mubr.f32.gmra.mrb[0].mxu0 %v87
    %v197 = vpop.f32.mrb[0].mxu0
    %v198 = vadd.f32 0.0, %v197
    %v199 = vpop.f32.mrb[0].mxu0
    %v200 = vadd.f32 0.0, %v199
    %201 = vdwg.mxu0
    %202 = vst [vmem:[#allocation2] sm:$0xff] %v156
    %203 = vst [vmem:[#allocation2 + $0x8] sm:$0xff] %v158
    %204 = vst [vmem:[#allocation2 + $0x10] sm:$0xff] %v162
    %205 = vst [vmem:[#allocation2 + $0x18] sm:$0xff] %v164
    %206 = vst [vmem:[#allocation2 + $0x20] sm:$0xff] %v168
    %207 = vst [vmem:[#allocation2 + $0x28] sm:$0xff] %v170
    %208 = vst [vmem:[#allocation2 + $0x30] sm:$0xff] %v174
    %209 = vst [vmem:[#allocation2 + $0x38] sm:$0xff] %v176
    %210 = vst [vmem:[#allocation2 + $0x40] sm:$0xff] %v180
    %211 = vst [vmem:[#allocation2 + $0x48] sm:$0xff] %v182
    %212 = vst [vmem:[#allocation2 + $0x50] sm:$0xff] %v186
    %213 = vst [vmem:[#allocation2 + $0x58] sm:$0xff] %v188
    %214 = vst [vmem:[#allocation2 + $0x60] sm:$0xff] %v192
    %215 = vst [vmem:[#allocation2 + $0x68] sm:$0xff] %v194
    %216 = vst [vmem:[#allocation2 + $0x70] sm:$0xff] %v198
    %217 = vst [vmem:[#allocation2 + $0x78] sm:$0xff] %v200
    %v218 = vld [vmem:[%s4] sm:$0xff]
    %v219 = vld [vmem:[%s4 + $0x8] sm:$0xff]
    %v220 = vld [vmem:[%s2] sm:$0xff]
    %v221 = vld [vmem:[%s2 + $0x8] sm:$0xff]
    %v222 = vld [vmem:[%s2 + $0x10] sm:$0xff]
    %v223 = vld [vmem:[%s2 + $0x18] sm:$0xff]
    %v224 = vld [vmem:[%s3] sm:$0xff]
    %v225 = vld [vmem:[%s3 + $0x8] sm:$0xff]
    %v226 = vld [vmem:[%s3 + $0x10] sm:$0xff]
    %v227 = vld [vmem:[%s3 + $0x18] sm:$0xff]
    loop: start=0, step=1, limit=8
    $region34: #{_lambda_.3} parent=1 // loop_pre_header
      _
    $region35: #{_lambda_.3} parent=1 // loop_header
      %s229 = sphi 0, %s233
      %p230 = scmp.ge.s32.totalorder %s229, 8
      %v234 = vphi 0.0, %v432
      %v235 = vphi 0.0, %v426
      %v236 = vphi 0.0, %v456
      %v237 = vphi 0.0, %v450
      %v238 = vphi 0.0, %v461
    $region36: #{_lambda_.3} parent=1 // loop_header_branch
      %232 = sbr.rel (%p230) target = $region40
    $region37: #{_lambda_.3} parent=1 // loop_body
      %s239 = smul.u32 %s229, 8
      %s240 = ssub.s32 7, %s229
      %s241 = smul.u32 %s240, 8
      %s242 = sshra.s32 %s239, 3
      %s243 = sand.u32 %s239, 7
      %s244 = smul.u32 %s242, 2
      %s245 = smul.addr %s244, 8
      %s246 = scalar_lea.vmem [#allocation2], %s245
      %v247 = vld [vmem:[%s246] sm:$0xff]
      %s248 = sshra.s32 %s241, 3
      %s249 = sand.u32 %s241, 7
      %s250 = smul.u32 %s248, 2
      %s251 = smul.addr %s250, 8
      %s252 = scalar_lea.vmem [#allocation2], %s251
      %v253 = vld [vmem:[%s252 + $0x8] sm:$0xff]
      %v254 = vadd.f32 %v247, %v218
      %256 = vrot.lane.b32.xlu0 %v234, 32
      %v257 = vpop.permute.xlu0 %256
      %vm258 = vcmask 261120
      %v259 = vsel %vm258, %v257, 0
      %261 = vmatprep.subr.mxu0 0.0
      %262 = vmatpush1.msra.mxu0 %v220
      %263 = vmatprep.subr.mxu0 0.0
      %264 = vmatpush1.msra.mxu0 %v221
      %265 = vmatprep.subr.mxu0 0.0
      %266 = vmatpush1.msra.mxu0 %v222
      %267 = vmatprep.subr.mxu0 0.0
      %268 = vmatpush1.msra.mxu0 %v223
      %269 = vmatprep.subr.mxu0 0.0
      %270 = vmatpush1.msra.mxu0 0.0
      %271 = vmatprep.subr.mxu0 0.0
      %272 = vmatpush1.msra.mxu0 0.0
      %273 = vmatprep.subr.mxu0 0.0
      %274 = vmatpush1.msra.mxu0 0.0
      %275 = vmatprep.subr.mxu0 0.0
      %276 = vmatpush1.msra.mxu0 0.0
      %277 = vmatprep.subr.mxu0 0.0
      %278 = vmatpush1.msra.mxu0 0.0
      %279 = vmatprep.subr.mxu0 0.0
      %280 = vmatpush1.msra.mxu0 0.0
      %281 = vmatprep.subr.mxu0 0.0
      %282 = vmatpush1.msra.mxu0 0.0
      %283 = vmatprep.subr.mxu0 0.0
      %284 = vmatpush1.msra.mxu0 0.0
      %285 = vmatprep.subr.mxu0 0.0
      %286 = vmatpush1.msra.mxu0 0.0
      %287 = vmatprep.subr.mxu0 0.0
      %288 = vmatpush1.msra.mxu0 0.0
      %289 = vmatprep.subr.mxu0 0.0
      %290 = vmatpush1.msra.mxu0 0.0
      %291 = vmatprep.subr.mxu0 0.0
      %292 = vmatpush1.msra.mxu0 0.0
      %293 = vmatprep.subr.mxu0 0.0
      %294 = vmatpush1.msra.mxu0 0.0
      %295 = vmatprep.subr.mxu0 0.0
      %296 = vmatpush1.msra.mxu0 0.0
      %297 = vmatprep.subr.mxu0 0.0
      %298 = vmatpush1.msra.mxu0 0.0
      %299 = vmatprep.subr.mxu0 0.0
      %300 = vmatpush1.msra.mxu0 0.0
      %301 = vmatprep.subr.mxu0 0.0
      %302 = vmatpush1.msra.mxu0 0.0
      %303 = vmatprep.subr.mxu0 0.0
      %304 = vmatpush1.msra.mxu0 0.0
      %305 = vmatprep.subr.mxu0 0.0
      %306 = vmatpush1.msra.mxu0 0.0
      %307 = vmatprep.subr.mxu0 0.0
      %308 = vmatpush1.msra.mxu0 0.0
      %309 = vmatprep.subr.mxu0 0.0
      %310 = vmatpush1.msra.mxu0 0.0
      %311 = vmatprep.subr.mxu0 0.0
      %312 = vmatpush1.msra.mxu0 0.0
      %313 = vmatprep.subr.mxu0 0.0
      %314 = vmatpush1.msra.mxu0 0.0
      %315 = vmatprep.subr.mxu0 0.0
      %316 = vmatpush1.msra.mxu0 0.0
      %317 = vmatprep.subr.mxu0 0.0
      %318 = vmatpush1.msra.mxu0 0.0
      %319 = vmatprep.subr.mxu0 0.0
      %320 = vmatpush1.msra.mxu0 0.0
      %321 = vmatprep.subr.mxu0 0.0
      %322 = vmatpush1.msra.mxu0 0.0
      %323 = vmatprep.subr.mxu0 0.0
      %324 = vmatpush1.msra.mxu0 0.0
      %325 = vmatprep.mubr.f32.mxu0 0.0
      %326 = vmatmul.mubr.f32.gmra.mrb[0].mxu0 %v259
      %v327 = vpop.f32.mrb[0].mxu0
      %v328 = vadd.f32 0.0, %v327
      %v329 = vpop.f32.mrb[0].mxu0
      %330 = vdwg.mxu0
      %v331 = vadd.f32 %v254, %v328
      %v332 = vadd.f32 %v253, %v219
      %334 = vrot.lane.b32.xlu0 %v236, 32
      %v335 = vpop.permute.xlu0 %334
      %v336 = vsel %vm258, %v335, 0
      %338 = vmatprep.subr.mxu0 0.0
      %339 = vmatpush1.msra.mxu0 %v224
      %340 = vmatprep.subr.mxu0 0.0
      %341 = vmatpush1.msra.mxu0 %v225
      %342 = vmatprep.subr.mxu0 0.0
      %343 = vmatpush1.msra.mxu0 %v226
      %344 = vmatprep.subr.mxu0 0.0
      %345 = vmatpush1.msra.mxu0 %v227
      %346 = vmatprep.subr.mxu0 0.0
      %347 = vmatpush1.msra.mxu0 0.0
      %348 = vmatprep.subr.mxu0 0.0
      %349 = vmatpush1.msra.mxu0 0.0
      %350 = vmatprep.subr.mxu0 0.0
      %351 = vmatpush1.msra.mxu0 0.0
      %352 = vmatprep.subr.mxu0 0.0
      %353 = vmatpush1.msra.mxu0 0.0
      %354 = vmatprep.subr.mxu0 0.0
      %355 = vmatpush1.msra.mxu0 0.0
      %356 = vmatprep.subr.mxu0 0.0
      %357 = vmatpush1.msra.mxu0 0.0
      %358 = vmatprep.subr.mxu0 0.0
      %359 = vmatpush1.msra.mxu0 0.0
      %360 = vmatprep.subr.mxu0 0.0
      %361 = vmatpush1.msra.mxu0 0.0
      %362 = vmatprep.subr.mxu0 0.0
      %363 = vmatpush1.msra.mxu0 0.0
      %364 = vmatprep.subr.mxu0 0.0
      %365 = vmatpush1.msra.mxu0 0.0
      %366 = vmatprep.subr.mxu0 0.0
      %367 = vmatpush1.msra.mxu0 0.0
      %368 = vmatprep.subr.mxu0 0.0
      %369 = vmatpush1.msra.mxu0 0.0
      %370 = vmatprep.subr.mxu0 0.0
      %371 = vmatpush1.msra.mxu0 0.0
      %372 = vmatprep.subr.mxu0 0.0
      %373 = vmatpush1.msra.mxu0 0.0
      %374 = vmatprep.subr.mxu0 0.0
      %375 = vmatpush1.msra.mxu0 0.0
      %376 = vmatprep.subr.mxu0 0.0
      %377 = vmatpush1.msra.mxu0 0.0
      %378 = vmatprep.subr.mxu0 0.0
      %379 = vmatpush1.msra.mxu0 0.0
      %380 = vmatprep.subr.mxu0 0.0
      %381 = vmatpush1.msra.mxu0 0.0
      %382 = vmatprep.subr.mxu0 0.0
      %383 = vmatpush1.msra.mxu0 0.0
      %384 = vmatprep.subr.mxu0 0.0
      %385 = vmatpush1.msra.mxu0 0.0
      %386 = vmatprep.subr.mxu0 0.0
      %387 = vmatpush1.msra.mxu0 0.0
      %388 = vmatprep.subr.mxu0 0.0
      %389 = vmatpush1.msra.mxu0 0.0
      %390 = vmatprep.subr.mxu0 0.0
      %391 = vmatpush1.msra.mxu0 0.0
      %392 = vmatprep.subr.mxu0 0.0
      %393 = vmatpush1.msra.mxu0 0.0
      %394 = vmatprep.subr.mxu0 0.0
      %395 = vmatpush1.msra.mxu0 0.0
      %396 = vmatprep.subr.mxu0 0.0
      %397 = vmatpush1.msra.mxu0 0.0
      %398 = vmatprep.subr.mxu0 0.0
      %399 = vmatpush1.msra.mxu0 0.0
      %400 = vmatprep.subr.mxu0 0.0
      %401 = vmatpush1.msra.mxu0 0.0
      %402 = vmatprep.mubr.f32.mxu0 0.0
      %403 = vmatmul.mubr.f32.gmra.mrb[0].mxu0 %v336
      %v404 = vpop.f32.mrb[0].mxu0
      %v405 = vadd.f32 0.0, %v404
      %v406 = vpop.f32.mrb[0].mxu0
      %407 = vdwg.mxu0
      %v408 = vadd.f32 %v332, %v405
      %v409 = vxor.u32 %v331, 2147483648
      %v410 = vmul.f32 %v409, 1.442695
      %v411 = vpow.pop %v410
      %v412 = vadd.f32 %v411, 1.0
      %v413 = vrcp.pop %v412
      %v414 = vmul.f32 1.0, %v413
      %v415 = vtanh.pop %v331
      %v416 = vmul.f32 %v414, %v235
      %418 = vrot.lane.b32.xlu0 %v415, 64
      %v419 = vpop.permute.xlu0 %418
      %v421 = vmul.f32 %v414, %v419
      %423 = vrot.lane.b32.xlu0 %v421, 32
      %v424 = vpop.permute.xlu0 %423
      %v426 = vadd.f32 %v416, %v424
      %v427 = vtanh.pop %v426
      %429 = vrot.lane.b32.xlu0 %v427, 64
      %v430 = vpop.permute.xlu0 %429
      %v432 = vmul.f32 %v414, %v430
      %v433 = vxor.u32 %v408, 2147483648
      %v434 = vmul.f32 %v433, 1.442695
      %v435 = vpow.pop %v434
      %v436 = vadd.f32 %v435, 1.0
      %v437 = vrcp.pop %v436
      %v438 = vmul.f32 1.0, %v437
      %v439 = vtanh.pop %v408
      %v440 = vmul.f32 %v438, %v237
      %442 = vrot.lane.b32.xlu0 %v439, 64
      %v443 = vpop.permute.xlu0 %442
      %v445 = vmul.f32 %v438, %v443
      %447 = vrot.lane.b32.xlu0 %v445, 32
      %v448 = vpop.permute.xlu0 %447
      %v450 = vadd.f32 %v440, %v448
      %v451 = vtanh.pop %v450
      %453 = vrot.lane.b32.xlu0 %v451, 64
      %v454 = vpop.permute.xlu0 %453
      %v456 = vmul.f32 %v438, %v454
      %p457 = scmp.eq.s32.totalorder %s229, 0
      %s458 = scalar_select %p457, 1, 0
      %v459 = vstv %s458
      %vm460 = vcmp.eq.s32.totalorder %v459, 1
      %v461 = vsel %vm460, %v456, %v238
    $region38: #{_lambda_.3} parent=1 // loop_footer
      %s233 = sadd.s32 1, %s229
    $region39: #{_lambda_.3} parent=1 // loop_footer_branch
      %228 = sbr.rel target = $region35
    $region40: #{_lambda_.3} parent=1 // loop_exit
      _
    %463 = vrot.lane.b32.xlu0 %v234, 32
    %v464 = vpop.permute.xlu0 %463
    %467 = vrot.lane.b32.xlu0 %v238, 64
    %v468 = vpop.permute.xlu0 %467
    %vm470 = vcmask 261120
    %v471 = vsel %vm470, %v464, %v468
    %v472 = vld [vmem:[#allocation3] sm:$0xff]
    %v473 = vld [vmem:[#allocation3 + $0x8] sm:$0xff]
    %v474 = vld [vmem:[#allocation3 + $0x10] sm:$0xff]
    %v475 = vld [vmem:[#allocation3 + $0x18] sm:$0xff]
    %v476 = vld [vmem:[#allocation3 + $0x20] sm:$0xff]
    %v477 = vld [vmem:[#allocation3 + $0x28] sm:$0xff]
    %v478 = vld [vmem:[#allocation3 + $0x30] sm:$0xff]
    %v479 = vld [vmem:[#allocation3 + $0x38] sm:$0xff]
    %v480 = vld [vmem:[#allocation3 + $0x40] sm:$0xff]
    %v481 = vld [vmem:[#allocation3 + $0x48] sm:$0xff]
    %v482 = vld [vmem:[#allocation3 + $0x50] sm:$0xff]
    %v483 = vld [vmem:[#allocation3 + $0x58] sm:$0xff]
    %v484 = vld [vmem:[#allocation3 + $0x60] sm:$0xff]
    %v485 = vld [vmem:[#allocation3 + $0x68] sm:$0xff]
    %v486 = vld [vmem:[#allocation3 + $0x70] sm:$0xff]
    %v487 = vld [vmem:[#allocation3 + $0x78] sm:$0xff]
    %v488 = vld [vmem:[#allocation3 + $0x80] sm:$0xff]
    %v489 = vld [vmem:[#allocation3 + $0x88] sm:$0xff]
    %v490 = vld [vmem:[#allocation3 + $0x90] sm:$0xff]
    %v491 = vld [vmem:[#allocation3 + $0x98] sm:$0xff]
    %v492 = vld [vmem:[#allocation3 + $0xa0] sm:$0xff]
    %v493 = vld [vmem:[#allocation3 + $0xa8] sm:$0xff]
    %v494 = vld [vmem:[#allocation3 + $0xb0] sm:$0xff]
    %v495 = vld [vmem:[#allocation3 + $0xb8] sm:$0xff]
    %v496 = vld [vmem:[#allocation3 + $0xc0] sm:$0xff]
    %v497 = vld [vmem:[#allocation3 + $0xc8] sm:$0xff]
    %v498 = vld [vmem:[#allocation3 + $0xd0] sm:$0xff]
    %v499 = vld [vmem:[#allocation3 + $0xd8] sm:$0xff]
    %v500 = vld [vmem:[#allocation3 + $0xe0] sm:$0xff]
    %v501 = vld [vmem:[#allocation3 + $0xe8] sm:$0xff]
    %v502 = vld [vmem:[#allocation3 + $0xf0] sm:$0xff]
    %v503 = vld [vmem:[#allocation3 + $0xf8] sm:$0xff]
    %v504 = vld [vmem:[#allocation3 + $0x100] sm:$0xff]
    %v505 = vld [vmem:[#allocation3 + $0x108] sm:$0xff]
    %v506 = vld [vmem:[#allocation3 + $0x110] sm:$0xff]
    %v507 = vld [vmem:[#allocation3 + $0x118] sm:$0xff]
    %v508 = vld [vmem:[#allocation3 + $0x120] sm:$0xff]
    %v509 = vld [vmem:[#allocation3 + $0x128] sm:$0xff]
    %v510 = vld [vmem:[#allocation3 + $0x130] sm:$0xff]
    %v511 = vld [vmem:[#allocation3 + $0x138] sm:$0xff]
    %v512 = vld [vmem:[#allocation3 + $0x140] sm:$0xff]
    %v513 = vld [vmem:[#allocation3 + $0x148] sm:$0xff]
    %v514 = vld [vmem:[#allocation3 + $0x150] sm:$0xff]
    %v515 = vld [vmem:[#allocation3 + $0x158] sm:$0xff]
    %v516 = vld [vmem:[#allocation3 + $0x160] sm:$0xff]
    %v517 = vld [vmem:[#allocation3 + $0x168] sm:$0xff]
    %v518 = vld [vmem:[#allocation3 + $0x170] sm:$0xff]
    %v519 = vld [vmem:[#allocation3 + $0x178] sm:$0xff]
    %v520 = vld [vmem:[#allocation3 + $0x180] sm:$0xff]
    %v521 = vld [vmem:[#allocation3 + $0x188] sm:$0xff]
    %v522 = vld [vmem:[#allocation3 + $0x190] sm:$0xff]
    %v523 = vld [vmem:[#allocation3 + $0x198] sm:$0xff]
    %v524 = vld [vmem:[#allocation3 + $0x1a0] sm:$0xff]
    %v525 = vld [vmem:[#allocation3 + $0x1a8] sm:$0xff]
    %v526 = vld [vmem:[#allocation3 + $0x1b0] sm:$0xff]
    %v527 = vld [vmem:[#allocation3 + $0x1b8] sm:$0xff]
    %v528 = vld [vmem:[#allocation3 + $0x1c0] sm:$0xff]
    %v529 = vld [vmem:[#allocation3 + $0x1c8] sm:$0xff]
    %v530 = vld [vmem:[#allocation3 + $0x1d0] sm:$0xff]
    %v531 = vld [vmem:[#allocation3 + $0x1d8] sm:$0xff]
    %v532 = vld [vmem:[#allocation3 + $0x1e0] sm:$0xff]
    %v533 = vld [vmem:[#allocation3 + $0x1e8] sm:$0xff]
    %v534 = vld [vmem:[#allocation3 + $0x1f0] sm:$0xff]
    %v535 = vld [vmem:[#allocation3 + $0x1f8] sm:$0xff]
    %v536 = vld [vmem:[#allocation3 + $0x200] sm:$0xff]
    %v537 = vld [vmem:[#allocation3 + $0x208] sm:$0xff]
    %v538 = vld [vmem:[#allocation3 + $0x210] sm:$0xff]
    %v539 = vld [vmem:[#allocation3 + $0x218] sm:$0xff]
    %v540 = vld [vmem:[#allocation3 + $0x220] sm:$0xff]
    %v541 = vld [vmem:[#allocation3 + $0x228] sm:$0xff]
    %v542 = vld [vmem:[#allocation3 + $0x230] sm:$0xff]
    %v543 = vld [vmem:[#allocation3 + $0x238] sm:$0xff]
    %vm544 = vcmp.ge.f32.partialorder %v471, -2.2
    %vm545 = vcmp.lt.f32.partialorder %v471, -1.8
    %vm546 = vmand %vm544, %vm545
    %v547 = vsel %vm546, 1, 0
    %v548 = vcvt.s32.f32 %v547
    %vm549 = vcmp.ge.f32.partialorder %v471, -1.8
    %vm550 = vcmp.lt.f32.partialorder %v471, -1.4
    %vm551 = vmand %vm549, %vm550
    %v552 = vsel %vm551, 1, 0
    %v553 = vcvt.s32.f32 %v552
    %vm554 = vcmp.ge.f32.partialorder %v471, -1.4
    %vm555 = vcmp.lt.f32.partialorder %v471, -1.0
    %vm556 = vmand %vm554, %vm555
    %v557 = vsel %vm556, 1, 0
    %v558 = vcvt.s32.f32 %v557
    %vm559 = vcmp.ge.f32.partialorder %v471, -1.0
    %vm560 = vcmp.lt.f32.partialorder %v471, -0.6
    %vm561 = vmand %vm559, %vm560
    %v562 = vsel %vm561, 1, 0
    %v563 = vcvt.s32.f32 %v562
    %vm564 = vcmp.ge.f32.partialorder %v471, -0.6
    %vm565 = vcmp.lt.f32.partialorder %v471, -0.2
    %vm566 = vmand %vm564, %vm565
    %v567 = vsel %vm566, 1, 0
    %v568 = vcvt.s32.f32 %v567
    %vm569 = vcmp.ge.f32.partialorder %v471, -0.2
    %vm570 = vcmp.lt.f32.partialorder %v471, 0.2
    %vm571 = vmand %vm569, %vm570
    %v572 = vsel %vm571, 1, 0
    %v573 = vcvt.s32.f32 %v572
    %vm574 = vcmp.ge.f32.partialorder %v471, 0.2
    %vm575 = vcmp.lt.f32.partialorder %v471, 0.6
    %vm576 = vmand %vm574, %vm575
    %v577 = vsel %vm576, 1, 0
    %v578 = vcvt.s32.f32 %v577
    %vm579 = vcmp.ge.f32.partialorder %v471, 0.6
    %vm580 = vcmp.lt.f32.partialorder %v471, 1.0
    %vm581 = vmand %vm579, %vm580
    %v582 = vsel %vm581, 1, 0
    %v583 = vcvt.s32.f32 %v582
    %vm584 = vcmp.ge.f32.partialorder %v471, 1.0
    %vm585 = vcmp.lt.f32.partialorder %v471, 1.4
    %vm586 = vmand %vm584, %vm585
    %v587 = vsel %vm586, 1, 0
    %v588 = vcvt.s32.f32 %v587
    %vm589 = vcmp.ge.f32.partialorder %v471, 1.4
    %vm590 = vcmp.lt.f32.partialorder %v471, 1.8
    %vm591 = vmand %vm589, %vm590
    %v592 = vsel %vm591, 1, 0
    %v593 = vcvt.s32.f32 %v592
    %vm594 = vcmp.ge.f32.partialorder %v471, 1.8
    %vm595 = vcmp.lt.f32.partialorder %v471, 2.2
    %vm596 = vmand %vm594, %vm595
    %v597 = vsel %vm596, 1, 0
    %v598 = vcvt.s32.f32 %v597
    %v599 = vsub.f32 %v471, -2.2
    %v600 = vmul.f32 %v599, 2.5
    %v601 = vmul.f32 %v600, %v548
    %v602 = vsub.f32 -1.4, %v471
    %v603 = vmul.f32 %v602, 2.5
    %v604 = vmul.f32 %v603, %v553
    %v605 = vadd.f32 %v601, %v604
    %v606 = vsub.f32 %v471, -1.8
    %v607 = vmul.f32 %v606, 2.5
    %v608 = vmul.f32 %v607, %v553
    %v609 = vsub.f32 -1.0, %v471
    %v610 = vmul.f32 %v609, 2.5
    %v611 = vmul.f32 %v610, %v558
    %v612 = vadd.f32 %v608, %v611
    %v613 = vsub.f32 %v471, -1.4
    %v614 = vmul.f32 %v613, 2.5
    %v615 = vmul.f32 %v614, %v558
    %v616 = vsub.f32 -0.6, %v471
    %v617 = vmul.f32 %v616, 2.5
    %v618 = vmul.f32 %v617, %v563
    %v619 = vadd.f32 %v615, %v618
    %v620 = vsub.f32 %v471, -1.0
    %v621 = vmul.f32 %v620, 2.5
    %v622 = vmul.f32 %v621, %v563
    %v623 = vsub.f32 -0.2, %v471
    %v624 = vmul.f32 %v623, 2.5
    %v625 = vmul.f32 %v624, %v568
    %v626 = vadd.f32 %v622, %v625
    %v627 = vsub.f32 %v471, -0.6
    %v628 = vmul.f32 %v627, 2.5
    %v629 = vmul.f32 %v628, %v568
    %v630 = vsub.f32 0.2, %v471
    %v631 = vmul.f32 %v630, 2.5
    %v632 = vmul.f32 %v631, %v573
    %v633 = vadd.f32 %v629, %v632
    %v634 = vsub.f32 %v471, -0.2
    %v635 = vmul.f32 %v634, 2.5
    %v636 = vmul.f32 %v635, %v573
    %v637 = vsub.f32 0.6, %v471
    %v638 = vmul.f32 %v637, 2.5
    %v639 = vmul.f32 %v638, %v578
    %v640 = vadd.f32 %v636, %v639
    %v641 = vsub.f32 %v471, 0.2
    %v642 = vmul.f32 %v641, 2.5
    %v643 = vmul.f32 %v642, %v578
    %v644 = vsub.f32 1.0, %v471
    %v645 = vmul.f32 %v644, 2.5
    %v646 = vmul.f32 %v645, %v583
    %v647 = vadd.f32 %v643, %v646
    %v648 = vsub.f32 %v471, 0.6
    %v649 = vmul.f32 %v648, 2.5
    %v650 = vmul.f32 %v649, %v583
    %v651 = vsub.f32 1.4, %v471
    %v652 = vmul.f32 %v651, 2.5
    %v653 = vmul.f32 %v652, %v588
    %v654 = vadd.f32 %v650, %v653
    %v655 = vsub.f32 %v471, 1.0
    %v656 = vmul.f32 %v655, 2.5
    %v657 = vmul.f32 %v656, %v588
    %v658 = vsub.f32 1.8, %v471
    %v659 = vmul.f32 %v658, 2.5
    %v660 = vmul.f32 %v659, %v593
    %v661 = vadd.f32 %v657, %v660
    %v662 = vsub.f32 %v471, 1.4
    %v663 = vmul.f32 %v662, 2.5
    %v664 = vmul.f32 %v663, %v593
    %v665 = vsub.f32 2.2, %v471
    %v666 = vmul.f32 %v665, 2.5
    %v667 = vmul.f32 %v666, %v598
    %v668 = vadd.f32 %v664, %v667
    %v669 = vmul.f32 %v599, 1.25
    %v670 = vmul.f32 %v669, %v605
    %v671 = vmul.f32 %v609, 1.25
    %v672 = vmul.f32 %v671, %v612
    %v673 = vadd.f32 %v670, %v672
    %v674 = vmul.f32 %v606, 1.25
    %v675 = vmul.f32 %v674, %v612
    %v676 = vmul.f32 %v616, 1.25
    %v677 = vmul.f32 %v676, %v619
    %v678 = vadd.f32 %v675, %v677
    %v679 = vmul.f32 %v613, 1.25
    %v680 = vmul.f32 %v679, %v619
    %v681 = vmul.f32 %v623, 1.25
    %v682 = vmul.f32 %v681, %v626
    %v683 = vadd.f32 %v680, %v682
    %v684 = vmul.f32 %v620, 1.25
    %v685 = vmul.f32 %v684, %v626
    %v686 = vmul.f32 %v630, 1.25
    %v687 = vmul.f32 %v686, %v633
    %v688 = vadd.f32 %v685, %v687
    %v689 = vmul.f32 %v627, 1.25
    %v690 = vmul.f32 %v689, %v633
    %v691 = vmul.f32 %v637, 1.25
    %v692 = vmul.f32 %v691, %v640
    %v693 = vadd.f32 %v690, %v692
    %v694 = vmul.f32 %v634, 1.25
    %v695 = vmul.f32 %v694, %v640
    %v696 = vmul.f32 %v644, 1.25
    %v697 = vmul.f32 %v696, %v647
    %v698 = vadd.f32 %v695, %v697
    %v699 = vmul.f32 %v641, 1.25
    %v700 = vmul.f32 %v699, %v647
    %v701 = vmul.f32 %v651, 1.25
    %v702 = vmul.f32 %v701, %v654
    %v703 = vadd.f32 %v700, %v702
    %v704 = vmul.f32 %v648, 1.25
    %v705 = vmul.f32 %v704, %v654
    %v706 = vmul.f32 %v658, 1.25
    %v707 = vmul.f32 %v706, %v661
    %v708 = vadd.f32 %v705, %v707
    %v709 = vmul.f32 %v655, 1.25
    %v710 = vmul.f32 %v709, %v661
    %v711 = vmul.f32 %v665, 1.25
    %v712 = vmul.f32 %v711, %v668
    %v713 = vadd.f32 %v710, %v712
    %v714 = vmul.f32 %v599, 0.8333333
    %v715 = vmul.f32 %v714, %v673
    %v716 = vmul.f32 %v616, 0.8333333
    %v717 = vmul.f32 %v716, %v678
    %v718 = vadd.f32 %v715, %v717
    %v719 = vmul.f32 %v606, 0.8333333
    %v720 = vmul.f32 %v719, %v678
    %v721 = vmul.f32 %v623, 0.8333333
    %v722 = vmul.f32 %v721, %v683
    %v723 = vadd.f32 %v720, %v722
    %v724 = vmul.f32 %v613, 0.8333333
    %v725 = vmul.f32 %v724, %v683
    %v726 = vmul.f32 %v630, 0.8333333
    %v727 = vmul.f32 %v726, %v688
    %v728 = vadd.f32 %v725, %v727
    %v729 = vmul.f32 %v620, 0.8333333
    %v730 = vmul.f32 %v729, %v688
    %v731 = vmul.f32 %v637, 0.8333333
    %v732 = vmul.f32 %v731, %v693
    %v733 = vadd.f32 %v730, %v732
    %v734 = vmul.f32 %v627, 0.8333333
    %v735 = vmul.f32 %v734, %v693
    %v736 = vmul.f32 %v644, 0.8333333
    %v737 = vmul.f32 %v736, %v698
    %v738 = vadd.f32 %v735, %v737
    %v739 = vmul.f32 %v634, 0.8333333
    %v740 = vmul.f32 %v739, %v698
    %v741 = vmul.f32 %v651, 0.8333333
    %v742 = vmul.f32 %v741, %v703
    %v743 = vadd.f32 %v740, %v742
    %v744 = vmul.f32 %v641, 0.8333333
    %v745 = vmul.f32 %v744, %v703
    %v746 = vmul.f32 %v658, 0.8333333
    %v747 = vmul.f32 %v746, %v708
    %v748 = vadd.f32 %v745, %v747
    %v749 = vmul.f32 %v648, 0.8333333
    %v750 = vmul.f32 %v749, %v708
    %v751 = vmul.f32 %v665, 0.8333333
    %v752 = vmul.f32 %v751, %v713
    %v753 = vadd.f32 %v750, %v752
    %v754 = vxor.u32 %v471, 2147483648
    %v755 = vmul.f32 %v754, 1.442695
    %v756 = vpow.pop %v755
    %v757 = vadd.f32 %v756, 1.0
    %v758 = vrcp.pop %v757
    %v759 = vmul.f32 1.0, %v758
    %v760 = vmul.f32 %v471, %v759
    %762 = vrot.lane.b32.xlu0 %v718, 64
    %v763 = vpop.permute.xlu0 %762
    %766 = vrot.lane.b32.xlu0 %v728, 64
    %v767 = vpop.permute.xlu0 %766
    %770 = vrot.lane.b32.xlu0 %v738, 64
    %v771 = vpop.permute.xlu0 %770
    %774 = vrot.lane.b32.xlu0 %v748, 64
    %v775 = vpop.permute.xlu0 %774
    %v777 = vsel %vm64, %v760, %v763
    %v778 = vsel %vm64, %v723, %v767
    %v779 = vsel %vm64, %v733, %v771
    %v780 = vsel %vm64, %v743, %v775
    %v782 = vsel %vm64, %v753, 0
    %784 = vmatprep.subr.mxu0 0.0
    %785 = vmatpush1.msra.mxu0 %v472
    %786 = vmatprep.subr.mxu0 0.0
    %787 = vmatpush1.msra.mxu0 %v473
    %788 = vmatprep.subr.mxu0 0.0
    %789 = vmatpush1.msra.mxu0 %v474
    %790 = vmatprep.subr.mxu0 0.0
    %791 = vmatpush1.msra.mxu0 %v475
    %792 = vmatprep.subr.mxu0 0.0
    %793 = vmatpush1.msra.mxu0 %v476
    %794 = vmatprep.subr.mxu0 0.0
    %795 = vmatpush1.msra.mxu0 %v477
    %796 = vmatprep.subr.mxu0 0.0
    %797 = vmatpush1.msra.mxu0 %v478
    %798 = vmatprep.subr.mxu0 0.0
    %799 = vmatpush1.msra.mxu0 %v479
    %800 = vmatprep.subr.mxu0 0.0
    %801 = vmatpush1.msra.mxu0 %v480
    %802 = vmatprep.subr.mxu0 0.0
    %803 = vmatpush1.msra.mxu0 %v481
    %804 = vmatprep.subr.mxu0 0.0
    %805 = vmatpush1.msra.mxu0 %v482
    %806 = vmatprep.subr.mxu0 0.0
    %807 = vmatpush1.msra.mxu0 %v483
    %808 = vmatprep.subr.mxu0 0.0
    %809 = vmatpush1.msra.mxu0 %v484
    %810 = vmatprep.subr.mxu0 0.0
    %811 = vmatpush1.msra.mxu0 %v485
    %812 = vmatprep.subr.mxu0 0.0
    %813 = vmatpush1.msra.mxu0 %v486
    %814 = vmatprep.subr.mxu0 0.0
    %815 = vmatpush1.msra.mxu0 %v487
    %816 = vmatprep.subr.mxu0 0.0
    %817 = vmatpush1.msra.mxu0 %v488
    %818 = vmatprep.subr.mxu0 0.0
    %819 = vmatpush1.msra.mxu0 %v489
    %820 = vmatprep.subr.mxu0 0.0
    %821 = vmatpush1.msra.mxu0 %v490
    %822 = vmatprep.subr.mxu0 0.0
    %823 = vmatpush1.msra.mxu0 %v491
    %824 = vmatprep.subr.mxu0 0.0
    %825 = vmatpush1.msra.mxu0 %v492
    %826 = vmatprep.subr.mxu0 0.0
    %827 = vmatpush1.msra.mxu0 %v493
    %828 = vmatprep.subr.mxu0 0.0
    %829 = vmatpush1.msra.mxu0 %v494
    %830 = vmatprep.subr.mxu0 0.0
    %831 = vmatpush1.msra.mxu0 %v495
    %832 = vmatprep.subr.mxu0 0.0
    %833 = vmatpush1.msra.mxu0 %v496
    %834 = vmatprep.subr.mxu0 0.0
    %835 = vmatpush1.msra.mxu0 %v497
    %836 = vmatprep.subr.mxu0 0.0
    %837 = vmatpush1.msra.mxu0 %v498
    %838 = vmatprep.subr.mxu0 0.0
    %839 = vmatpush1.msra.mxu0 %v499
    %840 = vmatprep.subr.mxu0 0.0
    %841 = vmatpush1.msra.mxu0 %v500
    %842 = vmatprep.subr.mxu0 0.0
    %843 = vmatpush1.msra.mxu0 %v501
    %844 = vmatprep.subr.mxu0 0.0
    %845 = vmatpush1.msra.mxu0 %v502
    %846 = vmatprep.subr.mxu0 0.0
    %847 = vmatpush1.msra.mxu0 %v503
    %848 = vmatprep.mubr.f32.mxu0 %v778
    %849 = vmatmul.mubr.f32.gmra.mrb[0].mxu0 %v777
    %v850 = vpop.f32.mrb[0].mxu0
    %v851 = vadd.f32 0.0, %v850
    %v852 = vpop.f32.mrb[0].mxu0
    %853 = vdwg.mxu0
    %854 = vmatprep.subr.mxu0 0.0
    %855 = vmatpush1.msra.mxu0 %v504
    %856 = vmatprep.subr.mxu0 0.0
    %857 = vmatpush1.msra.mxu0 %v505
    %858 = vmatprep.subr.mxu0 0.0
    %859 = vmatpush1.msra.mxu0 %v506
    %860 = vmatprep.subr.mxu0 0.0
    %861 = vmatpush1.msra.mxu0 %v507
    %862 = vmatprep.subr.mxu0 0.0
    %863 = vmatpush1.msra.mxu0 %v508
    %864 = vmatprep.subr.mxu0 0.0
    %865 = vmatpush1.msra.mxu0 %v509
    %866 = vmatprep.subr.mxu0 0.0
    %867 = vmatpush1.msra.mxu0 %v510
    %868 = vmatprep.subr.mxu0 0.0
    %869 = vmatpush1.msra.mxu0 %v511
    %870 = vmatprep.subr.mxu0 0.0
    %871 = vmatpush1.msra.mxu0 %v512
    %872 = vmatprep.subr.mxu0 0.0
    %873 = vmatpush1.msra.mxu0 %v513
    %874 = vmatprep.subr.mxu0 0.0
    %875 = vmatpush1.msra.mxu0 %v514
    %876 = vmatprep.subr.mxu0 0.0
    %877 = vmatpush1.msra.mxu0 %v515
    %878 = vmatprep.subr.mxu0 0.0
    %879 = vmatpush1.msra.mxu0 %v516
    %880 = vmatprep.subr.mxu0 0.0
    %881 = vmatpush1.msra.mxu0 %v517
    %882 = vmatprep.subr.mxu0 0.0
    %883 = vmatpush1.msra.mxu0 %v518
    %884 = vmatprep.subr.mxu0 0.0
    %885 = vmatpush1.msra.mxu0 %v519
    %886 = vmatprep.subr.mxu0 0.0
    %887 = vmatpush1.msra.mxu0 %v520
    %888 = vmatprep.subr.mxu0 0.0
    %889 = vmatpush1.msra.mxu0 %v521
    %890 = vmatprep.subr.mxu0 0.0
    %891 = vmatpush1.msra.mxu0 %v522
    %892 = vmatprep.subr.mxu0 0.0
    %893 = vmatpush1.msra.mxu0 %v523
    %894 = vmatprep.subr.mxu0 0.0
    %895 = vmatpush1.msra.mxu0 %v524
    %896 = vmatprep.subr.mxu0 0.0
    %897 = vmatpush1.msra.mxu0 %v525
    %898 = vmatprep.subr.mxu0 0.0
    %899 = vmatpush1.msra.mxu0 %v526
    %900 = vmatprep.subr.mxu0 0.0
    %901 = vmatpush1.msra.mxu0 %v527
    %902 = vmatprep.subr.mxu0 0.0
    %903 = vmatpush1.msra.mxu0 %v528
    %904 = vmatprep.subr.mxu0 0.0
    %905 = vmatpush1.msra.mxu0 %v529
    %906 = vmatprep.subr.mxu0 0.0
    %907 = vmatpush1.msra.mxu0 %v530
    %908 = vmatprep.subr.mxu0 0.0
    %909 = vmatpush1.msra.mxu0 %v531
    %910 = vmatprep.subr.mxu0 0.0
    %911 = vmatpush1.msra.mxu0 %v532
    %912 = vmatprep.subr.mxu0 0.0
    %913 = vmatpush1.msra.mxu0 %v533
    %914 = vmatprep.subr.mxu0 0.0
    %915 = vmatpush1.msra.mxu0 %v534
    %916 = vmatprep.subr.mxu0 0.0
    %917 = vmatpush1.msra.mxu0 %v535
    %918 = vmatprep.mubr.f32.mxu0 %v780
    %919 = vmatmul.mubr.f32.gmra.mrb[0].mxu0 %v779
    %v920 = vpop.f32.mrb[0].mxu0
    %v921 = vadd.f32 %v851, %v920
    %v922 = vpop.f32.mrb[0].mxu0
    %923 = vdwg.mxu0
    %924 = vmatprep.subr.mxu0 0.0
    %925 = vmatpush1.msra.mxu0 %v536
    %926 = vmatprep.subr.mxu0 0.0
    %927 = vmatpush1.msra.mxu0 %v537
    %928 = vmatprep.subr.mxu0 0.0
    %929 = vmatpush1.msra.mxu0 %v538
    %930 = vmatprep.subr.mxu0 0.0
    %931 = vmatpush1.msra.mxu0 %v539
    %932 = vmatprep.subr.mxu0 0.0
    %933 = vmatpush1.msra.mxu0 %v540
    %934 = vmatprep.subr.mxu0 0.0
    %935 = vmatpush1.msra.mxu0 %v541
    %936 = vmatprep.subr.mxu0 0.0
    %937 = vmatpush1.msra.mxu0 %v542
    %938 = vmatprep.subr.mxu0 0.0
    %939 = vmatpush1.msra.mxu0 %v543
    %940 = vmatprep.subr.mxu0 0.0
    %941 = vmatpush1.msra.mxu0 0.0
    %942 = vmatprep.subr.mxu0 0.0
    %943 = vmatpush1.msra.mxu0 0.0
    %944 = vmatprep.subr.mxu0 0.0
    %945 = vmatpush1.msra.mxu0 0.0
    %946 = vmatprep.subr.mxu0 0.0
    %947 = vmatpush1.msra.mxu0 0.0
    %948 = vmatprep.subr.mxu0 0.0
    %949 = vmatpush1.msra.mxu0 0.0
    %950 = vmatprep.subr.mxu0 0.0
    %951 = vmatpush1.msra.mxu0 0.0
    %952 = vmatprep.subr.mxu0 0.0
    %953 = vmatpush1.msra.mxu0 0.0
    %954 = vmatprep.subr.mxu0 0.0
    %955 = vmatpush1.msra.mxu0 0.0
    %956 = vmatprep.subr.mxu0 0.0
    %957 = vmatpush1.msra.mxu0 0.0
    %958 = vmatprep.subr.mxu0 0.0
    %959 = vmatpush1.msra.mxu0 0.0
    %960 = vmatprep.subr.mxu0 0.0
    %961 = vmatpush1.msra.mxu0 0.0
    %962 = vmatprep.subr.mxu0 0.0
    %963 = vmatpush1.msra.mxu0 0.0
    %964 = vmatprep.subr.mxu0 0.0
    %965 = vmatpush1.msra.mxu0 0.0
    %966 = vmatprep.subr.mxu0 0.0
    %967 = vmatpush1.msra.mxu0 0.0
    %968 = vmatprep.subr.mxu0 0.0
    %969 = vmatpush1.msra.mxu0 0.0
    %970 = vmatprep.subr.mxu0 0.0
    %971 = vmatpush1.msra.mxu0 0.0
    %972 = vmatprep.subr.mxu0 0.0
    %973 = vmatpush1.msra.mxu0 0.0
    %974 = vmatprep.subr.mxu0 0.0
    %975 = vmatpush1.msra.mxu0 0.0
    %976 = vmatprep.subr.mxu0 0.0
    %977 = vmatpush1.msra.mxu0 0.0
    %978 = vmatprep.subr.mxu0 0.0
    %979 = vmatpush1.msra.mxu0 0.0
    %980 = vmatprep.subr.mxu0 0.0
    %981 = vmatpush1.msra.mxu0 0.0
    %982 = vmatprep.subr.mxu0 0.0
    %983 = vmatpush1.msra.mxu0 0.0
    %984 = vmatprep.subr.mxu0 0.0
    %985 = vmatpush1.msra.mxu0 0.0
    %986 = vmatprep.subr.mxu0 0.0
    %987 = vmatpush1.msra.mxu0 0.0
    %988 = vmatprep.mubr.f32.mxu0 0.0
    %989 = vmatmul.mubr.f32.gmra.mrb[0].mxu0 %v782
    %v990 = vpop.f32.mrb[0].mxu0
    %v991 = vadd.f32 %v921, %v990
    %v992 = vpop.f32.mrb[0].mxu0
    %993 = vdwg.mxu0
    %v994 = vld [vmem:[%s6] sm:$0xff]
    %v995 = vld [vmem:[%s6 + $0x8] sm:$0xff]
    %v996 = vld [vmem:[%s6 + $0x10] sm:$0xff]
    %v997 = vld [vmem:[%s6 + $0x18] sm:$0xff]
    %v998 = vld [vmem:[%s6 + $0x20] sm:$0xff]
    %v999 = vld [vmem:[%s6 + $0x28] sm:$0xff]
    %v1000 = vld [vmem:[%s6 + $0x30] sm:$0xff]
    %v1001 = vld [vmem:[%s6 + $0x38] sm:$0xff]
    %v1002 = vld [vmem:[%s6 + $0x40] sm:$0xff]
    %v1003 = vld [vmem:[%s6 + $0x48] sm:$0xff]
    %v1004 = vld [vmem:[%s6 + $0x50] sm:$0xff]
    %v1005 = vld [vmem:[%s6 + $0x58] sm:$0x3]
    %vm1006 = vcmp.ge.f32.partialorder %v991, -2.2
    %vm1007 = vcmp.lt.f32.partialorder %v991, -1.8
    %vm1008 = vmand %vm1006, %vm1007
    %v1009 = vsel %vm1008, 1, 0
    %v1010 = vcvt.s32.f32 %v1009
    %vm1011 = vcmp.ge.f32.partialorder %v991, -1.8
    %vm1012 = vcmp.lt.f32.partialorder %v991, -1.4
    %vm1013 = vmand %vm1011, %vm1012
    %v1014 = vsel %vm1013, 1, 0
    %v1015 = vcvt.s32.f32 %v1014
    %vm1016 = vcmp.ge.f32.partialorder %v991, -1.4
    %vm1017 = vcmp.lt.f32.partialorder %v991, -1.0
    %vm1018 = vmand %vm1016, %vm1017
    %v1019 = vsel %vm1018, 1, 0
    %v1020 = vcvt.s32.f32 %v1019
    %vm1021 = vcmp.ge.f32.partialorder %v991, -1.0
    %vm1022 = vcmp.lt.f32.partialorder %v991, -0.6
    %vm1023 = vmand %vm1021, %vm1022
    %v1024 = vsel %vm1023, 1, 0
    %v1025 = vcvt.s32.f32 %v1024
    %vm1026 = vcmp.ge.f32.partialorder %v991, -0.6
    %vm1027 = vcmp.lt.f32.partialorder %v991, -0.2
    %vm1028 = vmand %vm1026, %vm1027
    %v1029 = vsel %vm1028, 1, 0
    %v1030 = vcvt.s32.f32 %v1029
    %vm1031 = vcmp.ge.f32.partialorder %v991, -0.2
    %vm1032 = vcmp.lt.f32.partialorder %v991, 0.2
    %vm1033 = vmand %vm1031, %vm1032
    %v1034 = vsel %vm1033, 1, 0
    %v1035 = vcvt.s32.f32 %v1034
    %vm1036 = vcmp.ge.f32.partialorder %v991, 0.2
    %vm1037 = vcmp.lt.f32.partialorder %v991, 0.6
    %vm1038 = vmand %vm1036, %vm1037
    %v1039 = vsel %vm1038, 1, 0
    %v1040 = vcvt.s32.f32 %v1039
    %vm1041 = vcmp.ge.f32.partialorder %v991, 0.6
    %vm1042 = vcmp.lt.f32.partialorder %v991, 1.0
    %vm1043 = vmand %vm1041, %vm1042
    %v1044 = vsel %vm1043, 1, 0
    %v1045 = vcvt.s32.f32 %v1044
    %vm1046 = vcmp.ge.f32.partialorder %v991, 1.0
    %vm1047 = vcmp.lt.f32.partialorder %v991, 1.4
    %vm1048 = vmand %vm1046, %vm1047
    %v1049 = vsel %vm1048, 1, 0
    %v1050 = vcvt.s32.f32 %v1049
    %vm1051 = vcmp.ge.f32.partialorder %v991, 1.4
    %vm1052 = vcmp.lt.f32.partialorder %v991, 1.8
    %vm1053 = vmand %vm1051, %vm1052
    %v1054 = vsel %vm1053, 1, 0
    %v1055 = vcvt.s32.f32 %v1054
    %vm1056 = vcmp.ge.f32.partialorder %v991, 1.8
    %vm1057 = vcmp.lt.f32.partialorder %v991, 2.2
    %vm1058 = vmand %vm1056, %vm1057
    %v1059 = vsel %vm1058, 1, 0
    %v1060 = vcvt.s32.f32 %v1059
    %v1061 = vsub.f32 %v991, -2.2
    %v1062 = vmul.f32 %v1061, 2.5
    %v1063 = vmul.f32 %v1062, %v1010
    %v1064 = vsub.f32 -1.4, %v991
    %v1065 = vmul.f32 %v1064, 2.5
    %v1066 = vmul.f32 %v1065, %v1015
    %v1067 = vadd.f32 %v1063, %v1066
    %v1068 = vsub.f32 %v991, -1.8
    %v1069 = vmul.f32 %v1068, 2.5
    %v1070 = vmul.f32 %v1069, %v1015
    %v1071 = vsub.f32 -1.0, %v991
    %v1072 = vmul.f32 %v1071, 2.5
    %v1073 = vmul.f32 %v1072, %v1020
    %v1074 = vadd.f32 %v1070, %v1073
    %v1075 = vsub.f32 %v991, -1.4
    %v1076 = vmul.f32 %v1075, 2.5
    %v1077 = vmul.f32 %v1076, %v1020
    %v1078 = vsub.f32 -0.6, %v991
    %v1079 = vmul.f32 %v1078, 2.5
    %v1080 = vmul.f32 %v1079, %v1025
    %v1081 = vadd.f32 %v1077, %v1080
    %v1082 = vsub.f32 %v991, -1.0
    %v1083 = vmul.f32 %v1082, 2.5
    %v1084 = vmul.f32 %v1083, %v1025
    %v1085 = vsub.f32 -0.2, %v991
    %v1086 = vmul.f32 %v1085, 2.5
    %v1087 = vmul.f32 %v1086, %v1030
    %v1088 = vadd.f32 %v1084, %v1087
    %v1089 = vsub.f32 %v991, -0.6
    %v1090 = vmul.f32 %v1089, 2.5
    %v1091 = vmul.f32 %v1090, %v1030
    %v1092 = vsub.f32 0.2, %v991
    %v1093 = vmul.f32 %v1092, 2.5
    %v1094 = vmul.f32 %v1093, %v1035
    %v1095 = vadd.f32 %v1091, %v1094
    %v1096 = vsub.f32 %v991, -0.2
    %v1097 = vmul.f32 %v1096, 2.5
    %v1098 = vmul.f32 %v1097, %v1035
    %v1099 = vsub.f32 0.6, %v991
    %v1100 = vmul.f32 %v1099, 2.5
    %v1101 = vmul.f32 %v1100, %v1040
    %v1102 = vadd.f32 %v1098, %v1101
    %v1103 = vsub.f32 %v991, 0.2
    %v1104 = vmul.f32 %v1103, 2.5
    %v1105 = vmul.f32 %v1104, %v1040
    %v1106 = vsub.f32 1.0, %v991
    %v1107 = vmul.f32 %v1106, 2.5
    %v1108 = vmul.f32 %v1107, %v1045
    %v1109 = vadd.f32 %v1105, %v1108
    %v1110 = vsub.f32 %v991, 0.6
    %v1111 = vmul.f32 %v1110, 2.5
    %v1112 = vmul.f32 %v1111, %v1045
    %v1113 = vsub.f32 1.4, %v991
    %v1114 = vmul.f32 %v1113, 2.5
    %v1115 = vmul.f32 %v1114, %v1050
    %v1116 = vadd.f32 %v1112, %v1115
    %v1117 = vsub.f32 %v991, 1.0
    %v1118 = vmul.f32 %v1117, 2.5
    %v1119 = vmul.f32 %v1118, %v1050
    %v1120 = vsub.f32 1.8, %v991
    %v1121 = vmul.f32 %v1120, 2.5
    %v1122 = vmul.f32 %v1121, %v1055
    %v1123 = vadd.f32 %v1119, %v1122
    %v1124 = vsub.f32 %v991, 1.4
    %v1125 = vmul.f32 %v1124, 2.5
    %v1126 = vmul.f32 %v1125, %v1055
    %v1127 = vsub.f32 2.2, %v991
    %v1128 = vmul.f32 %v1127, 2.5
    %v1129 = vmul.f32 %v1128, %v1060
    %v1130 = vadd.f32 %v1126, %v1129
    %v1131 = vmul.f32 %v1061, 1.25
    %v1132 = vmul.f32 %v1131, %v1067
    %v1133 = vmul.f32 %v1071, 1.25
    %v1134 = vmul.f32 %v1133, %v1074
    %v1135 = vadd.f32 %v1132, %v1134
    %v1136 = vmul.f32 %v1068, 1.25
    %v1137 = vmul.f32 %v1136, %v1074
    %v1138 = vmul.f32 %v1078, 1.25
    %v1139 = vmul.f32 %v1138, %v1081
    %v1140 = vadd.f32 %v1137, %v1139
    %v1141 = vmul.f32 %v1075, 1.25
    %v1142 = vmul.f32 %v1141, %v1081
    %v1143 = vmul.f32 %v1085, 1.25
    %v1144 = vmul.f32 %v1143, %v1088
    %v1145 = vadd.f32 %v1142, %v1144
    %v1146 = vmul.f32 %v1082, 1.25
    %v1147 = vmul.f32 %v1146, %v1088
    %v1148 = vmul.f32 %v1092, 1.25
    %v1149 = vmul.f32 %v1148, %v1095
    %v1150 = vadd.f32 %v1147, %v1149
    %v1151 = vmul.f32 %v1089, 1.25
    %v1152 = vmul.f32 %v1151, %v1095
    %v1153 = vmul.f32 %v1099, 1.25
    %v1154 = vmul.f32 %v1153, %v1102
    %v1155 = vadd.f32 %v1152, %v1154
    %v1156 = vmul.f32 %v1096, 1.25
    %v1157 = vmul.f32 %v1156, %v1102
    %v1158 = vmul.f32 %v1106, 1.25
    %v1159 = vmul.f32 %v1158, %v1109
    %v1160 = vadd.f32 %v1157, %v1159
    %v1161 = vmul.f32 %v1103, 1.25
    %v1162 = vmul.f32 %v1161, %v1109
    %v1163 = vmul.f32 %v1113, 1.25
    %v1164 = vmul.f32 %v1163, %v1116
    %v1165 = vadd.f32 %v1162, %v1164
    %v1166 = vmul.f32 %v1110, 1.25
    %v1167 = vmul.f32 %v1166, %v1116
    %v1168 = vmul.f32 %v1120, 1.25
    %v1169 = vmul.f32 %v1168, %v1123
    %v1170 = vadd.f32 %v1167, %v1169
    %v1171 = vmul.f32 %v1117, 1.25
    %v1172 = vmul.f32 %v1171, %v1123
    %v1173 = vmul.f32 %v1127, 1.25
    %v1174 = vmul.f32 %v1173, %v1130
    %v1175 = vadd.f32 %v1172, %v1174
    %v1176 = vmul.f32 %v1061, 0.8333333
    %v1177 = vmul.f32 %v1176, %v1135
    %v1178 = vmul.f32 %v1078, 0.8333333
    %v1179 = vmul.f32 %v1178, %v1140
    %v1180 = vadd.f32 %v1177, %v1179
    %v1181 = vmul.f32 %v1068, 0.8333333
    %v1182 = vmul.f32 %v1181, %v1140
    %v1183 = vmul.f32 %v1085, 0.8333333
    %v1184 = vmul.f32 %v1183, %v1145
    %v1185 = vadd.f32 %v1182, %v1184
    %v1186 = vmul.f32 %v1075, 0.8333333
    %v1187 = vmul.f32 %v1186, %v1145
    %v1188 = vmul.f32 %v1092, 0.8333333
    %v1189 = vmul.f32 %v1188, %v1150
    %v1190 = vadd.f32 %v1187, %v1189
    %v1191 = vmul.f32 %v1082, 0.8333333
    %v1192 = vmul.f32 %v1191, %v1150
    %v1193 = vmul.f32 %v1099, 0.8333333
    %v1194 = vmul.f32 %v1193, %v1155
    %v1195 = vadd.f32 %v1192, %v1194
    %v1196 = vmul.f32 %v1089, 0.8333333
    %v1197 = vmul.f32 %v1196, %v1155
    %v1198 = vmul.f32 %v1106, 0.8333333
    %v1199 = vmul.f32 %v1198, %v1160
    %v1200 = vadd.f32 %v1197, %v1199
    %v1201 = vmul.f32 %v1096, 0.8333333
    %v1202 = vmul.f32 %v1201, %v1160
    %v1203 = vmul.f32 %v1113, 0.8333333
    %v1204 = vmul.f32 %v1203, %v1165
    %v1205 = vadd.f32 %v1202, %v1204
    %v1206 = vmul.f32 %v1103, 0.8333333
    %v1207 = vmul.f32 %v1206, %v1165
    %v1208 = vmul.f32 %v1120, 0.8333333
    %v1209 = vmul.f32 %v1208, %v1170
    %v1210 = vadd.f32 %v1207, %v1209
    %v1211 = vmul.f32 %v1110, 0.8333333
    %v1212 = vmul.f32 %v1211, %v1170
    %v1213 = vmul.f32 %v1127, 0.8333333
    %v1214 = vmul.f32 %v1213, %v1175
    %v1215 = vadd.f32 %v1212, %v1214
    %v1216 = vxor.u32 %v991, 2147483648
    %v1217 = vmul.f32 %v1216, 1.442695
    %v1218 = vpow.pop %v1217
    %v1219 = vadd.f32 %v1218, 1.0
    %v1220 = vrcp.pop %v1219
    %v1221 = vmul.f32 1.0, %v1220
    %v1222 = vmul.f32 %v991, %v1221
    %1224 = vrot.lane.b32.xlu0 %v1180, 10
    %v1225 = vpop.permute.xlu0 %1224
    %1228 = vrot.lane.b32.xlu0 %v1185, 20
    %v1229 = vpop.permute.xlu0 %1228
    %1232 = vrot.lane.b32.xlu0 %v1190, 30
    %v1233 = vpop.permute.xlu0 %1232
    %1236 = vrot.lane.b32.xlu0 %v1195, 40
    %v1237 = vpop.permute.xlu0 %1236
    %1240 = vrot.lane.b32.xlu0 %v1200, 50
    %v1241 = vpop.permute.xlu0 %1240
    %1244 = vrot.lane.b32.xlu0 %v1205, 60
    %v1245 = vpop.permute.xlu0 %1244
    %1248 = vrot.lane.b32.xlu0 %v1210, 70
    %v1249 = vpop.permute.xlu0 %1248
    %1252 = vrot.lane.b32.xlu0 %v1215, 80
    %v1253 = vpop.permute.xlu0 %1252
    %vm1255 = vcmask 80896
    %v1256 = vsel %vm1255, %v1222, %v1225
    %vm1257 = vcmask 162816
    %v1258 = vsel %vm1257, %v1256, %v1229
    %vm1259 = vcmask 244736
    %v1260 = vsel %vm1259, %v1258, %v1233
    %vm1261 = vcmask 326656
    %v1262 = vsel %vm1261, %v1260, %v1237
    %vm1263 = vcmask 408576
    %v1264 = vsel %vm1263, %v1262, %v1241
    %vm1265 = vcmask 490496
    %v1266 = vsel %vm1265, %v1264, %v1245
    %vm1267 = vcmask 572416
    %v1268 = vsel %vm1267, %v1266, %v1249
    %vm1269 = vcmask 654336
    %v1270 = vsel %vm1269, %v1268, %v1253
    %vm1271 = vcmask 736256
    %v1273 = vsel %vm1271, %v1270, 0
    %vm1275 = vcmask 1041408
    %v1277 = vsel %vm1275, %v1005, 0
    %1279 = vmatprep.subr.mxu0 0.0
    %1280 = vmatpush1.msra.mxu0 %v994
    %1281 = vmatprep.subr.mxu0 0.0
    %1282 = vmatpush1.msra.mxu0 %v995
    %1283 = vmatprep.subr.mxu0 0.0
    %1284 = vmatpush1.msra.mxu0 %v996
    %1285 = vmatprep.subr.mxu0 0.0
    %1286 = vmatpush1.msra.mxu0 %v997
    %1287 = vmatprep.subr.mxu0 0.0
    %1288 = vmatpush1.msra.mxu0 %v998
    %1289 = vmatprep.subr.mxu0 0.0
    %1290 = vmatpush1.msra.mxu0 %v999
    %1291 = vmatprep.subr.mxu0 0.0
    %1292 = vmatpush1.msra.mxu0 %v1000
    %1293 = vmatprep.subr.mxu0 0.0
    %1294 = vmatpush1.msra.mxu0 %v1001
    %1295 = vmatprep.subr.mxu0 0.0
    %1296 = vmatpush1.msra.mxu0 %v1002
    %1297 = vmatprep.subr.mxu0 0.0
    %1298 = vmatpush1.msra.mxu0 %v1003
    %1299 = vmatprep.subr.mxu0 0.0
    %1300 = vmatpush1.msra.mxu0 %v1004
    %1301 = vmatprep.subr.mxu0 0.0
    %1302 = vmatpush1.msra.mxu0 %v1277
    %1303 = vmatprep.subr.mxu0 0.0
    %1304 = vmatpush1.msra.mxu0 0.0
    %1305 = vmatprep.subr.mxu0 0.0
    %1306 = vmatpush1.msra.mxu0 0.0
    %1307 = vmatprep.subr.mxu0 0.0
    %1308 = vmatpush1.msra.mxu0 0.0
    %1309 = vmatprep.subr.mxu0 0.0
    %1310 = vmatpush1.msra.mxu0 0.0
    %1311 = vmatprep.subr.mxu0 0.0
    %1312 = vmatpush1.msra.mxu0 0.0
    %1313 = vmatprep.subr.mxu0 0.0
    %1314 = vmatpush1.msra.mxu0 0.0
    %1315 = vmatprep.subr.mxu0 0.0
    %1316 = vmatpush1.msra.mxu0 0.0
    %1317 = vmatprep.subr.mxu0 0.0
    %1318 = vmatpush1.msra.mxu0 0.0
    %1319 = vmatprep.subr.mxu0 0.0
    %1320 = vmatpush1.msra.mxu0 0.0
    %1321 = vmatprep.subr.mxu0 0.0
    %1322 = vmatpush1.msra.mxu0 0.0
    %1323 = vmatprep.subr.mxu0 0.0
    %1324 = vmatpush1.msra.mxu0 0.0
    %1325 = vmatprep.subr.mxu0 0.0
    %1326 = vmatpush1.msra.mxu0 0.0
    %1327 = vmatprep.subr.mxu0 0.0
    %1328 = vmatpush1.msra.mxu0 0.0
    %1329 = vmatprep.subr.mxu0 0.0
    %1330 = vmatpush1.msra.mxu0 0.0
    %1331 = vmatprep.subr.mxu0 0.0
    %1332 = vmatpush1.msra.mxu0 0.0
    %1333 = vmatprep.subr.mxu0 0.0
    %1334 = vmatpush1.msra.mxu0 0.0
    %1335 = vmatprep.subr.mxu0 0.0
    %1336 = vmatpush1.msra.mxu0 0.0
    %1337 = vmatprep.subr.mxu0 0.0
    %1338 = vmatpush1.msra.mxu0 0.0
    %1339 = vmatprep.subr.mxu0 0.0
    %1340 = vmatpush1.msra.mxu0 0.0
    %1341 = vmatprep.subr.mxu0 0.0
    %1342 = vmatpush1.msra.mxu0 0.0
    %1343 = vmatprep.mubr.f32.mxu0 0.0
    %1344 = vmatmul.mubr.f32.gmra.mrb[0].mxu0 %v1273
    %v1345 = vpop.f32.mrb[0].mxu0
    %v1346 = vadd.f32 0.0, %v1345
    %v1347 = vpop.f32.mrb[0].mxu0
    %1348 = vdwg.mxu0
    %vm1349 = vcmask 39936
    %1350 = vst.msk [vmem:[%s7] sm:$0xff] %vm1349, %v1346
    // Predicated region
    $region41: #{_lambda_.3} parent=1 // pred_check
      _
    $region42: #{_lambda_.3} parent=1 // pred_check_branch
      %1352 = sbr.rel (0) target = $region44
    $region43: #{_lambda_.3} parent=1 // pred_region
      _
    $region44: #{_lambda_.3} parent=1 // pred_fallthru
      _
    // Predicated region
    $region45: #{_lambda_.3} parent=1 // pred_check
      _
    $region46: #{_lambda_.3} parent=1 // pred_check_branch
      %1354 = sbr.rel (0) target = $region48
    $region47: #{_lambda_.3} parent=1 // pred_region
      _
    $region48: #{_lambda_.3} parent=1 // pred_fallthru
      _
    %1355 = vsyncpa [#allocation4], 1

</llo_original>
